<compile_context>
chip_gen: v7x
topology: tpu7x:2x2x1
jax: 0.10.0
libtpu: 0.0.40
codegen_flags: <defaults>
</compile_context>

<pallas_src>
import jax
import jax.numpy as jnp
import numpy as np
from jax.experimental import pallas as pl
from jax.experimental.pallas import tpu as pltpu


# ----------------------------- math helpers --------------------------------
def _elu(x):
    # PyTorch nn.ELU(alpha=1.0): x if x > 0 else exp(x) - 1  (overflow-safe)
    return jnp.where(x > 0, x, jnp.exp(jnp.minimum(x, 0.0)) - 1.0)


def _sigmoid(x):
    # numerically stable sigmoid: exp of a non-positive argument only
    ex = jnp.exp(-jnp.abs(x))
    return jnp.where(x >= 0, 1.0 / (1.0 + ex), ex / (1.0 + ex))


def _identity(x):
    return x


def _mlp2(x, w0, b0, w1, b1, hidden_act, output_act):
    """rlkit Mlp with one hidden layer (reference path, full-precision matmuls)."""
    prec = jax.lax.Precision.HIGHEST
    h = hidden_act(jnp.dot(x, w0, precision=prec) + b0)
    return output_act(jnp.dot(h, w1, precision=prec) + b1)


# ------------------------------ Pallas kernel -------------------------------
def physics_kernel(lam_ref, sl_ref, sr_ref, ss_ref,
                   le_w0_ref, le_b0_ref, le_w1_ref, le_b1_ref,      # lambda_encoder
                   emt_ref, emb_ref, em_b0_ref, em_w1_ref, em_b1_ref,  # embedding
                   ea_w0_ref, ea_b0_ref, ea_w1_ref, ea_b1_ref,      # fused effect+attention
                   en_w0_ref, en_b0_ref, en_w1_ref, en_b1_ref,      # encoder_network
                   out_ref):
    f32 = jnp.float32
    lam = lam_ref[...]                                              # (B*K, rep)

    # lambda_encoder: ELU hidden, linear output -> enc (B*K, E)
    h = _elu(jnp.dot(lam, le_w0_ref[...], preferred_element_type=f32) + le_b0_ref[...])
    enc = jnp.dot(h, le_w1_ref[...], preferred_element_type=f32) + le_b1_ref[...]

    # embedding_network layer 1 with the pair concat folded into the matmul:
    #   concat(enc_i, enc_j) @ em_w0 == enc_i @ em_w0[:E] + enc_j @ em_w0[E:]
    # Ordered (i != j) pair rows are produced by constant 0/1 selection matmuls.
    u = jnp.dot(enc, emt_ref[...], preferred_element_type=f32)      # (B*K, 256)
    v = jnp.dot(enc, emb_ref[...], preferred_element_type=f32)      # (B*K, 256)
    pre1 = (jnp.dot(sl_ref[...], u, preferred_element_type=f32)
            + jnp.dot(sr_ref[...], v, preferred_element_type=f32)
            + em_b0_ref[...])                                       # (B*P, 256)
    h1 = _elu(pre1)
    interaction = _elu(jnp.dot(h1, em_w1_ref[...], preferred_element_type=f32)
                       + em_b1_ref[...])                            # (B*P, 128)

    # effect_network + attention_network fused: one 128->256 and one 256->256 matmul.
    h2 = _elu(jnp.dot(interaction, ea_w0_ref[...], preferred_element_type=f32)
              + ea_b0_ref[...])                                     # (B*P, 256)
    o2 = jnp.dot(h2, ea_w1_ref[...], preferred_element_type=f32) + ea_b1_ref[...]
    n_eff = en_w0_ref.shape[0]                                      # interaction size (128)
    effect = _elu(o2[:, :n_eff])                                    # (B*P, 128)
    attention = _sigmoid(o2[:, n_eff:n_eff + 1])                    # (B*P, 1)

    # per-slot sum over the K-1 partners: one matmul against a constant 0/1 selector.
    total_effect = jnp.dot(ss_ref[...], attention * effect,
                           preferred_element_type=f32)              # (B*K, 128)

    # encoder_network: ELU hidden, linear output -> (B*K, effect_size)
    h3 = _elu(jnp.dot(total_effect, en_w0_ref[...], preferred_element_type=f32)
              + en_b0_ref[...])
    phys = jnp.dot(h3, en_w1_ref[...], preferred_element_type=f32) + en_b1_ref[...]

    # new_lambdas = cat([enc, phys], -1): two slice stores, no lane concat.
    e = enc.shape[1]
    out_ref[:, :e] = enc
    out_ref[:, e:] = phys


# --------------------------- host-side preparation ---------------------------
def prepare_kernel_weights(params):
    """Split / fuse the raw per-network weights into the layout the kernel uses."""
    (le_w0, le_b0, le_w1, le_b1,
     em_w0, em_b0, em_w1, em_b1,
     ef_w0, ef_b0, ef_w1, ef_b1,
     at_w0, at_b0, at_w1, at_b1,
     en_w0, en_b0, en_w1, en_b1) = params

    e = le_w1.shape[1]                            # enc_rep_size
    emt, emb = em_w0[:e], em_w0[e:]               # split embedding layer-1 weight

    n_hid_e = ef_w0.shape[1]                      # effect hidden (128)
    n_hid_a = at_w0.shape[1]                      # attention hidden (128)
    n_eff = ef_w1.shape[1]                        # effect output / interaction size (128)

    # layer 1: [effect_hidden | attention_hidden]
    ea_w0 = jnp.concatenate([ef_w0, at_w0], axis=1)          # (128, 256)
    ea_b0 = jnp.concatenate([ef_b0, at_b0], axis=1)          # (1, 256)
    # layer 2: block matrix -> columns [effect_preact | attention_logit | zeros]
    ea_w1 = jnp.zeros((n_hid_e + n_hid_a, 2 * n_eff), jnp.float32)
    ea_w1 = ea_w1.at[:n_hid_e, :n_eff].set(ef_w1)
    ea_w1 = ea_w1.at[n_hid_e:, n_eff:n_eff + 1].set(at_w1)
    ea_b1 = jnp.zeros((1, 2 * n_eff), jnp.float32)
    ea_b1 = ea_b1.at[:, :n_eff].set(ef_b1)
    ea_b1 = ea_b1.at[:, n_eff:n_eff + 1].set(at_b1)

    return (le_w0, le_b0, le_w1, le_b1,
            emt, emb, em_b0, em_w1, em_b1,
            ea_w0, ea_b0, ea_w1, ea_b1,
            en_w0, en_b0, en_w1, en_b1)


def make_selectors(block_batches, K):
    """Constant 0/1 selectors for pair construction and the per-slot sum.

    Rows of S_L/S_R enumerate (b, i, j) with i != j (i-major), matching the reference
    ordering; S_sum maps row (b, i, j) back to slot row (b, i).
    """
    B, P = block_batches, K * (K - 1)
    sl = np.zeros((B * P, B * K), np.float32)
    sr = np.zeros((B * P, B * K), np.float32)
    ss = np.zeros((B * K, B * P), np.float32)
    for b in range(B):
        p = 0
        for i in range(K):
            for j in range(K):
                if i == j:
                    continue
                row = b * P + p
                sl[row, b * K + i] = 1.0
                sr[row, b * K + j] = 1.0
                ss[b * K + i, row] = 1.0
                p += 1
    return jnp.asarray(sl), jnp.asarray(sr), jnp.asarray(ss)


def _pick_block_batches(bs, max_b=16):
    """Largest divisor of bs <= max_b, preferring a grid of >= 2 steps (v7x: 2 TCs).

    max_b trades MXU fill (B*K*(K-1) pair rows) against the B^2 growth of the
    block-diagonal selectors; 16 keeps selector overhead ~25% of the matmul FLOPs.
    """
    b = min(bs, max_b)
    while bs % b:
        b -= 1
    if bs // b < 2 and b > 1:
        for cand in range(b - 1, 0, -1):
            if bs % cand == 0:
                b = cand
                break
    return b


# ------------------------------ wrapper -------------------------------------
def physics_network_forward(lambda1, lambdas2, params, K, block_batches=None):
    """Mirrors PhysicsNetwork.forward(lambda1, lambdas2) -> (new_lambdas, None)."""
    del lambdas2  # unused in the reference forward
    bsK, rep = lambda1.shape
    assert bsK % K == 0
    bs = bsK // K

    B = _pick_block_batches(bs) if block_batches is None else block_batches
    assert bs % B == 0

    kernel_weights = prepare_kernel_weights(params)
    sel_l, sel_r, sel_sum = make_selectors(B, K)

    all_inputs = (lambda1, sel_l, sel_r, sel_sum, *kernel_weights)

    in_specs = [pl.BlockSpec((B * K, rep), lambda g: (g, 0))]
    for w in all_inputs[1:]:
        # full-array blocks with a constant index map -> DMA'd once, reused each step
        in_specs.append(pl.BlockSpec(w.shape, lambda g: (0, 0)))
    out_spec = pl.BlockSpec((B * K, rep), lambda g: (g, 0))

    new_lambdas = pl.pallas_call(
        physics_kernel,
        grid=(bs // B,),
        in_specs=in_specs,
        out_specs=out_spec,
        out_shape=jax.ShapeDtypeStruct((bsK, rep), jnp.float32),
        compiler_params=pltpu.CompilerParams(dimension_semantics=("parallel",)),
    )(*all_inputs)
    return new_lambdas, None


# --------------------------- parameter creation ------------------------------
def make_params(key, representation_size):
    """Deterministic synthetic parameters matching PhysicsNetwork's shapes.

    Weights are stored as (in_features, out_features): y = x @ W + b.
    """
    effect_size = 16
    enc_rep_size = representation_size - effect_size
    interaction_size = 128

    def linear(k, fan_in, fan_out, bias_val=0.1):
        w = jax.random.normal(k, (fan_in, fan_out), jnp.float32) / np.sqrt(fan_in)
        b = jnp.full((1, fan_out), bias_val, jnp.float32)
        return w, b

    keys = jax.random.split(key, 10)
    # lambda_encoder: rep -> 128 -> enc_rep
    le_w0, le_b0 = linear(keys[0], representation_size, 128)
    le_w1, le_b1 = linear(keys[1], 128, enc_rep_size, bias_val=0.0)
    # embedding_network: 2*enc_rep -> 256 -> 128
    em_w0, em_b0 = linear(keys[2], 2 * enc_rep_size, 256)
    em_w1, em_b1 = linear(keys[3], 256, interaction_size, bias_val=0.0)
    # effect_network: 128 -> 128 -> 128
    ef_w0, ef_b0 = linear(keys[4], interaction_size, 128)
    ef_w1, ef_b1 = linear(keys[5], 128, interaction_size, bias_val=0.0)
    # attention_network: 128 -> 128 -> 1
    at_w0, at_b0 = linear(keys[6], interaction_size, 128)
    at_w1, at_b1 = linear(keys[7], 128, 1, bias_val=0.0)
    # encoder_network: 128 -> 128 -> effect_size
    en_w0, en_b0 = linear(keys[8], interaction_size, 128)
    en_w1, en_b1 = linear(keys[9], 128, effect_size, bias_val=0.0)

    return (le_w0, le_b0, le_w1, le_b1,
            em_w0, em_b0, em_w1, em_b1,
            ef_w0, ef_b0, ef_w1, ef_b1,
            at_w0, at_b0, at_w1, at_b1,
            en_w0, en_b0, en_w1, en_b1)


# ---------------------------- pure-JAX reference -----------------------------
def reference_forward(lambda1, params, K):
    (le_w0, le_b0, le_w1, le_b1,
     em_w0, em_b0, em_w1, em_b1,
     ef_w0, ef_b0, ef_w1, ef_b1,
     at_w0, at_b0, at_w1, at_b1,
     en_w0, en_b0, en_w1, en_b1) = params

    bsK, rep = lambda1.shape
    bs = bsK // K

    enc_flat = _mlp2(lambda1, le_w0, le_b0, le_w1, le_b1, _elu, _identity)
    E = enc_flat.shape[1]
    enc = enc_flat.reshape(bs, K, E)

    pairs = []
    for i in range(K):
        for j in range(K):
            if i == j:
                continue
            pairs.append(jnp.concatenate([enc[:, i], enc[:, j]], -1))
    all_pairs = jnp.stack(pairs, 1).reshape(bs * K * (K - 1), 2 * E)

    interaction = _mlp2(all_pairs, em_w0, em_b0, em_w1, em_b1, _elu, _elu)
    effect = _mlp2(interaction, ef_w0, ef_b0, ef_w1, ef_b1, _elu, _elu)
    attention = _mlp2(interaction, at_w0, at_b0, at_w1, at_b1, _elu, _sigmoid)
    total_effect = (attention * effect).reshape(bs * K, K - 1, -1).sum(1)
    lambda_physics = _mlp2(total_effect, en_w0, en_b0, en_w1, en_b1, _elu, _identity)
    return jnp.concatenate([enc_flat, lambda_physics], -1)


# --------------------------------- main --------------------------------------
if __name__ == "__main__":
    K = 8
    representation_size = 32          # enc_rep_size = 16, effect_size = 16
    action_size = 4                   # unused in forward (kept for parity)
    bs = 8

    key = jax.random.PRNGKey(0)
    k_par, k_lam1, k_lam2 = jax.random.split(key, 3)

    params = make_params(k_par, representation_size)
    lambda1 = jax.random.normal(k_lam1, (bs * K, representation_size), jnp.float32)
    lambdas2 = jax.random.normal(k_lam2, (bs * K, representation_size), jnp.float32)

    new_lambdas, hidden = physics_network_forward(lambda1, lambdas2, params, K)
    new_lambdas = jax.block_until_ready(new_lambdas)
    assert hidden is None
    assert new_lambdas.shape == (bs * K, representation_size)

    ref = jax.block_until_ready(reference_forward(lambda1, params, K))
    # Tolerance accommodates TPU f32 matmul precision differences between the Mosaic
    # kernel (default-precision dots) and the HIGHEST-precision XLA reference.
    np.testing.assert_allclose(np.asarray(new_lambdas), np.asarray(ref),
                               rtol=1e-2, atol=1e-2)

    # TODO(synk): initialize_hidden references self.lstm_size which does not exist in
    # __init__ (dead code in the original module); not implemented.
    print("KERNEL_OK")
</pallas_src>

<mosaic_0001>
module attributes {stable_mosaic.version = 11 : i64} {
  func.func @physics_kernel(%arg0: i32, %arg1: memref<32x32xf32, #tpu.memory_space<vmem>>, %arg2: memref<224x32xf32, #tpu.memory_space<vmem>>, %arg3: memref<224x32xf32, #tpu.memory_space<vmem>>, %arg4: memref<32x224xf32, #tpu.memory_space<vmem>>, %arg5: memref<32x128xf32, #tpu.memory_space<vmem>>, %arg6: memref<1x128xf32, #tpu.memory_space<vmem>>, %arg7: memref<128x16xf32, #tpu.memory_space<vmem>>, %arg8: memref<1x16xf32, #tpu.memory_space<vmem>>, %arg9: memref<16x256xf32, #tpu.memory_space<vmem>>, %arg10: memref<16x256xf32, #tpu.memory_space<vmem>>, %arg11: memref<1x256xf32, #tpu.memory_space<vmem>>, %arg12: memref<256x128xf32, #tpu.memory_space<vmem>>, %arg13: memref<1x128xf32, #tpu.memory_space<vmem>>, %arg14: memref<128x256xf32, #tpu.memory_space<vmem>>, %arg15: memref<1x256xf32, #tpu.memory_space<vmem>>, %arg16: memref<256x256xf32, #tpu.memory_space<vmem>>, %arg17: memref<1x256xf32, #tpu.memory_space<vmem>>, %arg18: memref<128x128xf32, #tpu.memory_space<vmem>>, %arg19: memref<1x128xf32, #tpu.memory_space<vmem>>, %arg20: memref<128x16xf32, #tpu.memory_space<vmem>>, %arg21: memref<1x16xf32, #tpu.memory_space<vmem>>, %arg22: memref<32x32xf32, #tpu.memory_space<vmem>>) attributes {dimension_semantics = [#tpu.dimension_semantics<parallel>], iteration_bounds = array<i64: 2>, scalar_prefetch = 0 : i64, scratch_operands = 0 : i64, tpu.core_type = #tpu.core_type<tc>, window_params = [{transform_indices = @transform_0, window_bounds = array<i64: 32, 32>}, {pipeline_mode = #tpu.pipeline_mode<synchronous>, transform_indices = @transform_1, window_bounds = array<i64: 224, 32>}, {pipeline_mode = #tpu.pipeline_mode<synchronous>, transform_indices = @transform_2, window_bounds = array<i64: 224, 32>}, {pipeline_mode = #tpu.pipeline_mode<synchronous>, transform_indices = @transform_3, window_bounds = array<i64: 32, 224>}, {pipeline_mode = #tpu.pipeline_mode<synchronous>, transform_indices = @transform_4, window_bounds = array<i64: 32, 128>}, {pipeline_mode = #tpu.pipeline_mode<synchronous>, transform_indices = @transform_5, window_bounds = array<i64: 1, 128>}, {pipeline_mode = #tpu.pipeline_mode<synchronous>, transform_indices = @transform_6, window_bounds = array<i64: 128, 16>}, {pipeline_mode = #tpu.pipeline_mode<synchronous>, transform_indices = @transform_7, window_bounds = array<i64: 1, 16>}, {pipeline_mode = #tpu.pipeline_mode<synchronous>, transform_indices = @transform_8, window_bounds = array<i64: 16, 256>}, {pipeline_mode = #tpu.pipeline_mode<synchronous>, transform_indices = @transform_9, window_bounds = array<i64: 16, 256>}, {pipeline_mode = #tpu.pipeline_mode<synchronous>, transform_indices = @transform_10, window_bounds = array<i64: 1, 256>}, {pipeline_mode = #tpu.pipeline_mode<synchronous>, transform_indices = @transform_11, window_bounds = array<i64: 256, 128>}, {pipeline_mode = #tpu.pipeline_mode<synchronous>, transform_indices = @transform_12, window_bounds = array<i64: 1, 128>}, {pipeline_mode = #tpu.pipeline_mode<synchronous>, transform_indices = @transform_13, window_bounds = array<i64: 128, 256>}, {pipeline_mode = #tpu.pipeline_mode<synchronous>, transform_indices = @transform_14, window_bounds = array<i64: 1, 256>}, {pipeline_mode = #tpu.pipeline_mode<synchronous>, transform_indices = @transform_15, window_bounds = array<i64: 256, 256>}, {pipeline_mode = #tpu.pipeline_mode<synchronous>, transform_indices = @transform_16, window_bounds = array<i64: 1, 256>}, {pipeline_mode = #tpu.pipeline_mode<synchronous>, transform_indices = @transform_17, window_bounds = array<i64: 128, 128>}, {pipeline_mode = #tpu.pipeline_mode<synchronous>, transform_indices = @transform_18, window_bounds = array<i64: 1, 128>}, {pipeline_mode = #tpu.pipeline_mode<synchronous>, transform_indices = @transform_19, window_bounds = array<i64: 128, 16>}, {pipeline_mode = #tpu.pipeline_mode<synchronous>, transform_indices = @transform_20, window_bounds = array<i64: 1, 16>}, {transform_indices = @transform_21, window_bounds = array<i64: 32, 32>}]} {
    %c0 = arith.constant 0 : index
    %c0_0 = arith.constant 0 : index
    %0 = vector.load %arg1[%c0, %c0_0] : memref<32x32xf32, #tpu.memory_space<vmem>>, vector<32x32xf32>
    %c0_1 = arith.constant 0 : index
    %c0_2 = arith.constant 0 : index
    %1 = vector.load %arg5[%c0_1, %c0_2] : memref<32x128xf32, #tpu.memory_space<vmem>>, vector<32x128xf32>
    %cst = arith.constant dense<0.000000e+00> : vector<32x128xf32>
    %2 = tpu.matmul %0, %1, %cst {dimension_numbers = #tpu.dot_dimension_numbers<[1], [0], [0], [1], [0, 0, 1, 1], [], []>} : vector<32x32xf32>, vector<32x128xf32>, vector<32x128xf32> -> vector<32x128xf32>
    %c0_3 = arith.constant 0 : index
    %c0_4 = arith.constant 0 : index
    %3 = vector.load %arg6[%c0_3, %c0_4] : memref<1x128xf32, #tpu.memory_space<vmem>>, vector<1x128xf32>
    %4 = vector.broadcast %3 : vector<1x128xf32> to vector<32x128xf32>
    %5 = arith.addf %2, %4 : vector<32x128xf32>
    %cst_5 = arith.constant 0.000000e+00 : f32
    %6 = vector.broadcast %cst_5 : f32 to vector<32x128xf32>
    %7 = arith.cmpf ogt, %5, %6 : vector<32x128xf32>
    %cst_6 = arith.constant 0.000000e+00 : f32
    %8 = vector.broadcast %cst_6 : f32 to vector<32x128xf32>
    %9 = arith.minimumf %5, %8 : vector<32x128xf32>
    %10 = math.exp %9 : vector<32x128xf32>
    %cst_7 = arith.constant 1.000000e+00 : f32
    %11 = vector.broadcast %cst_7 : f32 to vector<32x128xf32>
    %12 = arith.subf %10, %11 : vector<32x128xf32>
    %13 = arith.select %7, %5, %12 : vector<32x128xi1>, vector<32x128xf32>
    %c0_8 = arith.constant 0 : index
    %c0_9 = arith.constant 0 : index
    %14 = vector.load %arg7[%c0_8, %c0_9] : memref<128x16xf32, #tpu.memory_space<vmem>>, vector<128x16xf32>
    %cst_10 = arith.constant dense<0.000000e+00> : vector<32x16xf32>
    %15 = tpu.matmul %13, %14, %cst_10 {dimension_numbers = #tpu.dot_dimension_numbers<[1], [0], [0], [1], [0, 0, 1, 1], [], []>} : vector<32x128xf32>, vector<128x16xf32>, vector<32x16xf32> -> vector<32x16xf32>
    %c0_11 = arith.constant 0 : index
    %c0_12 = arith.constant 0 : index
    %16 = vector.load %arg8[%c0_11, %c0_12] : memref<1x16xf32, #tpu.memory_space<vmem>>, vector<1x16xf32>
    %17 = vector.broadcast %16 : vector<1x16xf32> to vector<32x16xf32>
    %18 = arith.addf %15, %17 : vector<32x16xf32>
    %c0_13 = arith.constant 0 : index
    %c0_14 = arith.constant 0 : index
    %19 = vector.load %arg9[%c0_13, %c0_14] : memref<16x256xf32, #tpu.memory_space<vmem>>, vector<16x256xf32>
    %cst_15 = arith.constant dense<0.000000e+00> : vector<32x256xf32>
    %20 = tpu.matmul %18, %19, %cst_15 {dimension_numbers = #tpu.dot_dimension_numbers<[1], [0], [0], [1], [0, 0, 1, 1], [], []>} : vector<32x16xf32>, vector<16x256xf32>, vector<32x256xf32> -> vector<32x256xf32>
    %c0_16 = arith.constant 0 : index
    %c0_17 = arith.constant 0 : index
    %21 = vector.load %arg10[%c0_16, %c0_17] : memref<16x256xf32, #tpu.memory_space<vmem>>, vector<16x256xf32>
    %cst_18 = arith.constant dense<0.000000e+00> : vector<32x256xf32>
    %22 = tpu.matmul %18, %21, %cst_18 {dimension_numbers = #tpu.dot_dimension_numbers<[1], [0], [0], [1], [0, 0, 1, 1], [], []>} : vector<32x16xf32>, vector<16x256xf32>, vector<32x256xf32> -> vector<32x256xf32>
    %c0_19 = arith.constant 0 : index
    %c0_20 = arith.constant 0 : index
    %23 = vector.load %arg2[%c0_19, %c0_20] : memref<224x32xf32, #tpu.memory_space<vmem>>, vector<224x32xf32>
    %cst_21 = arith.constant dense<0.000000e+00> : vector<224x256xf32>
    %24 = tpu.matmul %23, %20, %cst_21 {dimension_numbers = #tpu.dot_dimension_numbers<[1], [0], [0], [1], [0, 0, 1, 1], [], []>} : vector<224x32xf32>, vector<32x256xf32>, vector<224x256xf32> -> vector<224x256xf32>
    %c0_22 = arith.constant 0 : index
    %c0_23 = arith.constant 0 : index
    %25 = vector.load %arg3[%c0_22, %c0_23] : memref<224x32xf32, #tpu.memory_space<vmem>>, vector<224x32xf32>
    %cst_24 = arith.constant dense<0.000000e+00> : vector<224x256xf32>
    %26 = tpu.matmul %25, %22, %cst_24 {dimension_numbers = #tpu.dot_dimension_numbers<[1], [0], [0], [1], [0, 0, 1, 1], [], []>} : vector<224x32xf32>, vector<32x256xf32>, vector<224x256xf32> -> vector<224x256xf32>
    %27 = arith.addf %24, %26 : vector<224x256xf32>
    %c0_25 = arith.constant 0 : index
    %c0_26 = arith.constant 0 : index
    %28 = vector.load %arg11[%c0_25, %c0_26] : memref<1x256xf32, #tpu.memory_space<vmem>>, vector<1x256xf32>
    %29 = vector.broadcast %28 : vector<1x256xf32> to vector<224x256xf32>
    %30 = arith.addf %27, %29 : vector<224x256xf32>
    %cst_27 = arith.constant 0.000000e+00 : f32
    %31 = vector.broadcast %cst_27 : f32 to vector<224x256xf32>
    %32 = arith.cmpf ogt, %30, %31 : vector<224x256xf32>
    %cst_28 = arith.constant 0.000000e+00 : f32
    %33 = vector.broadcast %cst_28 : f32 to vector<224x256xf32>
    %34 = arith.minimumf %30, %33 : vector<224x256xf32>
    %35 = math.exp %34 : vector<224x256xf32>
    %cst_29 = arith.constant 1.000000e+00 : f32
    %36 = vector.broadcast %cst_29 : f32 to vector<224x256xf32>
    %37 = arith.subf %35, %36 : vector<224x256xf32>
    %38 = arith.select %32, %30, %37 : vector<224x256xi1>, vector<224x256xf32>
    %c0_30 = arith.constant 0 : index
    %c0_31 = arith.constant 0 : index
    %39 = vector.load %arg12[%c0_30, %c0_31] : memref<256x128xf32, #tpu.memory_space<vmem>>, vector<256x128xf32>
    %cst_32 = arith.constant dense<0.000000e+00> : vector<224x128xf32>
    %40 = tpu.matmul %38, %39, %cst_32 {dimension_numbers = #tpu.dot_dimension_numbers<[1], [0], [0], [1], [0, 0, 1, 1], [], []>} : vector<224x256xf32>, vector<256x128xf32>, vector<224x128xf32> -> vector<224x128xf32>
    %c0_33 = arith.constant 0 : index
    %c0_34 = arith.constant 0 : index
    %41 = vector.load %arg13[%c0_33, %c0_34] : memref<1x128xf32, #tpu.memory_space<vmem>>, vector<1x128xf32>
    %42 = vector.broadcast %41 : vector<1x128xf32> to vector<224x128xf32>
    %43 = arith.addf %40, %42 : vector<224x128xf32>
    %cst_35 = arith.constant 0.000000e+00 : f32
    %44 = vector.broadcast %cst_35 : f32 to vector<224x128xf32>
    %45 = arith.cmpf ogt, %43, %44 : vector<224x128xf32>
    %cst_36 = arith.constant 0.000000e+00 : f32
    %46 = vector.broadcast %cst_36 : f32 to vector<224x128xf32>
    %47 = arith.minimumf %43, %46 : vector<224x128xf32>
    %48 = math.exp %47 : vector<224x128xf32>
    %cst_37 = arith.constant 1.000000e+00 : f32
    %49 = vector.broadcast %cst_37 : f32 to vector<224x128xf32>
    %50 = arith.subf %48, %49 : vector<224x128xf32>
    %51 = arith.select %45, %43, %50 : vector<224x128xi1>, vector<224x128xf32>
    %c0_38 = arith.constant 0 : index
    %c0_39 = arith.constant 0 : index
    %52 = vector.load %arg14[%c0_38, %c0_39] : memref<128x256xf32, #tpu.memory_space<vmem>>, vector<128x256xf32>
    %cst_40 = arith.constant dense<0.000000e+00> : vector<224x256xf32>
    %53 = tpu.matmul %51, %52, %cst_40 {dimension_numbers = #tpu.dot_dimension_numbers<[1], [0], [0], [1], [0, 0, 1, 1], [], []>} : vector<224x128xf32>, vector<128x256xf32>, vector<224x256xf32> -> vector<224x256xf32>
    %c0_41 = arith.constant 0 : index
    %c0_42 = arith.constant 0 : index
    %54 = vector.load %arg15[%c0_41, %c0_42] : memref<1x256xf32, #tpu.memory_space<vmem>>, vector<1x256xf32>
    %55 = vector.broadcast %54 : vector<1x256xf32> to vector<224x256xf32>
    %56 = arith.addf %53, %55 : vector<224x256xf32>
    %cst_43 = arith.constant 0.000000e+00 : f32
    %57 = vector.broadcast %cst_43 : f32 to vector<224x256xf32>
    %58 = arith.cmpf ogt, %56, %57 : vector<224x256xf32>
    %cst_44 = arith.constant 0.000000e+00 : f32
    %59 = vector.broadcast %cst_44 : f32 to vector<224x256xf32>
    %60 = arith.minimumf %56, %59 : vector<224x256xf32>
    %61 = math.exp %60 : vector<224x256xf32>
    %cst_45 = arith.constant 1.000000e+00 : f32
    %62 = vector.broadcast %cst_45 : f32 to vector<224x256xf32>
    %63 = arith.subf %61, %62 : vector<224x256xf32>
    %64 = arith.select %58, %56, %63 : vector<224x256xi1>, vector<224x256xf32>
    %c0_46 = arith.constant 0 : index
    %c0_47 = arith.constant 0 : index
    %65 = vector.load %arg16[%c0_46, %c0_47] : memref<256x256xf32, #tpu.memory_space<vmem>>, vector<256x256xf32>
    %cst_48 = arith.constant dense<0.000000e+00> : vector<224x256xf32>
    %66 = tpu.matmul %64, %65, %cst_48 {dimension_numbers = #tpu.dot_dimension_numbers<[1], [0], [0], [1], [0, 0, 1, 1], [], []>} : vector<224x256xf32>, vector<256x256xf32>, vector<224x256xf32> -> vector<224x256xf32>
    %c0_49 = arith.constant 0 : index
    %c0_50 = arith.constant 0 : index
    %67 = vector.load %arg17[%c0_49, %c0_50] : memref<1x256xf32, #tpu.memory_space<vmem>>, vector<1x256xf32>
    %68 = vector.broadcast %67 : vector<1x256xf32> to vector<224x256xf32>
    %69 = arith.addf %66, %68 : vector<224x256xf32>
    %70 = vector.extract_strided_slice %69 {offsets = [0, 0], sizes = [224, 128], strides = [1, 1]} : vector<224x256xf32> to vector<224x128xf32>
    %cst_51 = arith.constant 0.000000e+00 : f32
    %71 = vector.broadcast %cst_51 : f32 to vector<224x128xf32>
    %72 = arith.cmpf ogt, %70, %71 : vector<224x128xf32>
    %cst_52 = arith.constant 0.000000e+00 : f32
    %73 = vector.broadcast %cst_52 : f32 to vector<224x128xf32>
    %74 = arith.minimumf %70, %73 : vector<224x128xf32>
    %75 = math.exp %74 : vector<224x128xf32>
    %cst_53 = arith.constant 1.000000e+00 : f32
    %76 = vector.broadcast %cst_53 : f32 to vector<224x128xf32>
    %77 = arith.subf %75, %76 : vector<224x128xf32>
    %78 = arith.select %72, %70, %77 : vector<224x128xi1>, vector<224x128xf32>
    %79 = vector.extract_strided_slice %69 {offsets = [0, 128], sizes = [224, 1], strides = [1, 1]} : vector<224x256xf32> to vector<224x1xf32>
    %80 = math.absf %79 : vector<224x1xf32>
    %cst_54 = arith.constant 0.000000e+00 : f32
    %81 = vector.broadcast %cst_54 : f32 to vector<224x1xf32>
    %82 = arith.subf %81, %80 : vector<224x1xf32>
    %83 = math.exp %82 : vector<224x1xf32>
    %cst_55 = arith.constant 0.000000e+00 : f32
    %84 = vector.broadcast %cst_55 : f32 to vector<224x1xf32>
    %85 = arith.cmpf oge, %79, %84 : vector<224x1xf32>
    %cst_56 = arith.constant 1.000000e+00 : f32
    %86 = vector.broadcast %cst_56 : f32 to vector<224x1xf32>
    %87 = arith.addf %86, %83 : vector<224x1xf32>
    %cst_57 = arith.constant 1.000000e+00 : f32
    %88 = vector.broadcast %cst_57 : f32 to vector<224x1xf32>
    %89 = arith.divf %88, %87 : vector<224x1xf32>
    %cst_58 = arith.constant 1.000000e+00 : f32
    %90 = vector.broadcast %cst_58 : f32 to vector<224x1xf32>
    %91 = arith.addf %90, %83 : vector<224x1xf32>
    %92 = arith.divf %83, %91 : vector<224x1xf32>
    %93 = arith.select %85, %89, %92 : vector<224x1xi1>, vector<224x1xf32>
    %c0_59 = arith.constant 0 : index
    %c0_60 = arith.constant 0 : index
    %94 = vector.load %arg4[%c0_59, %c0_60] : memref<32x224xf32, #tpu.memory_space<vmem>>, vector<32x224xf32>
    %95 = vector.broadcast %93 : vector<224x1xf32> to vector<224x128xf32>
    %96 = arith.mulf %95, %78 : vector<224x128xf32>
    %cst_61 = arith.constant dense<0.000000e+00> : vector<32x128xf32>
    %97 = tpu.matmul %94, %96, %cst_61 {dimension_numbers = #tpu.dot_dimension_numbers<[1], [0], [0], [1], [0, 0, 1, 1], [], []>} : vector<32x224xf32>, vector<224x128xf32>, vector<32x128xf32> -> vector<32x128xf32>
    %c0_62 = arith.constant 0 : index
    %c0_63 = arith.constant 0 : index
    %98 = vector.load %arg18[%c0_62, %c0_63] : memref<128x128xf32, #tpu.memory_space<vmem>>, vector<128x128xf32>
    %cst_64 = arith.constant dense<0.000000e+00> : vector<32x128xf32>
    %99 = tpu.matmul %97, %98, %cst_64 {dimension_numbers = #tpu.dot_dimension_numbers<[1], [0], [0], [1], [0, 0, 1, 1], [], []>} : vector<32x128xf32>, vector<128x128xf32>, vector<32x128xf32> -> vector<32x128xf32>
    %c0_65 = arith.constant 0 : index
    %c0_66 = arith.constant 0 : index
    %100 = vector.load %arg19[%c0_65, %c0_66] : memref<1x128xf32, #tpu.memory_space<vmem>>, vector<1x128xf32>
    %101 = vector.broadcast %100 : vector<1x128xf32> to vector<32x128xf32>
    %102 = arith.addf %99, %101 : vector<32x128xf32>
    %cst_67 = arith.constant 0.000000e+00 : f32
    %103 = vector.broadcast %cst_67 : f32 to vector<32x128xf32>
    %104 = arith.cmpf ogt, %102, %103 : vector<32x128xf32>
    %cst_68 = arith.constant 0.000000e+00 : f32
    %105 = vector.broadcast %cst_68 : f32 to vector<32x128xf32>
    %106 = arith.minimumf %102, %105 : vector<32x128xf32>
    %107 = math.exp %106 : vector<32x128xf32>
    %cst_69 = arith.constant 1.000000e+00 : f32
    %108 = vector.broadcast %cst_69 : f32 to vector<32x128xf32>
    %109 = arith.subf %107, %108 : vector<32x128xf32>
    %110 = arith.select %104, %102, %109 : vector<32x128xi1>, vector<32x128xf32>
    %c0_70 = arith.constant 0 : index
    %c0_71 = arith.constant 0 : index
    %111 = vector.load %arg20[%c0_70, %c0_71] : memref<128x16xf32, #tpu.memory_space<vmem>>, vector<128x16xf32>
    %cst_72 = arith.constant dense<0.000000e+00> : vector<32x16xf32>
    %112 = tpu.matmul %110, %111, %cst_72 {dimension_numbers = #tpu.dot_dimension_numbers<[1], [0], [0], [1], [0, 0, 1, 1], [], []>} : vector<32x128xf32>, vector<128x16xf32>, vector<32x16xf32> -> vector<32x16xf32>
    %c0_73 = arith.constant 0 : index
    %c0_74 = arith.constant 0 : index
    %113 = vector.load %arg21[%c0_73, %c0_74] : memref<1x16xf32, #tpu.memory_space<vmem>>, vector<1x16xf32>
    %114 = vector.broadcast %113 : vector<1x16xf32> to vector<32x16xf32>
    %115 = arith.addf %112, %114 : vector<32x16xf32>
    %c0_75 = arith.constant 0 : index
    %c0_76 = arith.constant 0 : index
    %116 = vector.load %arg22[%c0_75, %c0_76] : memref<32x32xf32, #tpu.memory_space<vmem>>, vector<32x16xf32>
    tpu.vector_store %arg22[%c0_75, %c0_76], %18 {strides = array<i32>} : memref<32x32xf32, #tpu.memory_space<vmem>>, vector<32x16xf32>,
    %c0_77 = arith.constant 0 : index
    %c16 = arith.constant 16 : index
    %117 = vector.load %arg22[%c0_77, %c16] : memref<32x32xf32, #tpu.memory_space<vmem>>, vector<32x16xf32>
    tpu.vector_store %arg22[%c0_77, %c16], %115 {strides = array<i32>} : memref<32x32xf32, #tpu.memory_space<vmem>>, vector<32x16xf32>,
    return
  }
  func.func @transform_0(%arg0: i32) -> (i32, i32) {
    %c0_i32 = arith.constant 0 : i32
    %c0_i32_0 = arith.constant 0 : i32
    return %arg0, %c0_i32 : i32, i32
  }
  func.func @transform_1(%arg0: i32) -> (i32, i32) {
    %c0_i32 = arith.constant 0 : i32
    %c0_i32_0 = arith.constant 0 : i32
    %c0_i32_1 = arith.constant 0 : i32
    return %c0_i32, %c0_i32_0 : i32, i32
  }
  func.func @transform_2(%arg0: i32) -> (i32, i32) {
    %c0_i32 = arith.constant 0 : i32
    %c0_i32_0 = arith.constant 0 : i32
    %c0_i32_1 = arith.constant 0 : i32
    return %c0_i32, %c0_i32_0 : i32, i32
  }
  func.func @transform_3(%arg0: i32) -> (i32, i32) {
    %c0_i32 = arith.constant 0 : i32
    %c0_i32_0 = arith.constant 0 : i32
    %c0_i32_1 = arith.constant 0 : i32
    return %c0_i32, %c0_i32_0 : i32, i32
  }
  func.func @transform_4(%arg0: i32) -> (i32, i32) {
    %c0_i32 = arith.constant 0 : i32
    %c0_i32_0 = arith.constant 0 : i32
    %c0_i32_1 = arith.constant 0 : i32
    return %c0_i32, %c0_i32_0 : i32, i32
  }
  func.func @transform_5(%arg0: i32) -> (i32, i32) {
    %c0_i32 = arith.constant 0 : i32
    %c0_i32_0 = arith.constant 0 : i32
    %c0_i32_1 = arith.constant 0 : i32
    return %c0_i32, %c0_i32_0 : i32, i32
  }
  func.func @transform_6(%arg0: i32) -> (i32, i32) {
    %c0_i32 = arith.constant 0 : i32
    %c0_i32_0 = arith.constant 0 : i32
    %c0_i32_1 = arith.constant 0 : i32
    return %c0_i32, %c0_i32_0 : i32, i32
  }
  func.func @transform_7(%arg0: i32) -> (i32, i32) {
    %c0_i32 = arith.constant 0 : i32
    %c0_i32_0 = arith.constant 0 : i32
    %c0_i32_1 = arith.constant 0 : i32
    return %c0_i32, %c0_i32_0 : i32, i32
  }
  func.func @transform_8(%arg0: i32) -> (i32, i32) {
    %c0_i32 = arith.constant 0 : i32
    %c0_i32_0 = arith.constant 0 : i32
    %c0_i32_1 = arith.constant 0 : i32
    return %c0_i32, %c0_i32_0 : i32, i32
  }
  func.func @transform_9(%arg0: i32) -> (i32, i32) {
    %c0_i32 = arith.constant 0 : i32
    %c0_i32_0 = arith.constant 0 : i32
    %c0_i32_1 = arith.constant 0 : i32
    return %c0_i32, %c0_i32_0 : i32, i32
  }
  func.func @transform_10(%arg0: i32) -> (i32, i32) {
    %c0_i32 = arith.constant 0 : i32
    %c0_i32_0 = arith.constant 0 : i32
    %c0_i32_1 = arith.constant 0 : i32
    return %c0_i32, %c0_i32_0 : i32, i32
  }
  func.func @transform_11(%arg0: i32) -> (i32, i32) {
    %c0_i32 = arith.constant 0 : i32
    %c0_i32_0 = arith.constant 0 : i32
    %c0_i32_1 = arith.constant 0 : i32
    return %c0_i32, %c0_i32_0 : i32, i32
  }
  func.func @transform_12(%arg0: i32) -> (i32, i32) {
    %c0_i32 = arith.constant 0 : i32
    %c0_i32_0 = arith.constant 0 : i32
    %c0_i32_1 = arith.constant 0 : i32
    return %c0_i32, %c0_i32_0 : i32, i32
  }
  func.func @transform_13(%arg0: i32) -> (i32, i32) {
    %c0_i32 = arith.constant 0 : i32
    %c0_i32_0 = arith.constant 0 : i32
    %c0_i32_1 = arith.constant 0 : i32
    return %c0_i32, %c0_i32_0 : i32, i32
  }
  func.func @transform_14(%arg0: i32) -> (i32, i32) {
    %c0_i32 = arith.constant 0 : i32
    %c0_i32_0 = arith.constant 0 : i32
    %c0_i32_1 = arith.constant 0 : i32
    return %c0_i32, %c0_i32_0 : i32, i32
  }
  func.func @transform_15(%arg0: i32) -> (i32, i32) {
    %c0_i32 = arith.constant 0 : i32
    %c0_i32_0 = arith.constant 0 : i32
    %c0_i32_1 = arith.constant 0 : i32
    return %c0_i32, %c0_i32_0 : i32, i32
  }
  func.func @transform_16(%arg0: i32) -> (i32, i32) {
    %c0_i32 = arith.constant 0 : i32
    %c0_i32_0 = arith.constant 0 : i32
    %c0_i32_1 = arith.constant 0 : i32
    return %c0_i32, %c0_i32_0 : i32, i32
  }
  func.func @transform_17(%arg0: i32) -> (i32, i32) {
    %c0_i32 = arith.constant 0 : i32
    %c0_i32_0 = arith.constant 0 : i32
    %c0_i32_1 = arith.constant 0 : i32
    return %c0_i32, %c0_i32_0 : i32, i32
  }
  func.func @transform_18(%arg0: i32) -> (i32, i32) {
    %c0_i32 = arith.constant 0 : i32
    %c0_i32_0 = arith.constant 0 : i32
    %c0_i32_1 = arith.constant 0 : i32
    return %c0_i32, %c0_i32_0 : i32, i32
  }
  func.func @transform_19(%arg0: i32) -> (i32, i32) {
    %c0_i32 = arith.constant 0 : i32
    %c0_i32_0 = arith.constant 0 : i32
    %c0_i32_1 = arith.constant 0 : i32
    return %c0_i32, %c0_i32_0 : i32, i32
  }
  func.func @transform_20(%arg0: i32) -> (i32, i32) {
    %c0_i32 = arith.constant 0 : i32
    %c0_i32_0 = arith.constant 0 : i32
    %c0_i32_1 = arith.constant 0 : i32
    return %c0_i32, %c0_i32_0 : i32, i32
  }
  func.func @transform_21(%arg0: i32) -> (i32, i32) {
    %c0_i32 = arith.constant 0 : i32
    %c0_i32_0 = arith.constant 0 : i32
    return %arg0, %c0_i32 : i32, i32
  }
}

</mosaic_0001>

<llo_original>
// kernel: tpu_custom_call.1
$region0: #{tpu_custom_call.1}
  #allocation0 [shape = 'u32[]', space=smem, size = 0x4, offset = 0x4, fixed_abs, tag = 'smem constant byte address 0x4 - core index']
  #allocation1 [shape = 'u32[144,128]{1,0:T(1,128)}', space=vmem, size = 0x12000, scoped, tag = 'internal scratch']
  %s0 = inlined_call_operand.vmem [shape: f32[64,32], index: 0, kind: input, shape index: {}]
  %s1 = inlined_call_operand.vmem [shape: f32[224,32], index: 1, kind: input, shape index: {}]
  %s2 = inlined_call_operand.vmem [shape: f32[224,32], index: 2, kind: input, shape index: {}]
  %s3 = inlined_call_operand.vmem [shape: f32[32,224], index: 3, kind: input, shape index: {}]
  %s4 = inlined_call_operand.vmem [shape: f32[32,128], index: 4, kind: input, shape index: {}]
  %s5 = inlined_call_operand.vmem [shape: f32[1,128], index: 5, kind: input, shape index: {}]
  %s6 = inlined_call_operand.vmem [shape: f32[128,16], index: 6, kind: input, shape index: {}]
  %s7 = inlined_call_operand.vmem [shape: f32[1,16], index: 7, kind: input, shape index: {}]
  %s8 = inlined_call_operand.hbm [shape: f32[16,256], index: 8, kind: input, shape index: {}]
  %s9 = inlined_call_operand.hbm [shape: f32[16,256], index: 9, kind: input, shape index: {}]
  %s10 = inlined_call_operand.vmem [shape: f32[1,256], index: 10, kind: input, shape index: {}]
  %s11 = inlined_call_operand.vmem [shape: f32[256,128], index: 11, kind: input, shape index: {}]
  %s12 = inlined_call_operand.vmem [shape: f32[1,128], index: 12, kind: input, shape index: {}]
  %s13 = inlined_call_operand.hbm [shape: f32[128,256], index: 13, kind: input, shape index: {}]
  %s14 = inlined_call_operand.vmem [shape: f32[1,256], index: 14, kind: input, shape index: {}]
  %s15 = inlined_call_operand.vmem [shape: f32[256,256], index: 15, kind: input, shape index: {}]
  %s16 = inlined_call_operand.vmem [shape: f32[1,256], index: 16, kind: input, shape index: {}]
  %s17 = inlined_call_operand.vmem [shape: f32[128,128], index: 17, kind: input, shape index: {}]
  %s18 = inlined_call_operand.vmem [shape: f32[1,128], index: 18, kind: input, shape index: {}]
  %s19 = inlined_call_operand.vmem [shape: f32[128,16], index: 19, kind: input, shape index: {}]
  %s20 = inlined_call_operand.vmem [shape: f32[1,16], index: 20, kind: input, shape index: {}]
  %s21 = inlined_call_operand.vmem [shape: f32[64,32], index: 21, kind: output, shape index: {}]
  %s22 = sld [smem:[#allocation0]]
  $region129: #{tpu_custom_call.1} parent=0
    _
  %s24 = ssub.s32 1, %s22
  %s25 = scalar_select 0, %s24, %s22
  $region1: #{tpu_custom_call.1} parent=0
    #allocation2 [shape = 'u8[16384]{0}', space=vmem, size = 0x4000, scoped, tag = 'input window, operand 8, single buffered']
    #allocation3 [shape = 's32[2]{0}', space=sflag, size = 0x8, scoped, tag = 'scoped memory for tpu_custom_call.1']
    #allocation4 [shape = 'u8[16384]{0}', space=vmem, size = 0x4000, scoped, tag = 'input window, operand 9, single buffered']
    #allocation5 [shape = 's32[1]{0}', space=sflag, size = 0x4, scoped, tag = 'scoped memory for tpu_custom_call.1']
    #allocation6 [shape = 'u8[131072]{0}', space=vmem, size = 0x20000, scoped, tag = 'input window, operand 13, single buffered']
    %26 = vsyncpa [#allocation3], 0
    %27 = vsyncpa [#allocation5], 0
    loop: start=0, step=1, limit=4
    $region2: #{tpu_custom_call.1} parent=1 // loop_pre_header
      _
    $region3: #{tpu_custom_call.1} parent=1 // loop_header
      %s29 = sphi 0, %s33
      %p30 = scmp.ge.s32.totalorder %s29, 4
      %s39 = sphi 0, %s41
      %s42 = sphi 0, %s39
      %s43 = sphi 0, %s42
      %s59 = sphi 0, %s43
      %s63 = sphi 0, %s63
      %s65 = sphi 0, %s63
      %s66 = sphi 0, %s65
      %s80 = sphi 0, %s66
      %s84 = sphi 0, %s84
      %s86 = sphi 0, %s84
      %s87 = sphi 0, %s86
      %s101 = sphi 0, %s87
      %s105 = sphi 0, %s105
      %s107 = sphi 0, %s105
      %s108 = sphi 0, %s107
      %s122 = sphi 0, %s108
      %s126 = sphi 0, %s126
      %s128 = sphi 0, %s126
      %s129 = sphi 0, %s128
      %s143 = sphi 0, %s129
      %s147 = sphi 0, %s147
      %s149 = sphi 0, %s147
      %s150 = sphi 0, %s149
      %s164 = sphi 0, %s150
      %s168 = sphi 0, %s168
      %s170 = sphi 0, %s168
      %s171 = sphi 0, %s170
      %s185 = sphi 0, %s171
      %s189 = sphi 0, %s189
      %s191 = sphi 0, %s189
      %s192 = sphi 0, %s191
      %s206 = sphi 0, %s192
      %s210 = sphi 0, %s210
      %s212 = sphi 0, %s210
      %s213 = sphi 0, %s212
      %s227 = sphi 0, %s213
      %s231 = sphi 0, %s231
      %s233 = sphi 0, %s231
      %s234 = sphi 0, %s233
      %s248 = sphi 0, %s234
      %s252 = sphi 0, %s252
      %s254 = sphi 0, %s252
      %s255 = sphi 0, %s254
      %s269 = sphi 0, %s255
      %s273 = sphi 0, %s273
      %s275 = sphi 0, %s273
      %s276 = sphi 0, %s275
      %s290 = sphi 0, %s276
      %s294 = sphi 0, %s294
      %s296 = sphi 0, %s294
      %s297 = sphi 0, %s296
      %s311 = sphi 0, %s297
      %s315 = sphi 0, %s315
      %s317 = sphi 0, %s315
      %s318 = sphi 0, %s317
      %s332 = sphi 0, %s318
      %s336 = sphi 0, %s336
      %s338 = sphi 0, %s336
      %s339 = sphi 0, %s338
      %s353 = sphi 0, %s339
      %s357 = sphi 0, %s357
      %s359 = sphi 0, %s357
      %s360 = sphi 0, %s359
      %s374 = sphi 0, %s360
      %s378 = sphi 0, %s378
      %s380 = sphi 0, %s378
      %s381 = sphi 0, %s380
      %s395 = sphi 0, %s381
      %s399 = sphi 0, %s399
      %s401 = sphi 0, %s399
      %s402 = sphi 0, %s401
      %s416 = sphi 0, %s402
      %s420 = sphi 0, %s420
      %s422 = sphi 0, %s420
      %s423 = sphi 0, %s422
      %s437 = sphi 0, %s423
      %s441 = sphi 0, %s441
      %s443 = sphi 0, %s441
      %s444 = sphi 0, %s443
      %s458 = sphi 0, %s444
      %s462 = sphi 0, %s462
      %s464 = sphi 0, %s462
      %s465 = sphi 0, %s464
      %s479 = sphi 0, %s465
      %s485 = sphi 0, %s487
      %s488 = sphi 0, %s485
      %s489 = sphi 0, %s488
      %s505 = sphi 0, %s489
    $region4: #{tpu_custom_call.1} parent=1 // loop_header_branch
      %32 = sbr.rel (%p30) target = $region8
    $region5: #{tpu_custom_call.1} parent=1 // loop_body
      %s34 = ssub.s32 %s29, 1
      %s35 = ssub.s32 %s29, 2
      %s36 = sadd.s32 %s29, 1
      %s37 = ssub.s32 %s29, %s36
      %p38 = scmp.eq.s32.totalorder %s37, 0
      %s40 = sadd.s32 %s39, 1
      %s41 = scalar_select %p38, %s39, %s40
      %p44 = pneg %p38
      %p45 = scmp.eq.s32.totalorder %s29, 1
      %p46 = por %p44, %p45
      %p47 = scmp.ne.s32.totalorder %s39, %s42
      %p48 = scmp.eq.s32.totalorder %s29, 0
      %p49 = por %p47, %p48
      %p50 = scmp.ne.s32.totalorder %s39, %s42
      %p51 = scmp.eq.s32.totalorder %s34, 1
      %p52 = por %p50, %p51
      %p53 = scmp.ne.s32.totalorder %s42, %s43
      %p54 = scmp.eq.s32.totalorder %s34, 0
      %p55 = por %p53, %p54
      %p56 = scmp.ne.s32.totalorder %s42, %s43
      %p57 = scmp.eq.s32.totalorder %s35, 1
      %p58 = por %p56, %p57
      %p60 = scmp.ne.s32.totalorder %s43, %s59
      %p61 = scmp.eq.s32.totalorder %s35, 0
      %p62 = por %p60, %p61
      %s64 = sadd.s32 %s63, 1
      %p67 = scmp.eq.s32.totalorder %s29, 1
      %p68 = scmp.ne.s32.totalorder %s63, %s65
      %p69 = scmp.eq.s32.totalorder %s29, 0
      %p70 = por %p68, %p69
      %p71 = scmp.ne.s32.totalorder %s63, %s65
      %p72 = scmp.eq.s32.totalorder %s34, 1
      %p73 = por %p71, %p72
      %p74 = scmp.ne.s32.totalorder %s65, %s66
      %p75 = scmp.eq.s32.totalorder %s34, 0
      %p76 = por %p74, %p75
      %p77 = scmp.ne.s32.totalorder %s65, %s66
      %p78 = scmp.eq.s32.totalorder %s35, 1
      %p79 = por %p77, %p78
      %p81 = scmp.ne.s32.totalorder %s66, %s80
      %p82 = scmp.eq.s32.totalorder %s35, 0
      %p83 = por %p81, %p82
      %s85 = sadd.s32 %s84, 1
      %p88 = scmp.eq.s32.totalorder %s29, 1
      %p89 = scmp.ne.s32.totalorder %s84, %s86
      %p90 = scmp.eq.s32.totalorder %s29, 0
      %p91 = por %p89, %p90
      %p92 = scmp.ne.s32.totalorder %s84, %s86
      %p93 = scmp.eq.s32.totalorder %s34, 1
      %p94 = por %p92, %p93
      %p95 = scmp.ne.s32.totalorder %s86, %s87
      %p96 = scmp.eq.s32.totalorder %s34, 0
      %p97 = por %p95, %p96
      %p98 = scmp.ne.s32.totalorder %s86, %s87
      %p99 = scmp.eq.s32.totalorder %s35, 1
      %p100 = por %p98, %p99
      %p102 = scmp.ne.s32.totalorder %s87, %s101
      %p103 = scmp.eq.s32.totalorder %s35, 0
      %p104 = por %p102, %p103
      %s106 = sadd.s32 %s105, 1
      %p109 = scmp.eq.s32.totalorder %s29, 1
      %p110 = scmp.ne.s32.totalorder %s105, %s107
      %p111 = scmp.eq.s32.totalorder %s29, 0
      %p112 = por %p110, %p111
      %p113 = scmp.ne.s32.totalorder %s105, %s107
      %p114 = scmp.eq.s32.totalorder %s34, 1
      %p115 = por %p113, %p114
      %p116 = scmp.ne.s32.totalorder %s107, %s108
      %p117 = scmp.eq.s32.totalorder %s34, 0
      %p118 = por %p116, %p117
      %p119 = scmp.ne.s32.totalorder %s107, %s108
      %p120 = scmp.eq.s32.totalorder %s35, 1
      %p121 = por %p119, %p120
      %p123 = scmp.ne.s32.totalorder %s108, %s122
      %p124 = scmp.eq.s32.totalorder %s35, 0
      %p125 = por %p123, %p124
      %s127 = sadd.s32 %s126, 1
      %p130 = scmp.eq.s32.totalorder %s29, 1
      %p131 = scmp.ne.s32.totalorder %s126, %s128
      %p132 = scmp.eq.s32.totalorder %s29, 0
      %p133 = por %p131, %p132
      %p134 = scmp.ne.s32.totalorder %s126, %s128
      %p135 = scmp.eq.s32.totalorder %s34, 1
      %p136 = por %p134, %p135
      %p137 = scmp.ne.s32.totalorder %s128, %s129
      %p138 = scmp.eq.s32.totalorder %s34, 0
      %p139 = por %p137, %p138
      %p140 = scmp.ne.s32.totalorder %s128, %s129
      %p141 = scmp.eq.s32.totalorder %s35, 1
      %p142 = por %p140, %p141
      %p144 = scmp.ne.s32.totalorder %s129, %s143
      %p145 = scmp.eq.s32.totalorder %s35, 0
      %p146 = por %p144, %p145
      %s148 = sadd.s32 %s147, 1
      %p151 = scmp.eq.s32.totalorder %s29, 1
      %p152 = scmp.ne.s32.totalorder %s147, %s149
      %p153 = scmp.eq.s32.totalorder %s29, 0
      %p154 = por %p152, %p153
      %p155 = scmp.ne.s32.totalorder %s147, %s149
      %p156 = scmp.eq.s32.totalorder %s34, 1
      %p157 = por %p155, %p156
      %p158 = scmp.ne.s32.totalorder %s149, %s150
      %p159 = scmp.eq.s32.totalorder %s34, 0
      %p160 = por %p158, %p159
      %p161 = scmp.ne.s32.totalorder %s149, %s150
      %p162 = scmp.eq.s32.totalorder %s35, 1
      %p163 = por %p161, %p162
      %p165 = scmp.ne.s32.totalorder %s150, %s164
      %p166 = scmp.eq.s32.totalorder %s35, 0
      %p167 = por %p165, %p166
      %s169 = sadd.s32 %s168, 1
      %p172 = scmp.eq.s32.totalorder %s29, 1
      %p173 = scmp.ne.s32.totalorder %s168, %s170
      %p174 = scmp.eq.s32.totalorder %s29, 0
      %p175 = por %p173, %p174
      %p176 = scmp.ne.s32.totalorder %s168, %s170
      %p177 = scmp.eq.s32.totalorder %s34, 1
      %p178 = por %p176, %p177
      %p179 = scmp.ne.s32.totalorder %s170, %s171
      %p180 = scmp.eq.s32.totalorder %s34, 0
      %p181 = por %p179, %p180
      %p182 = scmp.ne.s32.totalorder %s170, %s171
      %p183 = scmp.eq.s32.totalorder %s35, 1
      %p184 = por %p182, %p183
      %p186 = scmp.ne.s32.totalorder %s171, %s185
      %p187 = scmp.eq.s32.totalorder %s35, 0
      %p188 = por %p186, %p187
      %s190 = sadd.s32 %s189, 1
      %p193 = scmp.eq.s32.totalorder %s29, 1
      %p194 = scmp.ne.s32.totalorder %s189, %s191
      %p195 = scmp.eq.s32.totalorder %s29, 0
      %p196 = por %p194, %p195
      %p197 = scmp.ne.s32.totalorder %s189, %s191
      %p198 = scmp.eq.s32.totalorder %s34, 1
      %p199 = por %p197, %p198
      %p200 = scmp.ne.s32.totalorder %s191, %s192
      %p201 = scmp.eq.s32.totalorder %s34, 0
      %p202 = por %p200, %p201
      %p203 = scmp.ne.s32.totalorder %s191, %s192
      %p204 = scmp.eq.s32.totalorder %s35, 1
      %p205 = por %p203, %p204
      %p207 = scmp.ne.s32.totalorder %s192, %s206
      %p208 = scmp.eq.s32.totalorder %s35, 0
      %p209 = por %p207, %p208
      %s211 = sadd.s32 %s210, 1
      %p214 = scmp.eq.s32.totalorder %s29, 1
      %p215 = scmp.ne.s32.totalorder %s210, %s212
      %p216 = scmp.eq.s32.totalorder %s29, 0
      %p217 = por %p215, %p216
      %p218 = scmp.ne.s32.totalorder %s210, %s212
      %p219 = scmp.eq.s32.totalorder %s34, 1
      %p220 = por %p218, %p219
      %p221 = scmp.ne.s32.totalorder %s212, %s213
      %p222 = scmp.eq.s32.totalorder %s34, 0
      %p223 = por %p221, %p222
      %p224 = scmp.ne.s32.totalorder %s212, %s213
      %p225 = scmp.eq.s32.totalorder %s35, 1
      %p226 = por %p224, %p225
      %p228 = scmp.ne.s32.totalorder %s213, %s227
      %p229 = scmp.eq.s32.totalorder %s35, 0
      %p230 = por %p228, %p229
      %s232 = sadd.s32 %s231, 1
      %p235 = scmp.eq.s32.totalorder %s29, 1
      %p236 = scmp.ne.s32.totalorder %s231, %s233
      %p237 = scmp.eq.s32.totalorder %s29, 0
      %p238 = por %p236, %p237
      %p239 = scmp.ne.s32.totalorder %s231, %s233
      %p240 = scmp.eq.s32.totalorder %s34, 1
      %p241 = por %p239, %p240
      %p242 = scmp.ne.s32.totalorder %s233, %s234
      %p243 = scmp.eq.s32.totalorder %s34, 0
      %p244 = por %p242, %p243
      %p245 = scmp.ne.s32.totalorder %s233, %s234
      %p246 = scmp.eq.s32.totalorder %s35, 1
      %p247 = por %p245, %p246
      %p249 = scmp.ne.s32.totalorder %s234, %s248
      %p250 = scmp.eq.s32.totalorder %s35, 0
      %p251 = por %p249, %p250
      %s253 = sadd.s32 %s252, 1
      %p256 = scmp.eq.s32.totalorder %s29, 1
      %p257 = scmp.ne.s32.totalorder %s252, %s254
      %p258 = scmp.eq.s32.totalorder %s29, 0
      %p259 = por %p257, %p258
      %p260 = scmp.ne.s32.totalorder %s252, %s254
      %p261 = scmp.eq.s32.totalorder %s34, 1
      %p262 = por %p260, %p261
      %p263 = scmp.ne.s32.totalorder %s254, %s255
      %p264 = scmp.eq.s32.totalorder %s34, 0
      %p265 = por %p263, %p264
      %p266 = scmp.ne.s32.totalorder %s254, %s255
      %p267 = scmp.eq.s32.totalorder %s35, 1
      %p268 = por %p266, %p267
      %p270 = scmp.ne.s32.totalorder %s255, %s269
      %p271 = scmp.eq.s32.totalorder %s35, 0
      %p272 = por %p270, %p271
      %s274 = sadd.s32 %s273, 1
      %p277 = scmp.eq.s32.totalorder %s29, 1
      %p278 = scmp.ne.s32.totalorder %s273, %s275
      %p279 = scmp.eq.s32.totalorder %s29, 0
      %p280 = por %p278, %p279
      %p281 = scmp.ne.s32.totalorder %s273, %s275
      %p282 = scmp.eq.s32.totalorder %s34, 1
      %p283 = por %p281, %p282
      %p284 = scmp.ne.s32.totalorder %s275, %s276
      %p285 = scmp.eq.s32.totalorder %s34, 0
      %p286 = por %p284, %p285
      %p287 = scmp.ne.s32.totalorder %s275, %s276
      %p288 = scmp.eq.s32.totalorder %s35, 1
      %p289 = por %p287, %p288
      %p291 = scmp.ne.s32.totalorder %s276, %s290
      %p292 = scmp.eq.s32.totalorder %s35, 0
      %p293 = por %p291, %p292
      %s295 = sadd.s32 %s294, 1
      %p298 = scmp.eq.s32.totalorder %s29, 1
      %p299 = scmp.ne.s32.totalorder %s294, %s296
      %p300 = scmp.eq.s32.totalorder %s29, 0
      %p301 = por %p299, %p300
      %p302 = scmp.ne.s32.totalorder %s294, %s296
      %p303 = scmp.eq.s32.totalorder %s34, 1
      %p304 = por %p302, %p303
      %p305 = scmp.ne.s32.totalorder %s296, %s297
      %p306 = scmp.eq.s32.totalorder %s34, 0
      %p307 = por %p305, %p306
      %p308 = scmp.ne.s32.totalorder %s296, %s297
      %p309 = scmp.eq.s32.totalorder %s35, 1
      %p310 = por %p308, %p309
      %p312 = scmp.ne.s32.totalorder %s297, %s311
      %p313 = scmp.eq.s32.totalorder %s35, 0
      %p314 = por %p312, %p313
      %s316 = sadd.s32 %s315, 1
      %p319 = scmp.eq.s32.totalorder %s29, 1
      %p320 = scmp.ne.s32.totalorder %s315, %s317
      %p321 = scmp.eq.s32.totalorder %s29, 0
      %p322 = por %p320, %p321
      %p323 = scmp.ne.s32.totalorder %s315, %s317
      %p324 = scmp.eq.s32.totalorder %s34, 1
      %p325 = por %p323, %p324
      %p326 = scmp.ne.s32.totalorder %s317, %s318
      %p327 = scmp.eq.s32.totalorder %s34, 0
      %p328 = por %p326, %p327
      %p329 = scmp.ne.s32.totalorder %s317, %s318
      %p330 = scmp.eq.s32.totalorder %s35, 1
      %p331 = por %p329, %p330
      %p333 = scmp.ne.s32.totalorder %s318, %s332
      %p334 = scmp.eq.s32.totalorder %s35, 0
      %p335 = por %p333, %p334
      %s337 = sadd.s32 %s336, 1
      %p340 = scmp.eq.s32.totalorder %s29, 1
      %p341 = scmp.ne.s32.totalorder %s336, %s338
      %p342 = scmp.eq.s32.totalorder %s29, 0
      %p343 = por %p341, %p342
      %p344 = scmp.ne.s32.totalorder %s336, %s338
      %p345 = scmp.eq.s32.totalorder %s34, 1
      %p346 = por %p344, %p345
      %p347 = scmp.ne.s32.totalorder %s338, %s339
      %p348 = scmp.eq.s32.totalorder %s34, 0
      %p349 = por %p347, %p348
      %p350 = scmp.ne.s32.totalorder %s338, %s339
      %p351 = scmp.eq.s32.totalorder %s35, 1
      %p352 = por %p350, %p351
      %p354 = scmp.ne.s32.totalorder %s339, %s353
      %p355 = scmp.eq.s32.totalorder %s35, 0
      %p356 = por %p354, %p355
      %s358 = sadd.s32 %s357, 1
      %p361 = scmp.eq.s32.totalorder %s29, 1
      %p362 = scmp.ne.s32.totalorder %s357, %s359
      %p363 = scmp.eq.s32.totalorder %s29, 0
      %p364 = por %p362, %p363
      %p365 = scmp.ne.s32.totalorder %s357, %s359
      %p366 = scmp.eq.s32.totalorder %s34, 1
      %p367 = por %p365, %p366
      %p368 = scmp.ne.s32.totalorder %s359, %s360
      %p369 = scmp.eq.s32.totalorder %s34, 0
      %p370 = por %p368, %p369
      %p371 = scmp.ne.s32.totalorder %s359, %s360
      %p372 = scmp.eq.s32.totalorder %s35, 1
      %p373 = por %p371, %p372
      %p375 = scmp.ne.s32.totalorder %s360, %s374
      %p376 = scmp.eq.s32.totalorder %s35, 0
      %p377 = por %p375, %p376
      %s379 = sadd.s32 %s378, 1
      %p382 = scmp.eq.s32.totalorder %s29, 1
      %p383 = scmp.ne.s32.totalorder %s378, %s380
      %p384 = scmp.eq.s32.totalorder %s29, 0
      %p385 = por %p383, %p384
      %p386 = scmp.ne.s32.totalorder %s378, %s380
      %p387 = scmp.eq.s32.totalorder %s34, 1
      %p388 = por %p386, %p387
      %p389 = scmp.ne.s32.totalorder %s380, %s381
      %p390 = scmp.eq.s32.totalorder %s34, 0
      %p391 = por %p389, %p390
      %p392 = scmp.ne.s32.totalorder %s380, %s381
      %p393 = scmp.eq.s32.totalorder %s35, 1
      %p394 = por %p392, %p393
      %p396 = scmp.ne.s32.totalorder %s381, %s395
      %p397 = scmp.eq.s32.totalorder %s35, 0
      %p398 = por %p396, %p397
      %s400 = sadd.s32 %s399, 1
      %p403 = scmp.eq.s32.totalorder %s29, 1
      %p404 = scmp.ne.s32.totalorder %s399, %s401
      %p405 = scmp.eq.s32.totalorder %s29, 0
      %p406 = por %p404, %p405
      %p407 = scmp.ne.s32.totalorder %s399, %s401
      %p408 = scmp.eq.s32.totalorder %s34, 1
      %p409 = por %p407, %p408
      %p410 = scmp.ne.s32.totalorder %s401, %s402
      %p411 = scmp.eq.s32.totalorder %s34, 0
      %p412 = por %p410, %p411
      %p413 = scmp.ne.s32.totalorder %s401, %s402
      %p414 = scmp.eq.s32.totalorder %s35, 1
      %p415 = por %p413, %p414
      %p417 = scmp.ne.s32.totalorder %s402, %s416
      %p418 = scmp.eq.s32.totalorder %s35, 0
      %p419 = por %p417, %p418
      %s421 = sadd.s32 %s420, 1
      %p424 = scmp.eq.s32.totalorder %s29, 1
      %p425 = scmp.ne.s32.totalorder %s420, %s422
      %p426 = scmp.eq.s32.totalorder %s29, 0
      %p427 = por %p425, %p426
      %p428 = scmp.ne.s32.totalorder %s420, %s422
      %p429 = scmp.eq.s32.totalorder %s34, 1
      %p430 = por %p428, %p429
      %p431 = scmp.ne.s32.totalorder %s422, %s423
      %p432 = scmp.eq.s32.totalorder %s34, 0
      %p433 = por %p431, %p432
      %p434 = scmp.ne.s32.totalorder %s422, %s423
      %p435 = scmp.eq.s32.totalorder %s35, 1
      %p436 = por %p434, %p435
      %p438 = scmp.ne.s32.totalorder %s423, %s437
      %p439 = scmp.eq.s32.totalorder %s35, 0
      %p440 = por %p438, %p439
      %s442 = sadd.s32 %s441, 1
      %p445 = scmp.eq.s32.totalorder %s29, 1
      %p446 = scmp.ne.s32.totalorder %s441, %s443
      %p447 = scmp.eq.s32.totalorder %s29, 0
      %p448 = por %p446, %p447
      %p449 = scmp.ne.s32.totalorder %s441, %s443
      %p450 = scmp.eq.s32.totalorder %s34, 1
      %p451 = por %p449, %p450
      %p452 = scmp.ne.s32.totalorder %s443, %s444
      %p453 = scmp.eq.s32.totalorder %s34, 0
      %p454 = por %p452, %p453
      %p455 = scmp.ne.s32.totalorder %s443, %s444
      %p456 = scmp.eq.s32.totalorder %s35, 1
      %p457 = por %p455, %p456
      %p459 = scmp.ne.s32.totalorder %s444, %s458
      %p460 = scmp.eq.s32.totalorder %s35, 0
      %p461 = por %p459, %p460
      %s463 = sadd.s32 %s462, 1
      %p466 = scmp.eq.s32.totalorder %s29, 1
      %p467 = scmp.ne.s32.totalorder %s462, %s464
      %p468 = scmp.eq.s32.totalorder %s29, 0
      %p469 = por %p467, %p468
      %p470 = scmp.ne.s32.totalorder %s462, %s464
      %p471 = scmp.eq.s32.totalorder %s34, 1
      %p472 = por %p470, %p471
      %p473 = scmp.ne.s32.totalorder %s464, %s465
      %p474 = scmp.eq.s32.totalorder %s34, 0
      %p475 = por %p473, %p474
      %p476 = scmp.ne.s32.totalorder %s464, %s465
      %p477 = scmp.eq.s32.totalorder %s35, 1
      %p478 = por %p476, %p477
      %p480 = scmp.ne.s32.totalorder %s465, %s479
      %p481 = scmp.eq.s32.totalorder %s35, 0
      %p482 = por %p480, %p481
      %s483 = ssub.s32 %s29, %s36
      %p484 = scmp.eq.s32.totalorder %s483, 0
      %s486 = sadd.s32 %s485, 1
      %s487 = scalar_select %p484, %s485, %s486
      %p490 = pneg %p484
      %p491 = scmp.eq.s32.totalorder %s29, 1
      %p492 = por %p490, %p491
      %p493 = scmp.ne.s32.totalorder %s485, %s488
      %p494 = scmp.eq.s32.totalorder %s29, 0
      %p495 = por %p493, %p494
      %p496 = scmp.ne.s32.totalorder %s485, %s488
      %p497 = scmp.eq.s32.totalorder %s34, 1
      %p498 = por %p496, %p497
      %p499 = scmp.ne.s32.totalorder %s488, %s489
      %p500 = scmp.eq.s32.totalorder %s34, 0
      %p501 = por %p499, %p500
      %p502 = scmp.ne.s32.totalorder %s488, %s489
      %p503 = scmp.eq.s32.totalorder %s35, 1
      %p504 = por %p502, %p503
      %p506 = scmp.ne.s32.totalorder %s489, %s505
      %p507 = scmp.eq.s32.totalorder %s35, 0
      %p508 = por %p506, %p507
      %p509 = scmp.le.s32.totalorder 1, %s29
      %p510 = scmp.lt.s32.totalorder %s29, 3
      %p511 = pnand %p509, %p510
      %p512 = pneg %p511
      // Predicated region
      $region9: #{tpu_custom_call.1} parent=5 // pred_check
        _
      $region10: #{tpu_custom_call.1} parent=5 // pred_check_branch
        %514 = sbr.rel (%p511) target = $region12
      $region11: #{tpu_custom_call.1} parent=5 // pred_region
        %s515 = ssub.s32 %s29, 1
        // Predicated region
        $region13: #{tpu_custom_call.1} parent=11 // pred_check
          %p516 = pneg %p76
        $region14: #{tpu_custom_call.1} parent=11 // pred_check_branch
          %518 = sbr.rel (%p516) target = $region16
        $region15: #{tpu_custom_call.1} parent=11 // pred_region
          _
        $region16: #{tpu_custom_call.1} parent=11 // pred_fallthru
          _
        // Predicated region
        $region17: #{tpu_custom_call.1} parent=11 // pred_check
          %p519 = pneg %p97
        $region18: #{tpu_custom_call.1} parent=11 // pred_check_branch
          %521 = sbr.rel (%p519) target = $region20
        $region19: #{tpu_custom_call.1} parent=11 // pred_region
          _
        $region20: #{tpu_custom_call.1} parent=11 // pred_fallthru
          _
        // Predicated region
        $region21: #{tpu_custom_call.1} parent=11 // pred_check
          %p522 = pneg %p118
        $region22: #{tpu_custom_call.1} parent=11 // pred_check_branch
          %524 = sbr.rel (%p522) target = $region24
        $region23: #{tpu_custom_call.1} parent=11 // pred_region
          _
        $region24: #{tpu_custom_call.1} parent=11 // pred_fallthru
          _
        // Predicated region
        $region25: #{tpu_custom_call.1} parent=11 // pred_check
          %p525 = pneg %p139
        $region26: #{tpu_custom_call.1} parent=11 // pred_check_branch
          %527 = sbr.rel (%p525) target = $region28
        $region27: #{tpu_custom_call.1} parent=11 // pred_region
          _
        $region28: #{tpu_custom_call.1} parent=11 // pred_fallthru
          _
        // Predicated region
        $region29: #{tpu_custom_call.1} parent=11 // pred_check
          %p528 = pneg %p160
        $region30: #{tpu_custom_call.1} parent=11 // pred_check_branch
          %530 = sbr.rel (%p528) target = $region32
        $region31: #{tpu_custom_call.1} parent=11 // pred_region
          _
        $region32: #{tpu_custom_call.1} parent=11 // pred_fallthru
          _
        // Predicated region
        $region33: #{tpu_custom_call.1} parent=11 // pred_check
          %p531 = pneg %p181
        $region34: #{tpu_custom_call.1} parent=11 // pred_check_branch
          %533 = sbr.rel (%p531) target = $region36
        $region35: #{tpu_custom_call.1} parent=11 // pred_region
          _
        $region36: #{tpu_custom_call.1} parent=11 // pred_fallthru
          _
        // Predicated region
        $region37: #{tpu_custom_call.1} parent=11 // pred_check
          %p534 = pneg %p202
        $region38: #{tpu_custom_call.1} parent=11 // pred_check_branch
          %536 = sbr.rel (%p534) target = $region40
        $region39: #{tpu_custom_call.1} parent=11 // pred_region
          _
        $region40: #{tpu_custom_call.1} parent=11 // pred_fallthru
          _
        // Predicated region
        $region41: #{tpu_custom_call.1} parent=11 // pred_check
          %p537 = pneg %p223
        $region42: #{tpu_custom_call.1} parent=11 // pred_check_branch
          %539 = sbr.rel (%p537) target = $region44
        $region43: #{tpu_custom_call.1} parent=11 // pred_region
          %s541 = ssub.s32 512, 512
          %542 = vsyncadd [#allocation3], %s541
          %s543 = sshll.u32 [#allocation2], 4
          %s544 = int_to_ptr.vmem [resolvable:$true] %s543
          %549 = dma.hbm_to_vmem [thread:$0]  %s8, 512, %s544, [#allocation3], 256, 256, 16
        $region44: #{tpu_custom_call.1} parent=11 // pred_fallthru
          _
        // Predicated region
        $region45: #{tpu_custom_call.1} parent=11 // pred_check
          %p550 = pneg %p244
        $region46: #{tpu_custom_call.1} parent=11 // pred_check_branch
          %552 = sbr.rel (%p550) target = $region48
        $region47: #{tpu_custom_call.1} parent=11 // pred_region
          %s554 = ssub.s32 512, 512
          %555 = vsyncadd [#allocation5], %s554
          %s556 = sshll.u32 [#allocation4], 4
          %s557 = int_to_ptr.vmem [resolvable:$true] %s556
          %562 = dma.hbm_to_vmem [thread:$0]  %s9, 512, %s557, [#allocation5], 256, 256, 16
        $region48: #{tpu_custom_call.1} parent=11 // pred_fallthru
          _
        // Predicated region
        $region49: #{tpu_custom_call.1} parent=11 // pred_check
          %p563 = pneg %p265
        $region50: #{tpu_custom_call.1} parent=11 // pred_check_branch
          %565 = sbr.rel (%p563) target = $region52
        $region51: #{tpu_custom_call.1} parent=11 // pred_region
          _
        $region52: #{tpu_custom_call.1} parent=11 // pred_fallthru
          _
        // Predicated region
        $region53: #{tpu_custom_call.1} parent=11 // pred_check
          %p566 = pneg %p286
        $region54: #{tpu_custom_call.1} parent=11 // pred_check_branch
          %568 = sbr.rel (%p566) target = $region56
        $region55: #{tpu_custom_call.1} parent=11 // pred_region
          _
        $region56: #{tpu_custom_call.1} parent=11 // pred_fallthru
          _
        // Predicated region
        $region57: #{tpu_custom_call.1} parent=11 // pred_check
          %p569 = pneg %p307
        $region58: #{tpu_custom_call.1} parent=11 // pred_check_branch
          %571 = sbr.rel (%p569) target = $region60
        $region59: #{tpu_custom_call.1} parent=11 // pred_region
          _
        $region60: #{tpu_custom_call.1} parent=11 // pred_fallthru
          _
        // Predicated region
        $region61: #{tpu_custom_call.1} parent=11 // pred_check
          %p572 = pneg %p328
        $region62: #{tpu_custom_call.1} parent=11 // pred_check_branch
          %574 = sbr.rel (%p572) target = $region64
        $region63: #{tpu_custom_call.1} parent=11 // pred_region
          %s576 = ssub.s32 4096, 4096
          %577 = vsyncadd [#allocation5], %s576
          %s578 = sshll.u32 [#allocation6], 4
          %s579 = int_to_ptr.vmem [resolvable:$true] %s578
          %584 = dma.hbm_to_vmem [thread:$0]  %s13, 4096, %s579, [#allocation5], 256, 256, 16
        $region64: #{tpu_custom_call.1} parent=11 // pred_fallthru
          _
        // Predicated region
        $region65: #{tpu_custom_call.1} parent=11 // pred_check
          %p585 = pneg %p349
        $region66: #{tpu_custom_call.1} parent=11 // pred_check_branch
          %587 = sbr.rel (%p585) target = $region68
        $region67: #{tpu_custom_call.1} parent=11 // pred_region
          _
        $region68: #{tpu_custom_call.1} parent=11 // pred_fallthru
          _
        // Predicated region
        $region69: #{tpu_custom_call.1} parent=11 // pred_check
          %p588 = pneg %p370
        $region70: #{tpu_custom_call.1} parent=11 // pred_check_branch
          %590 = sbr.rel (%p588) target = $region72
        $region71: #{tpu_custom_call.1} parent=11 // pred_region
          _
        $region72: #{tpu_custom_call.1} parent=11 // pred_fallthru
          _
        // Predicated region
        $region73: #{tpu_custom_call.1} parent=11 // pred_check
          %p591 = pneg %p391
        $region74: #{tpu_custom_call.1} parent=11 // pred_check_branch
          %593 = sbr.rel (%p591) target = $region76
        $region75: #{tpu_custom_call.1} parent=11 // pred_region
          _
        $region76: #{tpu_custom_call.1} parent=11 // pred_fallthru
          _
        // Predicated region
        $region77: #{tpu_custom_call.1} parent=11 // pred_check
          %p594 = pneg %p412
        $region78: #{tpu_custom_call.1} parent=11 // pred_check_branch
          %596 = sbr.rel (%p594) target = $region80
        $region79: #{tpu_custom_call.1} parent=11 // pred_region
          _
        $region80: #{tpu_custom_call.1} parent=11 // pred_fallthru
          _
        // Predicated region
        $region81: #{tpu_custom_call.1} parent=11 // pred_check
          %p597 = pneg %p433
        $region82: #{tpu_custom_call.1} parent=11 // pred_check_branch
          %599 = sbr.rel (%p597) target = $region84
        $region83: #{tpu_custom_call.1} parent=11 // pred_region
          _
        $region84: #{tpu_custom_call.1} parent=11 // pred_fallthru
          _
        // Predicated region
        $region85: #{tpu_custom_call.1} parent=11 // pred_check
          %p600 = pneg %p454
        $region86: #{tpu_custom_call.1} parent=11 // pred_check_branch
          %602 = sbr.rel (%p600) target = $region88
        $region87: #{tpu_custom_call.1} parent=11 // pred_region
          _
        $region88: #{tpu_custom_call.1} parent=11 // pred_fallthru
          _
        // Predicated region
        $region89: #{tpu_custom_call.1} parent=11 // pred_check
          %p603 = pneg %p475
        $region90: #{tpu_custom_call.1} parent=11 // pred_check_branch
          %605 = sbr.rel (%p603) target = $region92
        $region91: #{tpu_custom_call.1} parent=11 // pred_region
          _
        $region92: #{tpu_custom_call.1} parent=11 // pred_fallthru
          _
      $region12: #{tpu_custom_call.1} parent=5 // pred_fallthru
        _
      %p606 = scmp.lt.s32.totalorder %s29, 2
      // Predicated region
      $region93: #{tpu_custom_call.1} parent=5 // pred_check
        %p607 = pneg %p606
      $region94: #{tpu_custom_call.1} parent=5 // pred_check_branch
        %609 = sbr.rel (%p607) target = $region96
      $region95: #{tpu_custom_call.1} parent=5 // pred_region
        // Predicated region
        $region97: #{tpu_custom_call.1} parent=95 // pred_check
          %p610 = pneg %p49
        $region98: #{tpu_custom_call.1} parent=95 // pred_check_branch
          %612 = sbr.rel (%p610) target = $region100
        $region99: #{tpu_custom_call.1} parent=95 // pred_region
          %s613 = smul.u32 4, %s29
          %p614 = scmp.lt.s32.totalorder %s613, 7
          %s615 = scalar_select %p614, %s613, 7
          %s616 = smul.addr %s615, 8
          %s617 = scalar_lea.vmem %s0, %s616
          %s618 = smul.u32 4, %s29
        $region100: #{tpu_custom_call.1} parent=95 // pred_fallthru
          _
      $region96: #{tpu_custom_call.1} parent=5 // pred_fallthru
        _
      %p619 = scmp.le.s32.totalorder 1, %s29
      %p620 = scmp.lt.s32.totalorder %s29, 3
      %p621 = pnand %p619, %p620
      %p622 = pneg %p621
      // Predicated region
      $region101: #{tpu_custom_call.1} parent=5 // pred_check
        _
      $region102: #{tpu_custom_call.1} parent=5 // pred_check_branch
        %624 = sbr.rel (%p621) target = $region104
      $region103: #{tpu_custom_call.1} parent=5 // pred_region
        %s625 = ssub.s32 %s29, 1
        // Predicated region
        $region105: #{tpu_custom_call.1} parent=103 // pred_check
          %p626 = pneg %p223
        $region106: #{tpu_custom_call.1} parent=103 // pred_check_branch
          %628 = sbr.rel (%p626) target = $region108
        $region107: #{tpu_custom_call.1} parent=103 // pred_region
          %629 = dma.done [#allocation3], 512
        $region108: #{tpu_custom_call.1} parent=103 // pred_fallthru
          _
        // Predicated region
        $region109: #{tpu_custom_call.1} parent=103 // pred_check
          %p630 = pneg %p244
        $region110: #{tpu_custom_call.1} parent=103 // pred_check_branch
          %632 = sbr.rel (%p630) target = $region112
        $region111: #{tpu_custom_call.1} parent=103 // pred_region
          %633 = dma.done [#allocation5], 512
        $region112: #{tpu_custom_call.1} parent=103 // pred_fallthru
          _
        // Predicated region
        $region113: #{tpu_custom_call.1} parent=103 // pred_check
          %p634 = pneg %p328
        $region114: #{tpu_custom_call.1} parent=103 // pred_check_branch
          %636 = sbr.rel (%p634) target = $region116
        $region115: #{tpu_custom_call.1} parent=103 // pred_region
          %637 = dma.done [#allocation5], 4096
        $region116: #{tpu_custom_call.1} parent=103 // pred_fallthru
          _
        %s638 = smul.u32 4, %s34
        %p639 = scmp.lt.s32.totalorder %s638, 7
        %s640 = scalar_select %p639, %s638, 7
        %s641 = smul.addr %s640, 8
        %s642 = scalar_lea.vmem %s0, %s641
        %p643 = pneg %p55
        %p644 = pneg %p52
        %p645 = pneg %p76
        %p646 = pneg %p73
        %p647 = pneg %p97
        %p648 = pneg %p94
        %p649 = pneg %p118
        %p650 = pneg %p115
        %p651 = pneg %p139
        %p652 = pneg %p136
        %p653 = pneg %p160
        %p654 = pneg %p157
        %p655 = pneg %p181
        %p656 = pneg %p178
        %p657 = pneg %p202
        %p658 = pneg %p199
        %p659 = pneg %p223
        %p660 = pneg %p220
        %p661 = pneg %p244
        %p662 = pneg %p241
        %p663 = pneg %p265
        %p664 = pneg %p262
        %p665 = pneg %p286
        %p666 = pneg %p283
        %p667 = pneg %p307
        %p668 = pneg %p304
        %p669 = pneg %p328
        %p670 = pneg %p325
        %p671 = pneg %p349
        %p672 = pneg %p346
        %p673 = pneg %p370
        %p674 = pneg %p367
        %p675 = pneg %p391
        %p676 = pneg %p388
        %p677 = pneg %p412
        %p678 = pneg %p409
        %p679 = pneg %p433
        %p680 = pneg %p430
        %p681 = pneg %p454
        %p682 = pneg %p451
        %p683 = pneg %p475
        %p684 = pneg %p472
        %p685 = pneg %p501
        %p686 = pneg %p498
        %s687 = smul.u32 4, %s34
        %p688 = scmp.lt.s32.totalorder %s687, 7
        %s689 = scalar_select %p688, %s687, 7
        %s690 = smul.addr %s689, 8
        %s691 = scalar_lea.vmem %s21, %s690
        %s692 = smul.u32 4, %s34
        %p693 = scmp.lt.s32.totalorder %s692, 7
        %s694 = scalar_select %p693, %s692, 7
        %s695 = smul.addr %s694, 8
        %s696 = scalar_lea.vmem %s0, %s695
        %s697 = smul.u32 4, %s34
        %s698 = smul.u32 4, %s34
        %p699 = scmp.lt.s32.totalorder %s698, 7
        %s700 = scalar_select %p699, %s698, 7
        %s701 = smul.addr %s700, 8
        %s702 = scalar_lea.vmem %s21, %s701
        %s703 = smul.u32 4, %s34
        %v704 = vld [vmem:[%s696] sm:$0xff]
        %v705 = vld [vmem:[%s696 + $0x8] sm:$0xff]
        %v706 = vld [vmem:[%s696 + $0x10] sm:$0xff]
        %v707 = vld [vmem:[%s696 + $0x18] sm:$0xff]
        %v708 = vld [vmem:[%s4] sm:$0xff]
        %v709 = vld [vmem:[%s4 + $0x8] sm:$0xff]
        %v710 = vld [vmem:[%s4 + $0x10] sm:$0xff]
        %v711 = vld [vmem:[%s4 + $0x18] sm:$0xff]
        %v712 = vld [vmem:[%s5] sm:$0x1]
        %v714 = vlaneseq
        %v715 = vshrl.u32 %v714, 7
        %v716 = vsub.s32 0, %v715
        %v717 = vrot.slane %v712, %v716
        %vm719 = vcmask 261120
        %v721 = vsel %vm719, %v704, 0
        %v724 = vsel %vm719, %v705, 0
        %v727 = vsel %vm719, %v706, 0
        %v730 = vsel %vm719, %v707, 0
        %732 = vmatprep.subr.mxu0 0.0
        %733 = vmatpush1.msra.mxu0 %v708
        %734 = vmatprep.subr.mxu0 0.0
        %735 = vmatpush1.msra.mxu0 %v709
        %736 = vmatprep.subr.mxu0 0.0
        %737 = vmatpush1.msra.mxu0 %v710
        %738 = vmatprep.subr.mxu0 0.0
        %739 = vmatpush1.msra.mxu0 %v711
        %740 = vmatprep.subr.mxu0 0.0
        %741 = vmatpush1.msra.mxu0 0.0
        %742 = vmatprep.subr.mxu0 0.0
        %743 = vmatpush1.msra.mxu0 0.0
        %744 = vmatprep.subr.mxu0 0.0
        %745 = vmatpush1.msra.mxu0 0.0
        %746 = vmatprep.subr.mxu0 0.0
        %747 = vmatpush1.msra.mxu0 0.0
        %748 = vmatprep.subr.mxu0 0.0
        %749 = vmatpush1.msra.mxu0 0.0
        %750 = vmatprep.subr.mxu0 0.0
        %751 = vmatpush1.msra.mxu0 0.0
        %752 = vmatprep.subr.mxu0 0.0
        %753 = vmatpush1.msra.mxu0 0.0
        %754 = vmatprep.subr.mxu0 0.0
        %755 = vmatpush1.msra.mxu0 0.0
        %756 = vmatprep.subr.mxu0 0.0
        %757 = vmatpush1.msra.mxu0 0.0
        %758 = vmatprep.subr.mxu0 0.0
        %759 = vmatpush1.msra.mxu0 0.0
        %760 = vmatprep.subr.mxu0 0.0
        %761 = vmatpush1.msra.mxu0 0.0
        %762 = vmatprep.subr.mxu0 0.0
        %763 = vmatpush1.msra.mxu0 0.0
        %764 = vmatprep.subr.mxu0 0.0
        %765 = vmatpush1.msra.mxu0 0.0
        %766 = vmatprep.subr.mxu0 0.0
        %767 = vmatpush1.msra.mxu0 0.0
        %768 = vmatprep.subr.mxu0 0.0
        %769 = vmatpush1.msra.mxu0 0.0
        %770 = vmatprep.subr.mxu0 0.0
        %771 = vmatpush1.msra.mxu0 0.0
        %772 = vmatprep.subr.mxu0 0.0
        %773 = vmatpush1.msra.mxu0 0.0
        %774 = vmatprep.subr.mxu0 0.0
        %775 = vmatpush1.msra.mxu0 0.0
        %776 = vmatprep.subr.mxu0 0.0
        %777 = vmatpush1.msra.mxu0 0.0
        %778 = vmatprep.subr.mxu0 0.0
        %779 = vmatpush1.msra.mxu0 0.0
        %780 = vmatprep.subr.mxu0 0.0
        %781 = vmatpush1.msra.mxu0 0.0
        %782 = vmatprep.subr.mxu0 0.0
        %783 = vmatpush1.msra.mxu0 0.0
        %784 = vmatprep.subr.mxu0 0.0
        %785 = vmatpush1.msra.mxu0 0.0
        %786 = vmatprep.subr.mxu0 0.0
        %787 = vmatpush1.msra.mxu0 0.0
        %788 = vmatprep.subr.mxu0 0.0
        %789 = vmatpush1.msra.mxu0 0.0
        %790 = vmatprep.subr.mxu0 0.0
        %791 = vmatpush1.msra.mxu0 0.0
        %792 = vmatprep.subr.mxu0 0.0
        %793 = vmatpush1.msra.mxu0 0.0
        %794 = vmatprep.subr.mxu0 0.0
        %795 = vmatpush1.msra.mxu0 0.0
        %796 = vmatprep.mubr.f32.mxu0 0.0
        %797 = vmatmul.mubr.f32.gmra.mrb[0].mxu0 %v721
        %v798 = vpop.f32.mrb[0].mxu0
        %v799 = vadd.f32 %v717, %v798
        %v800 = vpop.f32.mrb[0].mxu0
        %801 = vmatprep.mubr.f32.mxu0 0.0
        %802 = vmatmul.mubr.f32.gmra.mrb[0].mxu0 %v724
        %v803 = vpop.f32.mrb[0].mxu0
        %v804 = vadd.f32 %v717, %v803
        %v805 = vpop.f32.mrb[0].mxu0
        %806 = vmatprep.mubr.f32.mxu0 0.0
        %807 = vmatmul.mubr.f32.gmra.mrb[0].mxu0 %v727
        %v808 = vpop.f32.mrb[0].mxu0
        %v809 = vadd.f32 %v717, %v808
        %v810 = vpop.f32.mrb[0].mxu0
        %811 = vmatprep.mubr.f32.mxu0 0.0
        %812 = vmatmul.mubr.f32.gmra.mrb[0].mxu0 %v730
        %v813 = vpop.f32.mrb[0].mxu0
        %v814 = vadd.f32 %v717, %v813
        %v815 = vpop.f32.mrb[0].mxu0
        %816 = vdwg.mxu0
        %vm817 = vcmp.gt.f32.partialorder %v799, 0.0
        %vm818 = vcmp.gt.f32.partialorder %v804, 0.0
        %vm819 = vcmp.gt.f32.partialorder %v809, 0.0
        %vm820 = vcmp.gt.f32.partialorder %v814, 0.0
        %v821 = vmin.f32 %v799, 0.0
        %v822 = vmin.f32 %v804, 0.0
        %v823 = vmin.f32 %v809, 0.0
        %v824 = vmin.f32 %v814, 0.0
        %v825 = vmul.f32 %v821, 1.442695
        %v826 = vpow.pop %v825
        %v827 = vmul.f32 %v822, 1.442695
        %v828 = vpow.pop %v827
        %v829 = vmul.f32 %v823, 1.442695
        %v830 = vpow.pop %v829
        %v831 = vmul.f32 %v824, 1.442695
        %v832 = vpow.pop %v831
        %v833 = vsub.f32 %v826, 1.0
        %v834 = vsub.f32 %v828, 1.0
        %v835 = vsub.f32 %v830, 1.0
        %v836 = vsub.f32 %v832, 1.0
        %v837 = vsel %vm817, %v799, %v833
        %v838 = vsel %vm818, %v804, %v834
        %v839 = vsel %vm819, %v809, %v835
        %v840 = vsel %vm820, %v814, %v836
        %v841 = vld [vmem:[%s6] sm:$0xff]
        %v842 = vld [vmem:[%s6 + $0x8] sm:$0xff]
        %v843 = vld [vmem:[%s6 + $0x10] sm:$0xff]
        %v844 = vld [vmem:[%s6 + $0x18] sm:$0xff]
        %v845 = vld [vmem:[%s6 + $0x20] sm:$0xff]
        %v846 = vld [vmem:[%s6 + $0x28] sm:$0xff]
        %v847 = vld [vmem:[%s6 + $0x30] sm:$0xff]
        %v848 = vld [vmem:[%s6 + $0x38] sm:$0xff]
        %v849 = vld [vmem:[%s6 + $0x40] sm:$0xff]
        %v850 = vld [vmem:[%s6 + $0x48] sm:$0xff]
        %v851 = vld [vmem:[%s6 + $0x50] sm:$0xff]
        %v852 = vld [vmem:[%s6 + $0x58] sm:$0xff]
        %v853 = vld [vmem:[%s6 + $0x60] sm:$0xff]
        %v854 = vld [vmem:[%s6 + $0x68] sm:$0xff]
        %v855 = vld [vmem:[%s6 + $0x70] sm:$0xff]
        %v856 = vld [vmem:[%s6 + $0x78] sm:$0xff]
        %v857 = vld [vmem:[%s7] sm:$0x1]
        %v859 = vlaneseq
        %v860 = vshrl.u32 %v859, 7
        %v861 = vsub.s32 0, %v860
        %v862 = vrot.slane %v857, %v861
        %864 = vmatprep.subr.mxu0 0.0
        %865 = vmatpush1.msra.mxu0 %v841
        %866 = vmatprep.subr.mxu0 0.0
        %867 = vmatpush1.msra.mxu0 %v842
        %868 = vmatprep.subr.mxu0 0.0
        %869 = vmatpush1.msra.mxu0 %v843
        %870 = vmatprep.subr.mxu0 0.0
        %871 = vmatpush1.msra.mxu0 %v844
        %872 = vmatprep.subr.mxu0 0.0
        %873 = vmatpush1.msra.mxu0 %v845
        %874 = vmatprep.subr.mxu0 0.0
        %875 = vmatpush1.msra.mxu0 %v846
        %876 = vmatprep.subr.mxu0 0.0
        %877 = vmatpush1.msra.mxu0 %v847
        %878 = vmatprep.subr.mxu0 0.0
        %879 = vmatpush1.msra.mxu0 %v848
        %880 = vmatprep.subr.mxu0 0.0
        %881 = vmatpush1.msra.mxu0 %v849
        %882 = vmatprep.subr.mxu0 0.0
        %883 = vmatpush1.msra.mxu0 %v850
        %884 = vmatprep.subr.mxu0 0.0
        %885 = vmatpush1.msra.mxu0 %v851
        %886 = vmatprep.subr.mxu0 0.0
        %887 = vmatpush1.msra.mxu0 %v852
        %888 = vmatprep.subr.mxu0 0.0
        %889 = vmatpush1.msra.mxu0 %v853
        %890 = vmatprep.subr.mxu0 0.0
        %891 = vmatpush1.msra.mxu0 %v854
        %892 = vmatprep.subr.mxu0 0.0
        %893 = vmatpush1.msra.mxu0 %v855
        %894 = vmatprep.subr.mxu0 0.0
        %895 = vmatpush1.msra.mxu0 %v856
        %896 = vmatprep.subr.mxu0 0.0
        %897 = vmatpush1.msra.mxu0 0.0
        %898 = vmatprep.subr.mxu0 0.0
        %899 = vmatpush1.msra.mxu0 0.0
        %900 = vmatprep.subr.mxu0 0.0
        %901 = vmatpush1.msra.mxu0 0.0
        %902 = vmatprep.subr.mxu0 0.0
        %903 = vmatpush1.msra.mxu0 0.0
        %904 = vmatprep.subr.mxu0 0.0
        %905 = vmatpush1.msra.mxu0 0.0
        %906 = vmatprep.subr.mxu0 0.0
        %907 = vmatpush1.msra.mxu0 0.0
        %908 = vmatprep.subr.mxu0 0.0
        %909 = vmatpush1.msra.mxu0 0.0
        %910 = vmatprep.subr.mxu0 0.0
        %911 = vmatpush1.msra.mxu0 0.0
        %912 = vmatprep.subr.mxu0 0.0
        %913 = vmatpush1.msra.mxu0 0.0
        %914 = vmatprep.subr.mxu0 0.0
        %915 = vmatpush1.msra.mxu0 0.0
        %916 = vmatprep.subr.mxu0 0.0
        %917 = vmatpush1.msra.mxu0 0.0
        %918 = vmatprep.subr.mxu0 0.0
        %919 = vmatpush1.msra.mxu0 0.0
        %920 = vmatprep.subr.mxu0 0.0
        %921 = vmatpush1.msra.mxu0 0.0
        %922 = vmatprep.subr.mxu0 0.0
        %923 = vmatpush1.msra.mxu0 0.0
        %924 = vmatprep.subr.mxu0 0.0
        %925 = vmatpush1.msra.mxu0 0.0
        %926 = vmatprep.subr.mxu0 0.0
        %927 = vmatpush1.msra.mxu0 0.0
        %928 = vmatprep.mubr.f32.mxu0 0.0
        %929 = vmatmul.mubr.f32.gmra.mrb[0].mxu0 %v837
        %v930 = vpop.f32.mrb[0].mxu0
        %v931 = vadd.f32 %v862, %v930
        %v932 = vpop.f32.mrb[0].mxu0
        %933 = vmatprep.mubr.f32.mxu0 0.0
        %934 = vmatmul.mubr.f32.gmra.mrb[0].mxu0 %v838
        %v935 = vpop.f32.mrb[0].mxu0
        %v936 = vadd.f32 %v862, %v935
        %v937 = vpop.f32.mrb[0].mxu0
        %938 = vmatprep.mubr.f32.mxu0 0.0
        %939 = vmatmul.mubr.f32.gmra.mrb[0].mxu0 %v839
        %v940 = vpop.f32.mrb[0].mxu0
        %v941 = vadd.f32 %v862, %v940
        %v942 = vpop.f32.mrb[0].mxu0
        %943 = vmatprep.mubr.f32.mxu0 0.0
        %944 = vmatmul.mubr.f32.gmra.mrb[0].mxu0 %v840
        %v945 = vpop.f32.mrb[0].mxu0
        %v946 = vadd.f32 %v862, %v945
        %v947 = vpop.f32.mrb[0].mxu0
        %948 = vdwg.mxu0
        %v949 = vld [vmem:[#allocation2] sm:$0xff]
        %v950 = vld [vmem:[#allocation2 + $0x8] sm:$0xff]
        %v951 = vld [vmem:[#allocation2 + $0x10] sm:$0xff]
        %v952 = vld [vmem:[#allocation2 + $0x18] sm:$0xff]
        %vm953 = vcmask 130048
        %v955 = vsel %vm953, %v931, 0
        %v958 = vsel %vm953, %v936, 0
        %v961 = vsel %vm953, %v941, 0
        %v964 = vsel %vm953, %v946, 0
        %966 = vmatprep.subr.mxu0 %v950
        %967 = vmatpush1.msra.mxu0 %v949
        %968 = vmatprep.subr.mxu0 %v952
        %969 = vmatpush1.msra.mxu0 %v951
        %970 = vmatprep.subr.mxu0 0.0
        %971 = vmatpush1.msra.mxu0 0.0
        %972 = vmatprep.subr.mxu0 0.0
        %973 = vmatpush1.msra.mxu0 0.0
        %974 = vmatprep.subr.mxu0 0.0
        %975 = vmatpush1.msra.mxu0 0.0
        %976 = vmatprep.subr.mxu0 0.0
        %977 = vmatpush1.msra.mxu0 0.0
        %978 = vmatprep.subr.mxu0 0.0
        %979 = vmatpush1.msra.mxu0 0.0
        %980 = vmatprep.subr.mxu0 0.0
        %981 = vmatpush1.msra.mxu0 0.0
        %982 = vmatprep.subr.mxu0 0.0
        %983 = vmatpush1.msra.mxu0 0.0
        %984 = vmatprep.subr.mxu0 0.0
        %985 = vmatpush1.msra.mxu0 0.0
        %986 = vmatprep.subr.mxu0 0.0
        %987 = vmatpush1.msra.mxu0 0.0
        %988 = vmatprep.subr.mxu0 0.0
        %989 = vmatpush1.msra.mxu0 0.0
        %990 = vmatprep.subr.mxu0 0.0
        %991 = vmatpush1.msra.mxu0 0.0
        %992 = vmatprep.subr.mxu0 0.0
        %993 = vmatpush1.msra.mxu0 0.0
        %994 = vmatprep.subr.mxu0 0.0
        %995 = vmatpush1.msra.mxu0 0.0
        %996 = vmatprep.subr.mxu0 0.0
        %997 = vmatpush1.msra.mxu0 0.0
        %998 = vmatprep.subr.mxu0 0.0
        %999 = vmatpush1.msra.mxu0 0.0
        %1000 = vmatprep.subr.mxu0 0.0
        %1001 = vmatpush1.msra.mxu0 0.0
        %1002 = vmatprep.subr.mxu0 0.0
        %1003 = vmatpush1.msra.mxu0 0.0
        %1004 = vmatprep.subr.mxu0 0.0
        %1005 = vmatpush1.msra.mxu0 0.0
        %1006 = vmatprep.subr.mxu0 0.0
        %1007 = vmatpush1.msra.mxu0 0.0
        %1008 = vmatprep.subr.mxu0 0.0
        %1009 = vmatpush1.msra.mxu0 0.0
        %1010 = vmatprep.subr.mxu0 0.0
        %1011 = vmatpush1.msra.mxu0 0.0
        %1012 = vmatprep.subr.mxu0 0.0
        %1013 = vmatpush1.msra.mxu0 0.0
        %1014 = vmatprep.subr.mxu0 0.0
        %1015 = vmatpush1.msra.mxu0 0.0
        %1016 = vmatprep.subr.mxu0 0.0
        %1017 = vmatpush1.msra.mxu0 0.0
        %1018 = vmatprep.subr.mxu0 0.0
        %1019 = vmatpush1.msra.mxu0 0.0
        %1020 = vmatprep.subr.mxu0 0.0
        %1021 = vmatpush1.msra.mxu0 0.0
        %1022 = vmatprep.subr.mxu0 0.0
        %1023 = vmatpush1.msra.mxu0 0.0
        %1024 = vmatprep.subr.mxu0 0.0
        %1025 = vmatpush1.msra.mxu0 0.0
        %1026 = vmatprep.subr.mxu0 0.0
        %1027 = vmatpush1.msra.mxu0 0.0
        %1028 = vmatprep.subr.mxu0 0.0
        %1029 = vmatpush1.msra.mxu0 0.0
        %1030 = vmatprep.mubr.f32.mxu0 0.0
        %1031 = vmatmul.mubr.f32.gmra.mrb[0].mxu0 %v955
        %v1032 = vpop.f32.mrb[0].mxu0
        %v1033 = vadd.f32 0.0, %v1032
        %v1034 = vpop.f32.mrb[0].mxu0
        %v1035 = vadd.f32 0.0, %v1034
        %1036 = vmatprep.mubr.f32.mxu0 0.0
        %1037 = vmatmul.mubr.f32.gmra.mrb[0].mxu0 %v958
        %v1038 = vpop.f32.mrb[0].mxu0
        %v1039 = vadd.f32 0.0, %v1038
        %v1040 = vpop.f32.mrb[0].mxu0
        %v1041 = vadd.f32 0.0, %v1040
        %1042 = vmatprep.mubr.f32.mxu0 0.0
        %1043 = vmatmul.mubr.f32.gmra.mrb[0].mxu0 %v961
        %v1044 = vpop.f32.mrb[0].mxu0
        %v1045 = vadd.f32 0.0, %v1044
        %v1046 = vpop.f32.mrb[0].mxu0
        %v1047 = vadd.f32 0.0, %v1046
        %1048 = vmatprep.mubr.f32.mxu0 0.0
        %1049 = vmatmul.mubr.f32.gmra.mrb[0].mxu0 %v964
        %v1050 = vpop.f32.mrb[0].mxu0
        %v1051 = vadd.f32 0.0, %v1050
        %v1052 = vpop.f32.mrb[0].mxu0
        %v1053 = vadd.f32 0.0, %v1052
        %1054 = vdwg.mxu0
        %v1055 = vld [vmem:[#allocation4] sm:$0xff]
        %v1056 = vld [vmem:[#allocation4 + $0x8] sm:$0xff]
        %v1057 = vld [vmem:[#allocation4 + $0x10] sm:$0xff]
        %v1058 = vld [vmem:[#allocation4 + $0x18] sm:$0xff]
        %1059 = vmatprep.subr.mxu0 %v1056
        %1060 = vmatpush1.msra.mxu0 %v1055
        %1061 = vmatprep.subr.mxu0 %v1058
        %1062 = vmatpush1.msra.mxu0 %v1057
        %1063 = vmatprep.subr.mxu0 0.0
        %1064 = vmatpush1.msra.mxu0 0.0
        %1065 = vmatprep.subr.mxu0 0.0
        %1066 = vmatpush1.msra.mxu0 0.0
        %1067 = vmatprep.subr.mxu0 0.0
        %1068 = vmatpush1.msra.mxu0 0.0
        %1069 = vmatprep.subr.mxu0 0.0
        %1070 = vmatpush1.msra.mxu0 0.0
        %1071 = vmatprep.subr.mxu0 0.0
        %1072 = vmatpush1.msra.mxu0 0.0
        %1073 = vmatprep.subr.mxu0 0.0
        %1074 = vmatpush1.msra.mxu0 0.0
        %1075 = vmatprep.subr.mxu0 0.0
        %1076 = vmatpush1.msra.mxu0 0.0
        %1077 = vmatprep.subr.mxu0 0.0
        %1078 = vmatpush1.msra.mxu0 0.0
        %1079 = vmatprep.subr.mxu0 0.0
        %1080 = vmatpush1.msra.mxu0 0.0
        %1081 = vmatprep.subr.mxu0 0.0
        %1082 = vmatpush1.msra.mxu0 0.0
        %1083 = vmatprep.subr.mxu0 0.0
        %1084 = vmatpush1.msra.mxu0 0.0
        %1085 = vmatprep.subr.mxu0 0.0
        %1086 = vmatpush1.msra.mxu0 0.0
        %1087 = vmatprep.subr.mxu0 0.0
        %1088 = vmatpush1.msra.mxu0 0.0
        %1089 = vmatprep.subr.mxu0 0.0
        %1090 = vmatpush1.msra.mxu0 0.0
        %1091 = vmatprep.subr.mxu0 0.0
        %1092 = vmatpush1.msra.mxu0 0.0
        %1093 = vmatprep.subr.mxu0 0.0
        %1094 = vmatpush1.msra.mxu0 0.0
        %1095 = vmatprep.subr.mxu0 0.0
        %1096 = vmatpush1.msra.mxu0 0.0
        %1097 = vmatprep.subr.mxu0 0.0
        %1098 = vmatpush1.msra.mxu0 0.0
        %1099 = vmatprep.subr.mxu0 0.0
        %1100 = vmatpush1.msra.mxu0 0.0
        %1101 = vmatprep.subr.mxu0 0.0
        %1102 = vmatpush1.msra.mxu0 0.0
        %1103 = vmatprep.subr.mxu0 0.0
        %1104 = vmatpush1.msra.mxu0 0.0
        %1105 = vmatprep.subr.mxu0 0.0
        %1106 = vmatpush1.msra.mxu0 0.0
        %1107 = vmatprep.subr.mxu0 0.0
        %1108 = vmatpush1.msra.mxu0 0.0
        %1109 = vmatprep.subr.mxu0 0.0
        %1110 = vmatpush1.msra.mxu0 0.0
        %1111 = vmatprep.subr.mxu0 0.0
        %1112 = vmatpush1.msra.mxu0 0.0
        %1113 = vmatprep.subr.mxu0 0.0
        %1114 = vmatpush1.msra.mxu0 0.0
        %1115 = vmatprep.subr.mxu0 0.0
        %1116 = vmatpush1.msra.mxu0 0.0
        %1117 = vmatprep.subr.mxu0 0.0
        %1118 = vmatpush1.msra.mxu0 0.0
        %1119 = vmatprep.subr.mxu0 0.0
        %1120 = vmatpush1.msra.mxu0 0.0
        %1121 = vmatprep.subr.mxu0 0.0
        %1122 = vmatpush1.msra.mxu0 0.0
        %1123 = vmatprep.mubr.f32.mxu0 0.0
        %1124 = vmatmul.mubr.f32.gmra.mrb[0].mxu0 %v955
        %v1125 = vpop.f32.mrb[0].mxu0
        %v1126 = vadd.f32 0.0, %v1125
        %v1127 = vpop.f32.mrb[0].mxu0
        %v1128 = vadd.f32 0.0, %v1127
        %1129 = vmatprep.mubr.f32.mxu0 0.0
        %1130 = vmatmul.mubr.f32.gmra.mrb[0].mxu0 %v958
        %v1131 = vpop.f32.mrb[0].mxu0
        %v1132 = vadd.f32 0.0, %v1131
        %v1133 = vpop.f32.mrb[0].mxu0
        %v1134 = vadd.f32 0.0, %v1133
        %1135 = vmatprep.mubr.f32.mxu0 0.0
        %1136 = vmatmul.mubr.f32.gmra.mrb[0].mxu0 %v961
        %v1137 = vpop.f32.mrb[0].mxu0
        %v1138 = vadd.f32 0.0, %v1137
        %v1139 = vpop.f32.mrb[0].mxu0
        %v1140 = vadd.f32 0.0, %v1139
        %1141 = vmatprep.mubr.f32.mxu0 0.0
        %1142 = vmatmul.mubr.f32.gmra.mrb[0].mxu0 %v964
        %v1143 = vpop.f32.mrb[0].mxu0
        %v1144 = vadd.f32 0.0, %v1143
        %v1145 = vpop.f32.mrb[0].mxu0
        %v1146 = vadd.f32 0.0, %v1145
        %1147 = vdwg.mxu0
        %v1148 = vld [vmem:[%s1] sm:$0xff]
        %v1149 = vld [vmem:[%s1 + $0x8] sm:$0xff]
        %v1150 = vld [vmem:[%s1 + $0x10] sm:$0xff]
        %v1151 = vld [vmem:[%s1 + $0x18] sm:$0xff]
        %v1152 = vld [vmem:[%s1 + $0x20] sm:$0xff]
        %v1153 = vld [vmem:[%s1 + $0x28] sm:$0xff]
        %v1154 = vld [vmem:[%s1 + $0x30] sm:$0xff]
        %v1155 = vld [vmem:[%s1 + $0x38] sm:$0xff]
        %v1156 = vld [vmem:[%s1 + $0x40] sm:$0xff]
        %v1157 = vld [vmem:[%s1 + $0x48] sm:$0xff]
        %v1158 = vld [vmem:[%s1 + $0x50] sm:$0xff]
        %v1159 = vld [vmem:[%s1 + $0x58] sm:$0xff]
        %v1160 = vld [vmem:[%s1 + $0x60] sm:$0xff]
        %v1161 = vld [vmem:[%s1 + $0x68] sm:$0xff]
        %v1162 = vld [vmem:[%s1 + $0x70] sm:$0xff]
        %v1163 = vld [vmem:[%s1 + $0x78] sm:$0xff]
        %v1164 = vld [vmem:[%s1 + $0x80] sm:$0xff]
        %v1165 = vld [vmem:[%s1 + $0x88] sm:$0xff]
        %v1166 = vld [vmem:[%s1 + $0x90] sm:$0xff]
        %v1167 = vld [vmem:[%s1 + $0x98] sm:$0xff]
        %v1168 = vld [vmem:[%s1 + $0xa0] sm:$0xff]
        %v1169 = vld [vmem:[%s1 + $0xa8] sm:$0xff]
        %v1170 = vld [vmem:[%s1 + $0xb0] sm:$0xff]
        %v1171 = vld [vmem:[%s1 + $0xb8] sm:$0xff]
        %v1172 = vld [vmem:[%s1 + $0xc0] sm:$0xff]
        %v1173 = vld [vmem:[%s1 + $0xc8] sm:$0xff]
        %v1174 = vld [vmem:[%s1 + $0xd0] sm:$0xff]
        %v1175 = vld [vmem:[%s1 + $0xd8] sm:$0xff]
        %v1176 = vld [vmem:[%s2] sm:$0xff]
        %v1177 = vld [vmem:[%s2 + $0x8] sm:$0xff]
        %v1178 = vld [vmem:[%s2 + $0x10] sm:$0xff]
        %v1179 = vld [vmem:[%s2 + $0x18] sm:$0xff]
        %v1180 = vld [vmem:[%s2 + $0x20] sm:$0xff]
        %v1181 = vld [vmem:[%s2 + $0x28] sm:$0xff]
        %v1182 = vld [vmem:[%s2 + $0x30] sm:$0xff]
        %v1183 = vld [vmem:[%s2 + $0x38] sm:$0xff]
        %v1184 = vld [vmem:[%s2 + $0x40] sm:$0xff]
        %v1185 = vld [vmem:[%s2 + $0x48] sm:$0xff]
        %v1186 = vld [vmem:[%s2 + $0x50] sm:$0xff]
        %v1187 = vld [vmem:[%s2 + $0x58] sm:$0xff]
        %v1188 = vld [vmem:[%s2 + $0x60] sm:$0xff]
        %v1189 = vld [vmem:[%s2 + $0x68] sm:$0xff]
        %v1190 = vld [vmem:[%s2 + $0x70] sm:$0xff]
        %v1191 = vld [vmem:[%s2 + $0x78] sm:$0xff]
        %v1192 = vld [vmem:[%s2 + $0x80] sm:$0xff]
        %v1193 = vld [vmem:[%s2 + $0x88] sm:$0xff]
        %v1194 = vld [vmem:[%s2 + $0x90] sm:$0xff]
        %v1195 = vld [vmem:[%s2 + $0x98] sm:$0xff]
        %v1196 = vld [vmem:[%s2 + $0xa0] sm:$0xff]
        %v1197 = vld [vmem:[%s2 + $0xa8] sm:$0xff]
        %v1198 = vld [vmem:[%s2 + $0xb0] sm:$0xff]
        %v1199 = vld [vmem:[%s2 + $0xb8] sm:$0xff]
        %v1200 = vld [vmem:[%s2 + $0xc0] sm:$0xff]
        %v1201 = vld [vmem:[%s2 + $0xc8] sm:$0xff]
        %v1202 = vld [vmem:[%s2 + $0xd0] sm:$0xff]
        %v1203 = vld [vmem:[%s2 + $0xd8] sm:$0xff]
        %v1205 = vsel %vm719, %v1176, 0
        %v1208 = vsel %vm719, %v1177, 0
        %v1211 = vsel %vm719, %v1178, 0
        %v1214 = vsel %vm719, %v1179, 0
        %v1217 = vsel %vm719, %v1180, 0
        %v1220 = vsel %vm719, %v1181, 0
        %v1223 = vsel %vm719, %v1182, 0
        %v1226 = vsel %vm719, %v1183, 0
        %v1229 = vsel %vm719, %v1184, 0
        %v1232 = vsel %vm719, %v1185, 0
        %v1235 = vsel %vm719, %v1186, 0
        %v1238 = vsel %vm719, %v1187, 0
        %v1241 = vsel %vm719, %v1188, 0
        %v1244 = vsel %vm719, %v1189, 0
        %v1247 = vsel %vm719, %v1190, 0
        %v1250 = vsel %vm719, %v1191, 0
        %v1253 = vsel %vm719, %v1192, 0
        %v1256 = vsel %vm719, %v1193, 0
        %v1259 = vsel %vm719, %v1194, 0
        %v1262 = vsel %vm719, %v1195, 0
        %v1265 = vsel %vm719, %v1196, 0
        %v1268 = vsel %vm719, %v1197, 0
        %v1271 = vsel %vm719, %v1198, 0
        %v1274 = vsel %vm719, %v1199, 0
        %v1277 = vsel %vm719, %v1200, 0
        %v1280 = vsel %vm719, %v1201, 0
        %v1283 = vsel %vm719, %v1202, 0
        %v1286 = vsel %vm719, %v1203, 0
        %1288 = vmatprep.subr.mxu0 %v1128
        %1289 = vmatpush1.msra.mxu0 %v1126
        %1290 = vmatprep.subr.mxu0 %v1134
        %1291 = vmatpush1.msra.mxu0 %v1132
        %1292 = vmatprep.subr.mxu0 %v1140
        %1293 = vmatpush1.msra.mxu0 %v1138
        %1294 = vmatprep.subr.mxu0 %v1146
        %1295 = vmatpush1.msra.mxu0 %v1144
        %1296 = vmatprep.subr.mxu0 0.0
        %1297 = vmatpush1.msra.mxu0 0.0
        %1298 = vmatprep.subr.mxu0 0.0
        %1299 = vmatpush1.msra.mxu0 0.0
        %1300 = vmatprep.subr.mxu0 0.0
        %1301 = vmatpush1.msra.mxu0 0.0
        %1302 = vmatprep.subr.mxu0 0.0
        %1303 = vmatpush1.msra.mxu0 0.0
        %1304 = vmatprep.subr.mxu0 0.0
        %1305 = vmatpush1.msra.mxu0 0.0
        %1306 = vmatprep.subr.mxu0 0.0
        %1307 = vmatpush1.msra.mxu0 0.0
        %1308 = vmatprep.subr.mxu0 0.0
        %1309 = vmatpush1.msra.mxu0 0.0
        %1310 = vmatprep.subr.mxu0 0.0
        %1311 = vmatpush1.msra.mxu0 0.0
        %1312 = vmatprep.subr.mxu0 0.0
        %1313 = vmatpush1.msra.mxu0 0.0
        %1314 = vmatprep.subr.mxu0 0.0
        %1315 = vmatpush1.msra.mxu0 0.0
        %1316 = vmatprep.subr.mxu0 0.0
        %1317 = vmatpush1.msra.mxu0 0.0
        %1318 = vmatprep.subr.mxu0 0.0
        %1319 = vmatpush1.msra.mxu0 0.0
        %1320 = vmatprep.subr.mxu0 0.0
        %1321 = vmatpush1.msra.mxu0 0.0
        %1322 = vmatprep.subr.mxu0 0.0
        %1323 = vmatpush1.msra.mxu0 0.0
        %1324 = vmatprep.subr.mxu0 0.0
        %1325 = vmatpush1.msra.mxu0 0.0
        %1326 = vmatprep.subr.mxu0 0.0
        %1327 = vmatpush1.msra.mxu0 0.0
        %1328 = vmatprep.subr.mxu0 0.0
        %1329 = vmatpush1.msra.mxu0 0.0
        %1330 = vmatprep.subr.mxu0 0.0
        %1331 = vmatpush1.msra.mxu0 0.0
        %1332 = vmatprep.subr.mxu0 0.0
        %1333 = vmatpush1.msra.mxu0 0.0
        %1334 = vmatprep.subr.mxu0 0.0
        %1335 = vmatpush1.msra.mxu0 0.0
        %1336 = vmatprep.subr.mxu0 0.0
        %1337 = vmatpush1.msra.mxu0 0.0
        %1338 = vmatprep.subr.mxu0 0.0
        %1339 = vmatpush1.msra.mxu0 0.0
        %1340 = vmatprep.subr.mxu0 0.0
        %1341 = vmatpush1.msra.mxu0 0.0
        %1342 = vmatprep.subr.mxu0 0.0
        %1343 = vmatpush1.msra.mxu0 0.0
        %1344 = vmatprep.subr.mxu0 0.0
        %1345 = vmatpush1.msra.mxu0 0.0
        %1346 = vmatprep.subr.mxu0 0.0
        %1347 = vmatpush1.msra.mxu0 0.0
        %1348 = vmatprep.subr.mxu0 0.0
        %1349 = vmatpush1.msra.mxu0 0.0
        %1350 = vmatprep.subr.mxu0 0.0
        %1351 = vmatpush1.msra.mxu0 0.0
        %1352 = vmatprep.mubr.f32.mxu0 0.0
        %1353 = vmatmul.mubr.f32.gmra.mrb[0].mxu0 %v1205
        %v1354 = vpop.f32.mrb[0].mxu0
        %v1355 = vadd.f32 0.0, %v1354
        %v1356 = vpop.f32.mrb[0].mxu0
        %v1357 = vadd.f32 0.0, %v1356
        %1358 = vmatprep.mubr.f32.mxu0 0.0
        %1359 = vmatmul.mubr.f32.gmra.mrb[0].mxu0 %v1208
        %v1360 = vpop.f32.mrb[0].mxu0
        %v1361 = vadd.f32 0.0, %v1360
        %v1362 = vpop.f32.mrb[0].mxu0
        %v1363 = vadd.f32 0.0, %v1362
        %1364 = vmatprep.mubr.f32.mxu0 0.0
        %1365 = vmatmul.mubr.f32.gmra.mrb[0].mxu0 %v1211
        %v1366 = vpop.f32.mrb[0].mxu0
        %v1367 = vadd.f32 0.0, %v1366
        %v1368 = vpop.f32.mrb[0].mxu0
        %v1369 = vadd.f32 0.0, %v1368
        %1370 = vmatprep.mubr.f32.mxu0 0.0
        %1371 = vmatmul.mubr.f32.gmra.mrb[0].mxu0 %v1214
        %v1372 = vpop.f32.mrb[0].mxu0
        %v1373 = vadd.f32 0.0, %v1372
        %v1374 = vpop.f32.mrb[0].mxu0
        %v1375 = vadd.f32 0.0, %v1374
        %1376 = vmatprep.mubr.f32.mxu0 0.0
        %1377 = vmatmul.mubr.f32.gmra.mrb[0].mxu0 %v1217
        %v1378 = vpop.f32.mrb[0].mxu0
        %v1379 = vadd.f32 0.0, %v1378
        %v1380 = vpop.f32.mrb[0].mxu0
        %v1381 = vadd.f32 0.0, %v1380
        %1382 = vmatprep.mubr.f32.mxu0 0.0
        %1383 = vmatmul.mubr.f32.gmra.mrb[0].mxu0 %v1220
        %v1384 = vpop.f32.mrb[0].mxu0
        %v1385 = vadd.f32 0.0, %v1384
        %v1386 = vpop.f32.mrb[0].mxu0
        %v1387 = vadd.f32 0.0, %v1386
        %1388 = vmatprep.mubr.f32.mxu0 0.0
        %1389 = vmatmul.mubr.f32.gmra.mrb[0].mxu0 %v1223
        %v1390 = vpop.f32.mrb[0].mxu0
        %v1391 = vadd.f32 0.0, %v1390
        %v1392 = vpop.f32.mrb[0].mxu0
        %v1393 = vadd.f32 0.0, %v1392
        %1394 = vmatprep.mubr.f32.mxu0 0.0
        %1395 = vmatmul.mubr.f32.gmra.mrb[0].mxu0 %v1226
        %v1396 = vpop.f32.mrb[0].mxu0
        %v1397 = vadd.f32 0.0, %v1396
        %v1398 = vpop.f32.mrb[0].mxu0
        %v1399 = vadd.f32 0.0, %v1398
        %1400 = vmatprep.mubr.f32.mxu0 0.0
        %1401 = vmatmul.mubr.f32.gmra.mrb[0].mxu0 %v1229
        %v1402 = vpop.f32.mrb[0].mxu0
        %v1403 = vadd.f32 0.0, %v1402
        %v1404 = vpop.f32.mrb[0].mxu0
        %v1405 = vadd.f32 0.0, %v1404
        %1406 = vmatprep.mubr.f32.mxu0 0.0
        %1407 = vmatmul.mubr.f32.gmra.mrb[0].mxu0 %v1232
        %v1408 = vpop.f32.mrb[0].mxu0
        %v1409 = vadd.f32 0.0, %v1408
        %v1410 = vpop.f32.mrb[0].mxu0
        %v1411 = vadd.f32 0.0, %v1410
        %1412 = vmatprep.mubr.f32.mxu0 0.0
        %1413 = vmatmul.mubr.f32.gmra.mrb[0].mxu0 %v1235
        %v1414 = vpop.f32.mrb[0].mxu0
        %v1415 = vadd.f32 0.0, %v1414
        %v1416 = vpop.f32.mrb[0].mxu0
        %v1417 = vadd.f32 0.0, %v1416
        %1418 = vmatprep.mubr.f32.mxu0 0.0
        %1419 = vmatmul.mubr.f32.gmra.mrb[0].mxu0 %v1238
        %v1420 = vpop.f32.mrb[0].mxu0
        %v1421 = vadd.f32 0.0, %v1420
        %v1422 = vpop.f32.mrb[0].mxu0
        %v1423 = vadd.f32 0.0, %v1422
        %1424 = vmatprep.mubr.f32.mxu0 0.0
        %1425 = vmatmul.mubr.f32.gmra.mrb[0].mxu0 %v1241
        %v1426 = vpop.f32.mrb[0].mxu0
        %v1427 = vadd.f32 0.0, %v1426
        %v1428 = vpop.f32.mrb[0].mxu0
        %v1429 = vadd.f32 0.0, %v1428
        %1430 = vmatprep.mubr.f32.mxu0 0.0
        %1431 = vmatmul.mubr.f32.gmra.mrb[0].mxu0 %v1244
        %v1432 = vpop.f32.mrb[0].mxu0
        %v1433 = vadd.f32 0.0, %v1432
        %v1434 = vpop.f32.mrb[0].mxu0
        %v1435 = vadd.f32 0.0, %v1434
        %1436 = vmatprep.mubr.f32.mxu0 0.0
        %1437 = vmatmul.mubr.f32.gmra.mrb[0].mxu0 %v1247
        %v1438 = vpop.f32.mrb[0].mxu0
        %v1439 = vadd.f32 0.0, %v1438
        %v1440 = vpop.f32.mrb[0].mxu0
        %v1441 = vadd.f32 0.0, %v1440
        %1442 = vmatprep.mubr.f32.mxu0 0.0
        %1443 = vmatmul.mubr.f32.gmra.mrb[0].mxu0 %v1250
        %v1444 = vpop.f32.mrb[0].mxu0
        %v1445 = vadd.f32 0.0, %v1444
        %v1446 = vpop.f32.mrb[0].mxu0
        %v1447 = vadd.f32 0.0, %v1446
        %1448 = vmatprep.mubr.f32.mxu0 0.0
        %1449 = vmatmul.mubr.f32.gmra.mrb[0].mxu0 %v1253
        %v1450 = vpop.f32.mrb[0].mxu0
        %v1451 = vadd.f32 0.0, %v1450
        %v1452 = vpop.f32.mrb[0].mxu0
        %v1453 = vadd.f32 0.0, %v1452
        %1454 = vmatprep.mubr.f32.mxu0 0.0
        %1455 = vmatmul.mubr.f32.gmra.mrb[0].mxu0 %v1256
        %v1456 = vpop.f32.mrb[0].mxu0
        %v1457 = vadd.f32 0.0, %v1456
        %v1458 = vpop.f32.mrb[0].mxu0
        %v1459 = vadd.f32 0.0, %v1458
        %1460 = vmatprep.mubr.f32.mxu0 0.0
        %1461 = vmatmul.mubr.f32.gmra.mrb[0].mxu0 %v1259
        %v1462 = vpop.f32.mrb[0].mxu0
        %v1463 = vadd.f32 0.0, %v1462
        %v1464 = vpop.f32.mrb[0].mxu0
        %v1465 = vadd.f32 0.0, %v1464
        %1466 = vmatprep.mubr.f32.mxu0 0.0
        %1467 = vmatmul.mubr.f32.gmra.mrb[0].mxu0 %v1262
        %v1468 = vpop.f32.mrb[0].mxu0
        %v1469 = vadd.f32 0.0, %v1468
        %v1470 = vpop.f32.mrb[0].mxu0
        %v1471 = vadd.f32 0.0, %v1470
        %1472 = vmatprep.mubr.f32.mxu0 0.0
        %1473 = vmatmul.mubr.f32.gmra.mrb[0].mxu0 %v1265
        %v1474 = vpop.f32.mrb[0].mxu0
        %v1475 = vadd.f32 0.0, %v1474
        %v1476 = vpop.f32.mrb[0].mxu0
        %v1477 = vadd.f32 0.0, %v1476
        %1478 = vmatprep.mubr.f32.mxu0 0.0
        %1479 = vmatmul.mubr.f32.gmra.mrb[0].mxu0 %v1268
        %v1480 = vpop.f32.mrb[0].mxu0
        %v1481 = vadd.f32 0.0, %v1480
        %v1482 = vpop.f32.mrb[0].mxu0
        %v1483 = vadd.f32 0.0, %v1482
        %1484 = vmatprep.mubr.f32.mxu0 0.0
        %1485 = vmatmul.mubr.f32.gmra.mrb[0].mxu0 %v1271
        %v1486 = vpop.f32.mrb[0].mxu0
        %v1487 = vadd.f32 0.0, %v1486
        %v1488 = vpop.f32.mrb[0].mxu0
        %v1489 = vadd.f32 0.0, %v1488
        %1490 = vmatprep.mubr.f32.mxu0 0.0
        %1491 = vmatmul.mubr.f32.gmra.mrb[0].mxu0 %v1274
        %v1492 = vpop.f32.mrb[0].mxu0
        %v1493 = vadd.f32 0.0, %v1492
        %v1494 = vpop.f32.mrb[0].mxu0
        %v1495 = vadd.f32 0.0, %v1494
        %1496 = vmatprep.mubr.f32.mxu0 0.0
        %1497 = vmatmul.mubr.f32.gmra.mrb[0].mxu0 %v1277
        %v1498 = vpop.f32.mrb[0].mxu0
        %v1499 = vadd.f32 0.0, %v1498
        %v1500 = vpop.f32.mrb[0].mxu0
        %v1501 = vadd.f32 0.0, %v1500
        %1502 = vmatprep.mubr.f32.mxu0 0.0
        %1503 = vmatmul.mubr.f32.gmra.mrb[0].mxu0 %v1280
        %v1504 = vpop.f32.mrb[0].mxu0
        %v1505 = vadd.f32 0.0, %v1504
        %v1506 = vpop.f32.mrb[0].mxu0
        %v1507 = vadd.f32 0.0, %v1506
        %1508 = vmatprep.mubr.f32.mxu0 0.0
        %1509 = vmatmul.mubr.f32.gmra.mrb[0].mxu0 %v1283
        %v1510 = vpop.f32.mrb[0].mxu0
        %v1511 = vadd.f32 0.0, %v1510
        %v1512 = vpop.f32.mrb[0].mxu0
        %v1513 = vadd.f32 0.0, %v1512
        %1514 = vmatprep.mubr.f32.mxu0 0.0
        %1515 = vmatmul.mubr.f32.gmra.mrb[0].mxu0 %v1286
        %v1516 = vpop.f32.mrb[0].mxu0
        %v1517 = vadd.f32 0.0, %v1516
        %v1518 = vpop.f32.mrb[0].mxu0
        %v1519 = vadd.f32 0.0, %v1518
        %1520 = vdwg.mxu0
        %v1522 = vsel %vm719, %v1148, 0
        %v1525 = vsel %vm719, %v1149, 0
        %v1528 = vsel %vm719, %v1150, 0
        %v1531 = vsel %vm719, %v1151, 0
        %v1534 = vsel %vm719, %v1152, 0
        %v1537 = vsel %vm719, %v1153, 0
        %v1540 = vsel %vm719, %v1154, 0
        %v1543 = vsel %vm719, %v1155, 0
        %v1546 = vsel %vm719, %v1156, 0
        %v1549 = vsel %vm719, %v1157, 0
        %v1552 = vsel %vm719, %v1158, 0
        %v1555 = vsel %vm719, %v1159, 0
        %v1558 = vsel %vm719, %v1160, 0
        %v1561 = vsel %vm719, %v1161, 0
        %v1564 = vsel %vm719, %v1162, 0
        %v1567 = vsel %vm719, %v1163, 0
        %v1570 = vsel %vm719, %v1164, 0
        %v1573 = vsel %vm719, %v1165, 0
        %v1576 = vsel %vm719, %v1166, 0
        %v1579 = vsel %vm719, %v1167, 0
        %v1582 = vsel %vm719, %v1168, 0
        %v1585 = vsel %vm719, %v1169, 0
        %v1588 = vsel %vm719, %v1170, 0
        %v1591 = vsel %vm719, %v1171, 0
        %v1594 = vsel %vm719, %v1172, 0
        %v1597 = vsel %vm719, %v1173, 0
        %v1600 = vsel %vm719, %v1174, 0
        %v1603 = vsel %vm719, %v1175, 0
        %1605 = vmatprep.subr.mxu0 %v1035
        %1606 = vmatpush1.msra.mxu0 %v1033
        %1607 = vmatprep.subr.mxu0 %v1041
        %1608 = vmatpush1.msra.mxu0 %v1039
        %1609 = vmatprep.subr.mxu0 %v1047
        %1610 = vmatpush1.msra.mxu0 %v1045
        %1611 = vmatprep.subr.mxu0 %v1053
        %1612 = vmatpush1.msra.mxu0 %v1051
        %1613 = vmatprep.subr.mxu0 0.0
        %1614 = vmatpush1.msra.mxu0 0.0
        %1615 = vmatprep.subr.mxu0 0.0
        %1616 = vmatpush1.msra.mxu0 0.0
        %1617 = vmatprep.subr.mxu0 0.0
        %1618 = vmatpush1.msra.mxu0 0.0
        %1619 = vmatprep.subr.mxu0 0.0
        %1620 = vmatpush1.msra.mxu0 0.0
        %1621 = vmatprep.subr.mxu0 0.0
        %1622 = vmatpush1.msra.mxu0 0.0
        %1623 = vmatprep.subr.mxu0 0.0
        %1624 = vmatpush1.msra.mxu0 0.0
        %1625 = vmatprep.subr.mxu0 0.0
        %1626 = vmatpush1.msra.mxu0 0.0
        %1627 = vmatprep.subr.mxu0 0.0
        %1628 = vmatpush1.msra.mxu0 0.0
        %1629 = vmatprep.subr.mxu0 0.0
        %1630 = vmatpush1.msra.mxu0 0.0
        %1631 = vmatprep.subr.mxu0 0.0
        %1632 = vmatpush1.msra.mxu0 0.0
        %1633 = vmatprep.subr.mxu0 0.0
        %1634 = vmatpush1.msra.mxu0 0.0
        %1635 = vmatprep.subr.mxu0 0.0
        %1636 = vmatpush1.msra.mxu0 0.0
        %1637 = vmatprep.subr.mxu0 0.0
        %1638 = vmatpush1.msra.mxu0 0.0
        %1639 = vmatprep.subr.mxu0 0.0
        %1640 = vmatpush1.msra.mxu0 0.0
        %1641 = vmatprep.subr.mxu0 0.0
        %1642 = vmatpush1.msra.mxu0 0.0
        %1643 = vmatprep.subr.mxu0 0.0
        %1644 = vmatpush1.msra.mxu0 0.0
        %1645 = vmatprep.subr.mxu0 0.0
        %1646 = vmatpush1.msra.mxu0 0.0
        %1647 = vmatprep.subr.mxu0 0.0
        %1648 = vmatpush1.msra.mxu0 0.0
        %1649 = vmatprep.subr.mxu0 0.0
        %1650 = vmatpush1.msra.mxu0 0.0
        %1651 = vmatprep.subr.mxu0 0.0
        %1652 = vmatpush1.msra.mxu0 0.0
        %1653 = vmatprep.subr.mxu0 0.0
        %1654 = vmatpush1.msra.mxu0 0.0
        %1655 = vmatprep.subr.mxu0 0.0
        %1656 = vmatpush1.msra.mxu0 0.0
        %1657 = vmatprep.subr.mxu0 0.0
        %1658 = vmatpush1.msra.mxu0 0.0
        %1659 = vmatprep.subr.mxu0 0.0
        %1660 = vmatpush1.msra.mxu0 0.0
        %1661 = vmatprep.subr.mxu0 0.0
        %1662 = vmatpush1.msra.mxu0 0.0
        %1663 = vmatprep.subr.mxu0 0.0
        %1664 = vmatpush1.msra.mxu0 0.0
        %1665 = vmatprep.subr.mxu0 0.0
        %1666 = vmatpush1.msra.mxu0 0.0
        %1667 = vmatprep.subr.mxu0 0.0
        %1668 = vmatpush1.msra.mxu0 0.0
        %1669 = vmatprep.mubr.f32.mxu0 0.0
        %1670 = vmatmul.mubr.f32.gmra.mrb[0].mxu0 %v1522
        %v1671 = vpop.f32.mrb[0].mxu0
        %v1672 = vadd.f32 %v1355, %v1671
        %v1673 = vpop.f32.mrb[0].mxu0
        %v1674 = vadd.f32 %v1357, %v1673
        %1675 = vmatprep.mubr.f32.mxu0 0.0
        %1676 = vmatmul.mubr.f32.gmra.mrb[0].mxu0 %v1525
        %v1677 = vpop.f32.mrb[0].mxu0
        %v1678 = vadd.f32 %v1361, %v1677
        %v1679 = vpop.f32.mrb[0].mxu0
        %v1680 = vadd.f32 %v1363, %v1679
        %1681 = vmatprep.mubr.f32.mxu0 0.0
        %1682 = vmatmul.mubr.f32.gmra.mrb[0].mxu0 %v1528
        %v1683 = vpop.f32.mrb[0].mxu0
        %v1684 = vadd.f32 %v1367, %v1683
        %v1685 = vpop.f32.mrb[0].mxu0
        %v1686 = vadd.f32 %v1369, %v1685
        %1687 = vmatprep.mubr.f32.mxu0 0.0
        %1688 = vmatmul.mubr.f32.gmra.mrb[0].mxu0 %v1531
        %v1689 = vpop.f32.mrb[0].mxu0
        %v1690 = vadd.f32 %v1373, %v1689
        %v1691 = vpop.f32.mrb[0].mxu0
        %v1692 = vadd.f32 %v1375, %v1691
        %1693 = vmatprep.mubr.f32.mxu0 0.0
        %1694 = vmatmul.mubr.f32.gmra.mrb[0].mxu0 %v1534
        %v1695 = vpop.f32.mrb[0].mxu0
        %v1696 = vadd.f32 %v1379, %v1695
        %v1697 = vpop.f32.mrb[0].mxu0
        %v1698 = vadd.f32 %v1381, %v1697
        %1699 = vmatprep.mubr.f32.mxu0 0.0
        %1700 = vmatmul.mubr.f32.gmra.mrb[0].mxu0 %v1537
        %v1701 = vpop.f32.mrb[0].mxu0
        %v1702 = vadd.f32 %v1385, %v1701
        %v1703 = vpop.f32.mrb[0].mxu0
        %v1704 = vadd.f32 %v1387, %v1703
        %1705 = vmatprep.mubr.f32.mxu0 0.0
        %1706 = vmatmul.mubr.f32.gmra.mrb[0].mxu0 %v1540
        %v1707 = vpop.f32.mrb[0].mxu0
        %v1708 = vadd.f32 %v1391, %v1707
        %v1709 = vpop.f32.mrb[0].mxu0
        %v1710 = vadd.f32 %v1393, %v1709
        %1711 = vmatprep.mubr.f32.mxu0 0.0
        %1712 = vmatmul.mubr.f32.gmra.mrb[0].mxu0 %v1543
        %v1713 = vpop.f32.mrb[0].mxu0
        %v1714 = vadd.f32 %v1397, %v1713
        %v1715 = vpop.f32.mrb[0].mxu0
        %v1716 = vadd.f32 %v1399, %v1715
        %1717 = vmatprep.mubr.f32.mxu0 0.0
        %1718 = vmatmul.mubr.f32.gmra.mrb[0].mxu0 %v1546
        %v1719 = vpop.f32.mrb[0].mxu0
        %v1720 = vadd.f32 %v1403, %v1719
        %v1721 = vpop.f32.mrb[0].mxu0
        %v1722 = vadd.f32 %v1405, %v1721
        %1723 = vmatprep.mubr.f32.mxu0 0.0
        %1724 = vmatmul.mubr.f32.gmra.mrb[0].mxu0 %v1549
        %v1725 = vpop.f32.mrb[0].mxu0
        %v1726 = vadd.f32 %v1409, %v1725
        %v1727 = vpop.f32.mrb[0].mxu0
        %v1728 = vadd.f32 %v1411, %v1727
        %1729 = vmatprep.mubr.f32.mxu0 0.0
        %1730 = vmatmul.mubr.f32.gmra.mrb[0].mxu0 %v1552
        %v1731 = vpop.f32.mrb[0].mxu0
        %v1732 = vadd.f32 %v1415, %v1731
        %v1733 = vpop.f32.mrb[0].mxu0
        %v1734 = vadd.f32 %v1417, %v1733
        %1735 = vmatprep.mubr.f32.mxu0 0.0
        %1736 = vmatmul.mubr.f32.gmra.mrb[0].mxu0 %v1555
        %v1737 = vpop.f32.mrb[0].mxu0
        %v1738 = vadd.f32 %v1421, %v1737
        %v1739 = vpop.f32.mrb[0].mxu0
        %v1740 = vadd.f32 %v1423, %v1739
        %1741 = vmatprep.mubr.f32.mxu0 0.0
        %1742 = vmatmul.mubr.f32.gmra.mrb[0].mxu0 %v1558
        %v1743 = vpop.f32.mrb[0].mxu0
        %v1744 = vadd.f32 %v1427, %v1743
        %v1745 = vpop.f32.mrb[0].mxu0
        %v1746 = vadd.f32 %v1429, %v1745
        %1747 = vmatprep.mubr.f32.mxu0 0.0
        %1748 = vmatmul.mubr.f32.gmra.mrb[0].mxu0 %v1561
        %v1749 = vpop.f32.mrb[0].mxu0
        %v1750 = vadd.f32 %v1433, %v1749
        %v1751 = vpop.f32.mrb[0].mxu0
        %v1752 = vadd.f32 %v1435, %v1751
        %1753 = vmatprep.mubr.f32.mxu0 0.0
        %1754 = vmatmul.mubr.f32.gmra.mrb[0].mxu0 %v1564
        %v1755 = vpop.f32.mrb[0].mxu0
        %v1756 = vadd.f32 %v1439, %v1755
        %v1757 = vpop.f32.mrb[0].mxu0
        %v1758 = vadd.f32 %v1441, %v1757
        %1759 = vmatprep.mubr.f32.mxu0 0.0
        %1760 = vmatmul.mubr.f32.gmra.mrb[0].mxu0 %v1567
        %v1761 = vpop.f32.mrb[0].mxu0
        %v1762 = vadd.f32 %v1445, %v1761
        %v1763 = vpop.f32.mrb[0].mxu0
        %v1764 = vadd.f32 %v1447, %v1763
        %1765 = vmatprep.mubr.f32.mxu0 0.0
        %1766 = vmatmul.mubr.f32.gmra.mrb[0].mxu0 %v1570
        %v1767 = vpop.f32.mrb[0].mxu0
        %v1768 = vadd.f32 %v1451, %v1767
        %v1769 = vpop.f32.mrb[0].mxu0
        %v1770 = vadd.f32 %v1453, %v1769
        %1771 = vmatprep.mubr.f32.mxu0 0.0
        %1772 = vmatmul.mubr.f32.gmra.mrb[0].mxu0 %v1573
        %v1773 = vpop.f32.mrb[0].mxu0
        %v1774 = vadd.f32 %v1457, %v1773
        %v1775 = vpop.f32.mrb[0].mxu0
        %v1776 = vadd.f32 %v1459, %v1775
        %1777 = vmatprep.mubr.f32.mxu0 0.0
        %1778 = vmatmul.mubr.f32.gmra.mrb[0].mxu0 %v1576
        %v1779 = vpop.f32.mrb[0].mxu0
        %v1780 = vadd.f32 %v1463, %v1779
        %v1781 = vpop.f32.mrb[0].mxu0
        %v1782 = vadd.f32 %v1465, %v1781
        %1783 = vmatprep.mubr.f32.mxu0 0.0
        %1784 = vmatmul.mubr.f32.gmra.mrb[0].mxu0 %v1579
        %v1785 = vpop.f32.mrb[0].mxu0
        %v1786 = vadd.f32 %v1469, %v1785
        %v1787 = vpop.f32.mrb[0].mxu0
        %v1788 = vadd.f32 %v1471, %v1787
        %1789 = vmatprep.mubr.f32.mxu0 0.0
        %1790 = vmatmul.mubr.f32.gmra.mrb[0].mxu0 %v1582
        %v1791 = vpop.f32.mrb[0].mxu0
        %v1792 = vadd.f32 %v1475, %v1791
        %v1793 = vpop.f32.mrb[0].mxu0
        %v1794 = vadd.f32 %v1477, %v1793
        %1795 = vmatprep.mubr.f32.mxu0 0.0
        %1796 = vmatmul.mubr.f32.gmra.mrb[0].mxu0 %v1585
        %v1797 = vpop.f32.mrb[0].mxu0
        %v1798 = vadd.f32 %v1481, %v1797
        %v1799 = vpop.f32.mrb[0].mxu0
        %v1800 = vadd.f32 %v1483, %v1799
        %1801 = vmatprep.mubr.f32.mxu0 0.0
        %1802 = vmatmul.mubr.f32.gmra.mrb[0].mxu0 %v1588
        %v1803 = vpop.f32.mrb[0].mxu0
        %v1804 = vadd.f32 %v1487, %v1803
        %v1805 = vpop.f32.mrb[0].mxu0
        %v1806 = vadd.f32 %v1489, %v1805
        %1807 = vmatprep.mubr.f32.mxu0 0.0
        %1808 = vmatmul.mubr.f32.gmra.mrb[0].mxu0 %v1591
        %v1809 = vpop.f32.mrb[0].mxu0
        %v1810 = vadd.f32 %v1493, %v1809
        %v1811 = vpop.f32.mrb[0].mxu0
        %v1812 = vadd.f32 %v1495, %v1811
        %1813 = vmatprep.mubr.f32.mxu0 0.0
        %1814 = vmatmul.mubr.f32.gmra.mrb[0].mxu0 %v1594
        %v1815 = vpop.f32.mrb[0].mxu0
        %v1816 = vadd.f32 %v1499, %v1815
        %v1817 = vpop.f32.mrb[0].mxu0
        %v1818 = vadd.f32 %v1501, %v1817
        %1819 = vmatprep.mubr.f32.mxu0 0.0
        %1820 = vmatmul.mubr.f32.gmra.mrb[0].mxu0 %v1597
        %v1821 = vpop.f32.mrb[0].mxu0
        %v1822 = vadd.f32 %v1505, %v1821
        %v1823 = vpop.f32.mrb[0].mxu0
        %v1824 = vadd.f32 %v1507, %v1823
        %1825 = vmatprep.mubr.f32.mxu0 0.0
        %1826 = vmatmul.mubr.f32.gmra.mrb[0].mxu0 %v1600
        %v1827 = vpop.f32.mrb[0].mxu0
        %v1828 = vadd.f32 %v1511, %v1827
        %v1829 = vpop.f32.mrb[0].mxu0
        %v1830 = vadd.f32 %v1513, %v1829
        %1831 = vmatprep.mubr.f32.mxu0 0.0
        %1832 = vmatmul.mubr.f32.gmra.mrb[0].mxu0 %v1603
        %v1833 = vpop.f32.mrb[0].mxu0
        %v1834 = vadd.f32 %v1517, %v1833
        %v1835 = vpop.f32.mrb[0].mxu0
        %v1836 = vadd.f32 %v1519, %v1835
        %1837 = vdwg.mxu0
        %v1838 = vld [vmem:[%s10] sm:$0x3]
        %v1840 = vlaneseq
        %v1841 = vshrl.u32 %v1840, 7
        %v1842 = vsub.s32 0, %v1841
        %v1843 = vrot.slane %v1838, %v1842
        %v1844 = vlaneseq
        %v1845 = vshrl.u32 %v1844, 7
        %v1846 = vsub.s32 1, %v1845
        %v1847 = vrot.slane %v1838, %v1846
        %v1850 = vadd.f32 %v1672, %v1843
        %v1851 = vadd.f32 %v1674, %v1847
        %v1852 = vadd.f32 %v1678, %v1843
        %v1853 = vadd.f32 %v1680, %v1847
        %v1854 = vadd.f32 %v1684, %v1843
        %v1855 = vadd.f32 %v1686, %v1847
        %v1856 = vadd.f32 %v1690, %v1843
        %v1857 = vadd.f32 %v1692, %v1847
        %v1858 = vadd.f32 %v1696, %v1843
        %v1859 = vadd.f32 %v1698, %v1847
        %v1860 = vadd.f32 %v1702, %v1843
        %v1861 = vadd.f32 %v1704, %v1847
        %v1862 = vadd.f32 %v1708, %v1843
        %v1863 = vadd.f32 %v1710, %v1847
        %v1864 = vadd.f32 %v1714, %v1843
        %v1865 = vadd.f32 %v1716, %v1847
        %v1866 = vadd.f32 %v1720, %v1843
        %v1867 = vadd.f32 %v1722, %v1847
        %v1868 = vadd.f32 %v1726, %v1843
        %v1869 = vadd.f32 %v1728, %v1847
        %v1870 = vadd.f32 %v1732, %v1843
        %v1871 = vadd.f32 %v1734, %v1847
        %v1872 = vadd.f32 %v1738, %v1843
        %v1873 = vadd.f32 %v1740, %v1847
        %v1874 = vadd.f32 %v1744, %v1843
        %v1875 = vadd.f32 %v1746, %v1847
        %v1876 = vadd.f32 %v1750, %v1843
        %v1877 = vadd.f32 %v1752, %v1847
        %v1878 = vadd.f32 %v1756, %v1843
        %v1879 = vadd.f32 %v1758, %v1847
        %v1880 = vadd.f32 %v1762, %v1843
        %v1881 = vadd.f32 %v1764, %v1847
        %v1882 = vadd.f32 %v1768, %v1843
        %v1883 = vadd.f32 %v1770, %v1847
        %v1884 = vadd.f32 %v1774, %v1843
        %v1885 = vadd.f32 %v1776, %v1847
        %v1886 = vadd.f32 %v1780, %v1843
        %v1887 = vadd.f32 %v1782, %v1847
        %v1888 = vadd.f32 %v1786, %v1843
        %v1889 = vadd.f32 %v1788, %v1847
        %v1890 = vadd.f32 %v1792, %v1843
        %v1891 = vadd.f32 %v1794, %v1847
        %v1892 = vadd.f32 %v1798, %v1843
        %v1893 = vadd.f32 %v1800, %v1847
        %v1894 = vadd.f32 %v1804, %v1843
        %v1895 = vadd.f32 %v1806, %v1847
        %v1896 = vadd.f32 %v1810, %v1843
        %v1897 = vadd.f32 %v1812, %v1847
        %v1898 = vadd.f32 %v1816, %v1843
        %v1899 = vadd.f32 %v1818, %v1847
        %v1900 = vadd.f32 %v1822, %v1843
        %v1901 = vadd.f32 %v1824, %v1847
        %v1902 = vadd.f32 %v1828, %v1843
        %v1903 = vadd.f32 %v1830, %v1847
        %v1904 = vadd.f32 %v1834, %v1843
        %v1905 = vadd.f32 %v1836, %v1847
        %vm1906 = vcmp.gt.f32.partialorder %v1850, 0.0
        %vm1907 = vcmp.gt.f32.partialorder %v1851, 0.0
        %vm1908 = vcmp.gt.f32.partialorder %v1852, 0.0
        %vm1909 = vcmp.gt.f32.partialorder %v1853, 0.0
        %vm1910 = vcmp.gt.f32.partialorder %v1854, 0.0
        %vm1911 = vcmp.gt.f32.partialorder %v1855, 0.0
        %vm1912 = vcmp.gt.f32.partialorder %v1856, 0.0
        %vm1913 = vcmp.gt.f32.partialorder %v1857, 0.0
        %vm1914 = vcmp.gt.f32.partialorder %v1858, 0.0
        %vm1915 = vcmp.gt.f32.partialorder %v1859, 0.0
        %vm1916 = vcmp.gt.f32.partialorder %v1860, 0.0
        %vm1917 = vcmp.gt.f32.partialorder %v1861, 0.0
        %vm1918 = vcmp.gt.f32.partialorder %v1862, 0.0
        %vm1919 = vcmp.gt.f32.partialorder %v1863, 0.0
        %vm1920 = vcmp.gt.f32.partialorder %v1864, 0.0
        %vm1921 = vcmp.gt.f32.partialorder %v1865, 0.0
        %vm1922 = vcmp.gt.f32.partialorder %v1866, 0.0
        %vm1923 = vcmp.gt.f32.partialorder %v1867, 0.0
        %vm1924 = vcmp.gt.f32.partialorder %v1868, 0.0
        %vm1925 = vcmp.gt.f32.partialorder %v1869, 0.0
        %vm1926 = vcmp.gt.f32.partialorder %v1870, 0.0
        %vm1927 = vcmp.gt.f32.partialorder %v1871, 0.0
        %vm1928 = vcmp.gt.f32.partialorder %v1872, 0.0
        %vm1929 = vcmp.gt.f32.partialorder %v1873, 0.0
        %vm1930 = vcmp.gt.f32.partialorder %v1874, 0.0
        %vm1931 = vcmp.gt.f32.partialorder %v1875, 0.0
        %vm1932 = vcmp.gt.f32.partialorder %v1876, 0.0
        %vm1933 = vcmp.gt.f32.partialorder %v1877, 0.0
        %vm1934 = vcmp.gt.f32.partialorder %v1878, 0.0
        %vm1935 = vcmp.gt.f32.partialorder %v1879, 0.0
        %vm1936 = vcmp.gt.f32.partialorder %v1880, 0.0
        %vm1937 = vcmp.gt.f32.partialorder %v1881, 0.0
        %vm1938 = vcmp.gt.f32.partialorder %v1882, 0.0
        %vm1939 = vcmp.gt.f32.partialorder %v1883, 0.0
        %vm1940 = vcmp.gt.f32.partialorder %v1884, 0.0
        %vm1941 = vcmp.gt.f32.partialorder %v1885, 0.0
        %vm1942 = vcmp.gt.f32.partialorder %v1886, 0.0
        %vm1943 = vcmp.gt.f32.partialorder %v1887, 0.0
        %vm1944 = vcmp.gt.f32.partialorder %v1888, 0.0
        %vm1945 = vcmp.gt.f32.partialorder %v1889, 0.0
        %vm1946 = vcmp.gt.f32.partialorder %v1890, 0.0
        %vm1947 = vcmp.gt.f32.partialorder %v1891, 0.0
        %vm1948 = vcmp.gt.f32.partialorder %v1892, 0.0
        %vm1949 = vcmp.gt.f32.partialorder %v1893, 0.0
        %vm1950 = vcmp.gt.f32.partialorder %v1894, 0.0
        %vm1951 = vcmp.gt.f32.partialorder %v1895, 0.0
        %vm1952 = vcmp.gt.f32.partialorder %v1896, 0.0
        %vm1953 = vcmp.gt.f32.partialorder %v1897, 0.0
        %vm1954 = vcmp.gt.f32.partialorder %v1898, 0.0
        %vm1955 = vcmp.gt.f32.partialorder %v1899, 0.0
        %vm1956 = vcmp.gt.f32.partialorder %v1900, 0.0
        %vm1957 = vcmp.gt.f32.partialorder %v1901, 0.0
        %vm1958 = vcmp.gt.f32.partialorder %v1902, 0.0
        %vm1959 = vcmp.gt.f32.partialorder %v1903, 0.0
        %vm1960 = vcmp.gt.f32.partialorder %v1904, 0.0
        %vm1961 = vcmp.gt.f32.partialorder %v1905, 0.0
        %v1962 = vmin.f32 %v1850, 0.0
        %v1963 = vmin.f32 %v1851, 0.0
        %v1964 = vmin.f32 %v1852, 0.0
        %v1965 = vmin.f32 %v1853, 0.0
        %v1966 = vmin.f32 %v1854, 0.0
        %v1967 = vmin.f32 %v1855, 0.0
        %v1968 = vmin.f32 %v1856, 0.0
        %v1969 = vmin.f32 %v1857, 0.0
        %v1970 = vmin.f32 %v1858, 0.0
        %v1971 = vmin.f32 %v1859, 0.0
        %v1972 = vmin.f32 %v1860, 0.0
        %v1973 = vmin.f32 %v1861, 0.0
        %v1974 = vmin.f32 %v1862, 0.0
        %v1975 = vmin.f32 %v1863, 0.0
        %v1976 = vmin.f32 %v1864, 0.0
        %v1977 = vmin.f32 %v1865, 0.0
        %v1978 = vmin.f32 %v1866, 0.0
        %v1979 = vmin.f32 %v1867, 0.0
        %v1980 = vmin.f32 %v1868, 0.0
        %v1981 = vmin.f32 %v1869, 0.0
        %v1982 = vmin.f32 %v1870, 0.0
        %v1983 = vmin.f32 %v1871, 0.0
        %v1984 = vmin.f32 %v1872, 0.0
        %v1985 = vmin.f32 %v1873, 0.0
        %v1986 = vmin.f32 %v1874, 0.0
        %v1987 = vmin.f32 %v1875, 0.0
        %v1988 = vmin.f32 %v1876, 0.0
        %v1989 = vmin.f32 %v1877, 0.0
        %v1990 = vmin.f32 %v1878, 0.0
        %v1991 = vmin.f32 %v1879, 0.0
        %v1992 = vmin.f32 %v1880, 0.0
        %v1993 = vmin.f32 %v1881, 0.0
        %v1994 = vmin.f32 %v1882, 0.0
        %v1995 = vmin.f32 %v1883, 0.0
        %v1996 = vmin.f32 %v1884, 0.0
        %v1997 = vmin.f32 %v1885, 0.0
        %v1998 = vmin.f32 %v1886, 0.0
        %v1999 = vmin.f32 %v1887, 0.0
        %v2000 = vmin.f32 %v1888, 0.0
        %v2001 = vmin.f32 %v1889, 0.0
        %v2002 = vmin.f32 %v1890, 0.0
        %v2003 = vmin.f32 %v1891, 0.0
        %v2004 = vmin.f32 %v1892, 0.0
        %v2005 = vmin.f32 %v1893, 0.0
        %v2006 = vmin.f32 %v1894, 0.0
        %v2007 = vmin.f32 %v1895, 0.0
        %v2008 = vmin.f32 %v1896, 0.0
        %v2009 = vmin.f32 %v1897, 0.0
        %v2010 = vmin.f32 %v1898, 0.0
        %v2011 = vmin.f32 %v1899, 0.0
        %v2012 = vmin.f32 %v1900, 0.0
        %v2013 = vmin.f32 %v1901, 0.0
        %v2014 = vmin.f32 %v1902, 0.0
        %v2015 = vmin.f32 %v1903, 0.0
        %v2016 = vmin.f32 %v1904, 0.0
        %v2017 = vmin.f32 %v1905, 0.0
        %v2018 = vmul.f32 %v1962, 1.442695
        %v2019 = vpow.pop %v2018
        %v2020 = vmul.f32 %v1963, 1.442695
        %v2021 = vpow.pop %v2020
        %v2022 = vmul.f32 %v1964, 1.442695
        %v2023 = vpow.pop %v2022
        %v2024 = vmul.f32 %v1965, 1.442695
        %v2025 = vpow.pop %v2024
        %v2026 = vmul.f32 %v1966, 1.442695
        %v2027 = vpow.pop %v2026
        %v2028 = vmul.f32 %v1967, 1.442695
        %v2029 = vpow.pop %v2028
        %v2030 = vmul.f32 %v1968, 1.442695
        %v2031 = vpow.pop %v2030
        %v2032 = vmul.f32 %v1969, 1.442695
        %v2033 = vpow.pop %v2032
        %v2034 = vmul.f32 %v1970, 1.442695
        %v2035 = vpow.pop %v2034
        %v2036 = vmul.f32 %v1971, 1.442695
        %v2037 = vpow.pop %v2036
        %v2038 = vmul.f32 %v1972, 1.442695
        %v2039 = vpow.pop %v2038
        %v2040 = vmul.f32 %v1973, 1.442695
        %v2041 = vpow.pop %v2040
        %v2042 = vmul.f32 %v1974, 1.442695
        %v2043 = vpow.pop %v2042
        %v2044 = vmul.f32 %v1975, 1.442695
        %v2045 = vpow.pop %v2044
        %v2046 = vmul.f32 %v1976, 1.442695
        %v2047 = vpow.pop %v2046
        %v2048 = vmul.f32 %v1977, 1.442695
        %v2049 = vpow.pop %v2048
        %v2050 = vmul.f32 %v1978, 1.442695
        %v2051 = vpow.pop %v2050
        %v2052 = vmul.f32 %v1979, 1.442695
        %v2053 = vpow.pop %v2052
        %v2054 = vmul.f32 %v1980, 1.442695
        %v2055 = vpow.pop %v2054
        %v2056 = vmul.f32 %v1981, 1.442695
        %v2057 = vpow.pop %v2056
        %v2058 = vmul.f32 %v1982, 1.442695
        %v2059 = vpow.pop %v2058
        %v2060 = vmul.f32 %v1983, 1.442695
        %v2061 = vpow.pop %v2060
        %v2062 = vmul.f32 %v1984, 1.442695
        %v2063 = vpow.pop %v2062
        %v2064 = vmul.f32 %v1985, 1.442695
        %v2065 = vpow.pop %v2064
        %v2066 = vmul.f32 %v1986, 1.442695
        %v2067 = vpow.pop %v2066
        %v2068 = vmul.f32 %v1987, 1.442695
        %v2069 = vpow.pop %v2068
        %v2070 = vmul.f32 %v1988, 1.442695
        %v2071 = vpow.pop %v2070
        %v2072 = vmul.f32 %v1989, 1.442695
        %v2073 = vpow.pop %v2072
        %v2074 = vmul.f32 %v1990, 1.442695
        %v2075 = vpow.pop %v2074
        %v2076 = vmul.f32 %v1991, 1.442695
        %v2077 = vpow.pop %v2076
        %v2078 = vmul.f32 %v1992, 1.442695
        %v2079 = vpow.pop %v2078
        %v2080 = vmul.f32 %v1993, 1.442695
        %v2081 = vpow.pop %v2080
        %v2082 = vmul.f32 %v1994, 1.442695
        %v2083 = vpow.pop %v2082
        %v2084 = vmul.f32 %v1995, 1.442695
        %v2085 = vpow.pop %v2084
        %v2086 = vmul.f32 %v1996, 1.442695
        %v2087 = vpow.pop %v2086
        %v2088 = vmul.f32 %v1997, 1.442695
        %v2089 = vpow.pop %v2088
        %v2090 = vmul.f32 %v1998, 1.442695
        %v2091 = vpow.pop %v2090
        %v2092 = vmul.f32 %v1999, 1.442695
        %v2093 = vpow.pop %v2092
        %v2094 = vmul.f32 %v2000, 1.442695
        %v2095 = vpow.pop %v2094
        %v2096 = vmul.f32 %v2001, 1.442695
        %v2097 = vpow.pop %v2096
        %v2098 = vmul.f32 %v2002, 1.442695
        %v2099 = vpow.pop %v2098
        %v2100 = vmul.f32 %v2003, 1.442695
        %v2101 = vpow.pop %v2100
        %v2102 = vmul.f32 %v2004, 1.442695
        %v2103 = vpow.pop %v2102
        %v2104 = vmul.f32 %v2005, 1.442695
        %v2105 = vpow.pop %v2104
        %v2106 = vmul.f32 %v2006, 1.442695
        %v2107 = vpow.pop %v2106
        %v2108 = vmul.f32 %v2007, 1.442695
        %v2109 = vpow.pop %v2108
        %v2110 = vmul.f32 %v2008, 1.442695
        %v2111 = vpow.pop %v2110
        %v2112 = vmul.f32 %v2009, 1.442695
        %v2113 = vpow.pop %v2112
        %v2114 = vmul.f32 %v2010, 1.442695
        %v2115 = vpow.pop %v2114
        %v2116 = vmul.f32 %v2011, 1.442695
        %v2117 = vpow.pop %v2116
        %v2118 = vmul.f32 %v2012, 1.442695
        %v2119 = vpow.pop %v2118
        %v2120 = vmul.f32 %v2013, 1.442695
        %v2121 = vpow.pop %v2120
        %v2122 = vmul.f32 %v2014, 1.442695
        %v2123 = vpow.pop %v2122
        %v2124 = vmul.f32 %v2015, 1.442695
        %v2125 = vpow.pop %v2124
        %v2126 = vmul.f32 %v2016, 1.442695
        %v2127 = vpow.pop %v2126
        %v2128 = vmul.f32 %v2017, 1.442695
        %v2129 = vpow.pop %v2128
        %v2130 = vsub.f32 %v2019, 1.0
        %v2131 = vsub.f32 %v2021, 1.0
        %v2132 = vsub.f32 %v2023, 1.0
        %v2133 = vsub.f32 %v2025, 1.0
        %v2134 = vsub.f32 %v2027, 1.0
        %v2135 = vsub.f32 %v2029, 1.0
        %v2136 = vsub.f32 %v2031, 1.0
        %v2137 = vsub.f32 %v2033, 1.0
        %v2138 = vsub.f32 %v2035, 1.0
        %v2139 = vsub.f32 %v2037, 1.0
        %v2140 = vsub.f32 %v2039, 1.0
        %v2141 = vsub.f32 %v2041, 1.0
        %v2142 = vsub.f32 %v2043, 1.0
        %v2143 = vsub.f32 %v2045, 1.0
        %v2144 = vsub.f32 %v2047, 1.0
        %v2145 = vsub.f32 %v2049, 1.0
        %v2146 = vsub.f32 %v2051, 1.0
        %v2147 = vsub.f32 %v2053, 1.0
        %v2148 = vsub.f32 %v2055, 1.0
        %v2149 = vsub.f32 %v2057, 1.0
        %v2150 = vsub.f32 %v2059, 1.0
        %v2151 = vsub.f32 %v2061, 1.0
        %v2152 = vsub.f32 %v2063, 1.0
        %v2153 = vsub.f32 %v2065, 1.0
        %v2154 = vsub.f32 %v2067, 1.0
        %v2155 = vsub.f32 %v2069, 1.0
        %v2156 = vsub.f32 %v2071, 1.0
        %v2157 = vsub.f32 %v2073, 1.0
        %v2158 = vsub.f32 %v2075, 1.0
        %v2159 = vsub.f32 %v2077, 1.0
        %v2160 = vsub.f32 %v2079, 1.0
        %v2161 = vsub.f32 %v2081, 1.0
        %v2162 = vsub.f32 %v2083, 1.0
        %v2163 = vsub.f32 %v2085, 1.0
        %v2164 = vsub.f32 %v2087, 1.0
        %v2165 = vsub.f32 %v2089, 1.0
        %v2166 = vsub.f32 %v2091, 1.0
        %v2167 = vsub.f32 %v2093, 1.0
        %v2168 = vsub.f32 %v2095, 1.0
        %v2169 = vsub.f32 %v2097, 1.0
        %v2170 = vsub.f32 %v2099, 1.0
        %v2171 = vsub.f32 %v2101, 1.0
        %v2172 = vsub.f32 %v2103, 1.0
        %v2173 = vsub.f32 %v2105, 1.0
        %v2174 = vsub.f32 %v2107, 1.0
        %v2175 = vsub.f32 %v2109, 1.0
        %v2176 = vsub.f32 %v2111, 1.0
        %v2177 = vsub.f32 %v2113, 1.0
        %v2178 = vsub.f32 %v2115, 1.0
        %v2179 = vsub.f32 %v2117, 1.0
        %v2180 = vsub.f32 %v2119, 1.0
        %v2181 = vsub.f32 %v2121, 1.0
        %v2182 = vsub.f32 %v2123, 1.0
        %v2183 = vsub.f32 %v2125, 1.0
        %v2184 = vsub.f32 %v2127, 1.0
        %v2185 = vsub.f32 %v2129, 1.0
        %v2186 = vsel %vm1906, %v1850, %v2130
        %v2187 = vsel %vm1907, %v1851, %v2131
        %v2188 = vsel %vm1908, %v1852, %v2132
        %v2189 = vsel %vm1909, %v1853, %v2133
        %v2190 = vsel %vm1910, %v1854, %v2134
        %v2191 = vsel %vm1911, %v1855, %v2135
        %v2192 = vsel %vm1912, %v1856, %v2136
        %v2193 = vsel %vm1913, %v1857, %v2137
        %v2194 = vsel %vm1914, %v1858, %v2138
        %v2195 = vsel %vm1915, %v1859, %v2139
        %v2196 = vsel %vm1916, %v1860, %v2140
        %v2197 = vsel %vm1917, %v1861, %v2141
        %v2198 = vsel %vm1918, %v1862, %v2142
        %v2199 = vsel %vm1919, %v1863, %v2143
        %v2200 = vsel %vm1920, %v1864, %v2144
        %v2201 = vsel %vm1921, %v1865, %v2145
        %v2202 = vsel %vm1922, %v1866, %v2146
        %v2203 = vsel %vm1923, %v1867, %v2147
        %v2204 = vsel %vm1924, %v1868, %v2148
        %v2205 = vsel %vm1925, %v1869, %v2149
        %v2206 = vsel %vm1926, %v1870, %v2150
        %v2207 = vsel %vm1927, %v1871, %v2151
        %v2208 = vsel %vm1928, %v1872, %v2152
        %v2209 = vsel %vm1929, %v1873, %v2153
        %v2210 = vsel %vm1930, %v1874, %v2154
        %v2211 = vsel %vm1931, %v1875, %v2155
        %v2212 = vsel %vm1932, %v1876, %v2156
        %v2213 = vsel %vm1933, %v1877, %v2157
        %v2214 = vsel %vm1934, %v1878, %v2158
        %v2215 = vsel %vm1935, %v1879, %v2159
        %v2216 = vsel %vm1936, %v1880, %v2160
        %v2217 = vsel %vm1937, %v1881, %v2161
        %v2218 = vsel %vm1938, %v1882, %v2162
        %v2219 = vsel %vm1939, %v1883, %v2163
        %v2220 = vsel %vm1940, %v1884, %v2164
        %v2221 = vsel %vm1941, %v1885, %v2165
        %v2222 = vsel %vm1942, %v1886, %v2166
        %v2223 = vsel %vm1943, %v1887, %v2167
        %v2224 = vsel %vm1944, %v1888, %v2168
        %v2225 = vsel %vm1945, %v1889, %v2169
        %v2226 = vsel %vm1946, %v1890, %v2170
        %v2227 = vsel %vm1947, %v1891, %v2171
        %v2228 = vsel %vm1948, %v1892, %v2172
        %v2229 = vsel %vm1949, %v1893, %v2173
        %v2230 = vsel %vm1950, %v1894, %v2174
        %v2231 = vsel %vm1951, %v1895, %v2175
        %v2232 = vsel %vm1952, %v1896, %v2176
        %v2233 = vsel %vm1953, %v1897, %v2177
        %v2234 = vsel %vm1954, %v1898, %v2178
        %v2235 = vsel %vm1955, %v1899, %v2179
        %v2236 = vsel %vm1956, %v1900, %v2180
        %v2237 = vsel %vm1957, %v1901, %v2181
        %v2238 = vsel %vm1958, %v1902, %v2182
        %v2239 = vsel %vm1959, %v1903, %v2183
        %v2240 = vsel %vm1960, %v1904, %v2184
        %v2241 = vsel %vm1961, %v1905, %v2185
        %v2242 = vld [vmem:[%s11] sm:$0xff]
        %v2243 = vld [vmem:[%s11 + $0x8] sm:$0xff]
        %v2244 = vld [vmem:[%s11 + $0x10] sm:$0xff]
        %v2245 = vld [vmem:[%s11 + $0x18] sm:$0xff]
        %v2246 = vld [vmem:[%s11 + $0x20] sm:$0xff]
        %v2247 = vld [vmem:[%s11 + $0x28] sm:$0xff]
        %v2248 = vld [vmem:[%s11 + $0x30] sm:$0xff]
        %v2249 = vld [vmem:[%s11 + $0x38] sm:$0xff]
        %v2250 = vld [vmem:[%s11 + $0x40] sm:$0xff]
        %v2251 = vld [vmem:[%s11 + $0x48] sm:$0xff]
        %v2252 = vld [vmem:[%s11 + $0x50] sm:$0xff]
        %v2253 = vld [vmem:[%s11 + $0x58] sm:$0xff]
        %v2254 = vld [vmem:[%s11 + $0x60] sm:$0xff]
        %v2255 = vld [vmem:[%s11 + $0x68] sm:$0xff]
        %v2256 = vld [vmem:[%s11 + $0x70] sm:$0xff]
        %v2257 = vld [vmem:[%s11 + $0x78] sm:$0xff]
        %v2258 = vld [vmem:[%s11 + $0x80] sm:$0xff]
        %v2259 = vld [vmem:[%s11 + $0x88] sm:$0xff]
        %v2260 = vld [vmem:[%s11 + $0x90] sm:$0xff]
        %v2261 = vld [vmem:[%s11 + $0x98] sm:$0xff]
        %v2262 = vld [vmem:[%s11 + $0xa0] sm:$0xff]
        %v2263 = vld [vmem:[%s11 + $0xa8] sm:$0xff]
        %v2264 = vld [vmem:[%s11 + $0xb0] sm:$0xff]
        %v2265 = vld [vmem:[%s11 + $0xb8] sm:$0xff]
        %v2266 = vld [vmem:[%s11 + $0xc0] sm:$0xff]
        %v2267 = vld [vmem:[%s11 + $0xc8] sm:$0xff]
        %v2268 = vld [vmem:[%s11 + $0xd0] sm:$0xff]
        %v2269 = vld [vmem:[%s11 + $0xd8] sm:$0xff]
        %v2270 = vld [vmem:[%s11 + $0xe0] sm:$0xff]
        %v2271 = vld [vmem:[%s11 + $0xe8] sm:$0xff]
        %v2272 = vld [vmem:[%s11 + $0xf0] sm:$0xff]
        %v2273 = vld [vmem:[%s11 + $0xf8] sm:$0xff]
        %v2274 = vld [vmem:[%s12] sm:$0x1]
        %v2276 = vlaneseq
        %v2277 = vshrl.u32 %v2276, 7
        %v2278 = vsub.s32 0, %v2277
        %v2279 = vrot.slane %v2274, %v2278
        %2281 = vmatprep.subr.mxu0 0.0
        %2282 = vmatpush1.msra.mxu0 %v2242
        %2283 = vmatprep.subr.mxu0 0.0
        %2284 = vmatpush1.msra.mxu0 %v2243
        %2285 = vmatprep.subr.mxu0 0.0
        %2286 = vmatpush1.msra.mxu0 %v2244
        %2287 = vmatprep.subr.mxu0 0.0
        %2288 = vmatpush1.msra.mxu0 %v2245
        %2289 = vmatprep.subr.mxu0 0.0
        %2290 = vmatpush1.msra.mxu0 %v2246
        %2291 = vmatprep.subr.mxu0 0.0
        %2292 = vmatpush1.msra.mxu0 %v2247
        %2293 = vmatprep.subr.mxu0 0.0
        %2294 = vmatpush1.msra.mxu0 %v2248
        %2295 = vmatprep.subr.mxu0 0.0
        %2296 = vmatpush1.msra.mxu0 %v2249
        %2297 = vmatprep.subr.mxu0 0.0
        %2298 = vmatpush1.msra.mxu0 %v2250
        %2299 = vmatprep.subr.mxu0 0.0
        %2300 = vmatpush1.msra.mxu0 %v2251
        %2301 = vmatprep.subr.mxu0 0.0
        %2302 = vmatpush1.msra.mxu0 %v2252
        %2303 = vmatprep.subr.mxu0 0.0
        %2304 = vmatpush1.msra.mxu0 %v2253
        %2305 = vmatprep.subr.mxu0 0.0
        %2306 = vmatpush1.msra.mxu0 %v2254
        %2307 = vmatprep.subr.mxu0 0.0
        %2308 = vmatpush1.msra.mxu0 %v2255
        %2309 = vmatprep.subr.mxu0 0.0
        %2310 = vmatpush1.msra.mxu0 %v2256
        %2311 = vmatprep.subr.mxu0 0.0
        %2312 = vmatpush1.msra.mxu0 %v2257
        %2313 = vmatprep.subr.mxu0 0.0
        %2314 = vmatpush1.msra.mxu0 %v2258
        %2315 = vmatprep.subr.mxu0 0.0
        %2316 = vmatpush1.msra.mxu0 %v2259
        %2317 = vmatprep.subr.mxu0 0.0
        %2318 = vmatpush1.msra.mxu0 %v2260
        %2319 = vmatprep.subr.mxu0 0.0
        %2320 = vmatpush1.msra.mxu0 %v2261
        %2321 = vmatprep.subr.mxu0 0.0
        %2322 = vmatpush1.msra.mxu0 %v2262
        %2323 = vmatprep.subr.mxu0 0.0
        %2324 = vmatpush1.msra.mxu0 %v2263
        %2325 = vmatprep.subr.mxu0 0.0
        %2326 = vmatpush1.msra.mxu0 %v2264
        %2327 = vmatprep.subr.mxu0 0.0
        %2328 = vmatpush1.msra.mxu0 %v2265
        %2329 = vmatprep.subr.mxu0 0.0
        %2330 = vmatpush1.msra.mxu0 %v2266
        %2331 = vmatprep.subr.mxu0 0.0
        %2332 = vmatpush1.msra.mxu0 %v2267
        %2333 = vmatprep.subr.mxu0 0.0
        %2334 = vmatpush1.msra.mxu0 %v2268
        %2335 = vmatprep.subr.mxu0 0.0
        %2336 = vmatpush1.msra.mxu0 %v2269
        %2337 = vmatprep.subr.mxu0 0.0
        %2338 = vmatpush1.msra.mxu0 %v2270
        %2339 = vmatprep.subr.mxu0 0.0
        %2340 = vmatpush1.msra.mxu0 %v2271
        %2341 = vmatprep.subr.mxu0 0.0
        %2342 = vmatpush1.msra.mxu0 %v2272
        %2343 = vmatprep.subr.mxu0 0.0
        %2344 = vmatpush1.msra.mxu0 %v2273
        %2345 = vmatprep.mubr.f32.mxu0 %v2187
        %2346 = vmatmul.mubr.f32.gmra.mrb[0].mxu0 %v2186
        %v2347 = vpop.f32.mrb[0].mxu0
        %v2348 = vadd.f32 %v2279, %v2347
        %v2349 = vpop.f32.mrb[0].mxu0
        %2350 = vmatprep.mubr.f32.mxu0 %v2189
        %2351 = vmatmul.mubr.f32.gmra.mrb[0].mxu0 %v2188
        %v2352 = vpop.f32.mrb[0].mxu0
        %v2353 = vadd.f32 %v2279, %v2352
        %v2354 = vpop.f32.mrb[0].mxu0
        %2355 = vmatprep.mubr.f32.mxu0 %v2191
        %2356 = vmatmul.mubr.f32.gmra.mrb[0].mxu0 %v2190
        %v2357 = vpop.f32.mrb[0].mxu0
        %v2358 = vadd.f32 %v2279, %v2357
        %v2359 = vpop.f32.mrb[0].mxu0
        %2360 = vmatprep.mubr.f32.mxu0 %v2193
        %2361 = vmatmul.mubr.f32.gmra.mrb[0].mxu0 %v2192
        %v2362 = vpop.f32.mrb[0].mxu0
        %v2363 = vadd.f32 %v2279, %v2362
        %v2364 = vpop.f32.mrb[0].mxu0
        %2365 = vmatprep.mubr.f32.mxu0 %v2195
        %2366 = vmatmul.mubr.f32.gmra.mrb[0].mxu0 %v2194
        %v2367 = vpop.f32.mrb[0].mxu0
        %v2368 = vadd.f32 %v2279, %v2367
        %v2369 = vpop.f32.mrb[0].mxu0
        %2370 = vmatprep.mubr.f32.mxu0 %v2197
        %2371 = vmatmul.mubr.f32.gmra.mrb[0].mxu0 %v2196
        %v2372 = vpop.f32.mrb[0].mxu0
        %v2373 = vadd.f32 %v2279, %v2372
        %v2374 = vpop.f32.mrb[0].mxu0
        %2375 = vmatprep.mubr.f32.mxu0 %v2199
        %2376 = vmatmul.mubr.f32.gmra.mrb[0].mxu0 %v2198
        %v2377 = vpop.f32.mrb[0].mxu0
        %v2378 = vadd.f32 %v2279, %v2377
        %v2379 = vpop.f32.mrb[0].mxu0
        %2380 = vmatprep.mubr.f32.mxu0 %v2201
        %2381 = vmatmul.mubr.f32.gmra.mrb[0].mxu0 %v2200
        %v2382 = vpop.f32.mrb[0].mxu0
        %v2383 = vadd.f32 %v2279, %v2382
        %v2384 = vpop.f32.mrb[0].mxu0
        %2385 = vmatprep.mubr.f32.mxu0 %v2203
        %2386 = vmatmul.mubr.f32.gmra.mrb[0].mxu0 %v2202
        %v2387 = vpop.f32.mrb[0].mxu0
        %v2388 = vadd.f32 %v2279, %v2387
        %v2389 = vpop.f32.mrb[0].mxu0
        %2390 = vmatprep.mubr.f32.mxu0 %v2205
        %2391 = vmatmul.mubr.f32.gmra.mrb[0].mxu0 %v2204
        %v2392 = vpop.f32.mrb[0].mxu0
        %v2393 = vadd.f32 %v2279, %v2392
        %v2394 = vpop.f32.mrb[0].mxu0
        %2395 = vmatprep.mubr.f32.mxu0 %v2207
        %2396 = vmatmul.mubr.f32.gmra.mrb[0].mxu0 %v2206
        %v2397 = vpop.f32.mrb[0].mxu0
        %v2398 = vadd.f32 %v2279, %v2397
        %v2399 = vpop.f32.mrb[0].mxu0
        %2400 = vmatprep.mubr.f32.mxu0 %v2209
        %2401 = vmatmul.mubr.f32.gmra.mrb[0].mxu0 %v2208
        %v2402 = vpop.f32.mrb[0].mxu0
        %v2403 = vadd.f32 %v2279, %v2402
        %v2404 = vpop.f32.mrb[0].mxu0
        %2405 = vmatprep.mubr.f32.mxu0 %v2211
        %2406 = vmatmul.mubr.f32.gmra.mrb[0].mxu0 %v2210
        %v2407 = vpop.f32.mrb[0].mxu0
        %v2408 = vadd.f32 %v2279, %v2407
        %v2409 = vpop.f32.mrb[0].mxu0
        %2410 = vmatprep.mubr.f32.mxu0 %v2213
        %2411 = vmatmul.mubr.f32.gmra.mrb[0].mxu0 %v2212
        %v2412 = vpop.f32.mrb[0].mxu0
        %v2413 = vadd.f32 %v2279, %v2412
        %v2414 = vpop.f32.mrb[0].mxu0
        %2415 = vmatprep.mubr.f32.mxu0 %v2215
        %2416 = vmatmul.mubr.f32.gmra.mrb[0].mxu0 %v2214
        %v2417 = vpop.f32.mrb[0].mxu0
        %v2418 = vadd.f32 %v2279, %v2417
        %v2419 = vpop.f32.mrb[0].mxu0
        %2420 = vmatprep.mubr.f32.mxu0 %v2217
        %2421 = vmatmul.mubr.f32.gmra.mrb[0].mxu0 %v2216
        %v2422 = vpop.f32.mrb[0].mxu0
        %v2423 = vadd.f32 %v2279, %v2422
        %v2424 = vpop.f32.mrb[0].mxu0
        %2425 = vmatprep.mubr.f32.mxu0 %v2219
        %2426 = vmatmul.mubr.f32.gmra.mrb[0].mxu0 %v2218
        %v2427 = vpop.f32.mrb[0].mxu0
        %v2428 = vadd.f32 %v2279, %v2427
        %v2429 = vpop.f32.mrb[0].mxu0
        %2430 = vmatprep.mubr.f32.mxu0 %v2221
        %2431 = vmatmul.mubr.f32.gmra.mrb[0].mxu0 %v2220
        %v2432 = vpop.f32.mrb[0].mxu0
        %v2433 = vadd.f32 %v2279, %v2432
        %v2434 = vpop.f32.mrb[0].mxu0
        %2435 = vmatprep.mubr.f32.mxu0 %v2223
        %2436 = vmatmul.mubr.f32.gmra.mrb[0].mxu0 %v2222
        %v2437 = vpop.f32.mrb[0].mxu0
        %v2438 = vadd.f32 %v2279, %v2437
        %v2439 = vpop.f32.mrb[0].mxu0
        %2440 = vmatprep.mubr.f32.mxu0 %v2225
        %2441 = vmatmul.mubr.f32.gmra.mrb[0].mxu0 %v2224
        %v2442 = vpop.f32.mrb[0].mxu0
        %v2443 = vadd.f32 %v2279, %v2442
        %v2444 = vpop.f32.mrb[0].mxu0
        %2445 = vmatprep.mubr.f32.mxu0 %v2227
        %2446 = vmatmul.mubr.f32.gmra.mrb[0].mxu0 %v2226
        %v2447 = vpop.f32.mrb[0].mxu0
        %v2448 = vadd.f32 %v2279, %v2447
        %v2449 = vpop.f32.mrb[0].mxu0
        %2450 = vmatprep.mubr.f32.mxu0 %v2229
        %2451 = vmatmul.mubr.f32.gmra.mrb[0].mxu0 %v2228
        %v2452 = vpop.f32.mrb[0].mxu0
        %v2453 = vadd.f32 %v2279, %v2452
        %v2454 = vpop.f32.mrb[0].mxu0
        %2455 = vmatprep.mubr.f32.mxu0 %v2231
        %2456 = vmatmul.mubr.f32.gmra.mrb[0].mxu0 %v2230
        %v2457 = vpop.f32.mrb[0].mxu0
        %v2458 = vadd.f32 %v2279, %v2457
        %v2459 = vpop.f32.mrb[0].mxu0
        %2460 = vmatprep.mubr.f32.mxu0 %v2233
        %2461 = vmatmul.mubr.f32.gmra.mrb[0].mxu0 %v2232
        %v2462 = vpop.f32.mrb[0].mxu0
        %v2463 = vadd.f32 %v2279, %v2462
        %v2464 = vpop.f32.mrb[0].mxu0
        %2465 = vmatprep.mubr.f32.mxu0 %v2235
        %2466 = vmatmul.mubr.f32.gmra.mrb[0].mxu0 %v2234
        %v2467 = vpop.f32.mrb[0].mxu0
        %v2468 = vadd.f32 %v2279, %v2467
        %v2469 = vpop.f32.mrb[0].mxu0
        %2470 = vmatprep.mubr.f32.mxu0 %v2237
        %2471 = vmatmul.mubr.f32.gmra.mrb[0].mxu0 %v2236
        %v2472 = vpop.f32.mrb[0].mxu0
        %v2473 = vadd.f32 %v2279, %v2472
        %v2474 = vpop.f32.mrb[0].mxu0
        %2475 = vmatprep.mubr.f32.mxu0 %v2239
        %2476 = vmatmul.mubr.f32.gmra.mrb[0].mxu0 %v2238
        %v2477 = vpop.f32.mrb[0].mxu0
        %v2478 = vadd.f32 %v2279, %v2477
        %v2479 = vpop.f32.mrb[0].mxu0
        %2480 = vmatprep.mubr.f32.mxu0 %v2241
        %2481 = vmatmul.mubr.f32.gmra.mrb[0].mxu0 %v2240
        %v2482 = vpop.f32.mrb[0].mxu0
        %v2483 = vadd.f32 %v2279, %v2482
        %v2484 = vpop.f32.mrb[0].mxu0
        %2485 = vdwg.mxu0
        %vm2486 = vcmp.gt.f32.partialorder %v2348, 0.0
        %vm2487 = vcmp.gt.f32.partialorder %v2353, 0.0
        %vm2488 = vcmp.gt.f32.partialorder %v2358, 0.0
        %vm2489 = vcmp.gt.f32.partialorder %v2363, 0.0
        %vm2490 = vcmp.gt.f32.partialorder %v2368, 0.0
        %vm2491 = vcmp.gt.f32.partialorder %v2373, 0.0
        %vm2492 = vcmp.gt.f32.partialorder %v2378, 0.0
        %vm2493 = vcmp.gt.f32.partialorder %v2383, 0.0
        %vm2494 = vcmp.gt.f32.partialorder %v2388, 0.0
        %vm2495 = vcmp.gt.f32.partialorder %v2393, 0.0
        %vm2496 = vcmp.gt.f32.partialorder %v2398, 0.0
        %vm2497 = vcmp.gt.f32.partialorder %v2403, 0.0
        %vm2498 = vcmp.gt.f32.partialorder %v2408, 0.0
        %vm2499 = vcmp.gt.f32.partialorder %v2413, 0.0
        %vm2500 = vcmp.gt.f32.partialorder %v2418, 0.0
        %vm2501 = vcmp.gt.f32.partialorder %v2423, 0.0
        %vm2502 = vcmp.gt.f32.partialorder %v2428, 0.0
        %vm2503 = vcmp.gt.f32.partialorder %v2433, 0.0
        %vm2504 = vcmp.gt.f32.partialorder %v2438, 0.0
        %vm2505 = vcmp.gt.f32.partialorder %v2443, 0.0
        %vm2506 = vcmp.gt.f32.partialorder %v2448, 0.0
        %vm2507 = vcmp.gt.f32.partialorder %v2453, 0.0
        %vm2508 = vcmp.gt.f32.partialorder %v2458, 0.0
        %vm2509 = vcmp.gt.f32.partialorder %v2463, 0.0
        %vm2510 = vcmp.gt.f32.partialorder %v2468, 0.0
        %vm2511 = vcmp.gt.f32.partialorder %v2473, 0.0
        %vm2512 = vcmp.gt.f32.partialorder %v2478, 0.0
        %vm2513 = vcmp.gt.f32.partialorder %v2483, 0.0
        %v2514 = vmin.f32 %v2348, 0.0
        %v2515 = vmin.f32 %v2353, 0.0
        %v2516 = vmin.f32 %v2358, 0.0
        %v2517 = vmin.f32 %v2363, 0.0
        %v2518 = vmin.f32 %v2368, 0.0
        %v2519 = vmin.f32 %v2373, 0.0
        %v2520 = vmin.f32 %v2378, 0.0
        %v2521 = vmin.f32 %v2383, 0.0
        %v2522 = vmin.f32 %v2388, 0.0
        %v2523 = vmin.f32 %v2393, 0.0
        %v2524 = vmin.f32 %v2398, 0.0
        %v2525 = vmin.f32 %v2403, 0.0
        %v2526 = vmin.f32 %v2408, 0.0
        %v2527 = vmin.f32 %v2413, 0.0
        %v2528 = vmin.f32 %v2418, 0.0
        %v2529 = vmin.f32 %v2423, 0.0
        %v2530 = vmin.f32 %v2428, 0.0
        %v2531 = vmin.f32 %v2433, 0.0
        %v2532 = vmin.f32 %v2438, 0.0
        %v2533 = vmin.f32 %v2443, 0.0
        %v2534 = vmin.f32 %v2448, 0.0
        %v2535 = vmin.f32 %v2453, 0.0
        %v2536 = vmin.f32 %v2458, 0.0
        %v2537 = vmin.f32 %v2463, 0.0
        %v2538 = vmin.f32 %v2468, 0.0
        %v2539 = vmin.f32 %v2473, 0.0
        %v2540 = vmin.f32 %v2478, 0.0
        %v2541 = vmin.f32 %v2483, 0.0
        %v2542 = vmul.f32 %v2514, 1.442695
        %v2543 = vpow.pop %v2542
        %v2544 = vmul.f32 %v2515, 1.442695
        %v2545 = vpow.pop %v2544
        %v2546 = vmul.f32 %v2516, 1.442695
        %v2547 = vpow.pop %v2546
        %v2548 = vmul.f32 %v2517, 1.442695
        %v2549 = vpow.pop %v2548
        %v2550 = vmul.f32 %v2518, 1.442695
        %v2551 = vpow.pop %v2550
        %v2552 = vmul.f32 %v2519, 1.442695
        %v2553 = vpow.pop %v2552
        %v2554 = vmul.f32 %v2520, 1.442695
        %v2555 = vpow.pop %v2554
        %v2556 = vmul.f32 %v2521, 1.442695
        %v2557 = vpow.pop %v2556
        %v2558 = vmul.f32 %v2522, 1.442695
        %v2559 = vpow.pop %v2558
        %v2560 = vmul.f32 %v2523, 1.442695
        %v2561 = vpow.pop %v2560
        %v2562 = vmul.f32 %v2524, 1.442695
        %v2563 = vpow.pop %v2562
        %v2564 = vmul.f32 %v2525, 1.442695
        %v2565 = vpow.pop %v2564
        %v2566 = vmul.f32 %v2526, 1.442695
        %v2567 = vpow.pop %v2566
        %v2568 = vmul.f32 %v2527, 1.442695
        %v2569 = vpow.pop %v2568
        %v2570 = vmul.f32 %v2528, 1.442695
        %v2571 = vpow.pop %v2570
        %v2572 = vmul.f32 %v2529, 1.442695
        %v2573 = vpow.pop %v2572
        %v2574 = vmul.f32 %v2530, 1.442695
        %v2575 = vpow.pop %v2574
        %v2576 = vmul.f32 %v2531, 1.442695
        %v2577 = vpow.pop %v2576
        %v2578 = vmul.f32 %v2532, 1.442695
        %v2579 = vpow.pop %v2578
        %v2580 = vmul.f32 %v2533, 1.442695
        %v2581 = vpow.pop %v2580
        %v2582 = vmul.f32 %v2534, 1.442695
        %v2583 = vpow.pop %v2582
        %v2584 = vmul.f32 %v2535, 1.442695
        %v2585 = vpow.pop %v2584
        %v2586 = vmul.f32 %v2536, 1.442695
        %v2587 = vpow.pop %v2586
        %v2588 = vmul.f32 %v2537, 1.442695
        %v2589 = vpow.pop %v2588
        %v2590 = vmul.f32 %v2538, 1.442695
        %v2591 = vpow.pop %v2590
        %v2592 = vmul.f32 %v2539, 1.442695
        %v2593 = vpow.pop %v2592
        %v2594 = vmul.f32 %v2540, 1.442695
        %v2595 = vpow.pop %v2594
        %v2596 = vmul.f32 %v2541, 1.442695
        %v2597 = vpow.pop %v2596
        %v2598 = vsub.f32 %v2543, 1.0
        %v2599 = vsub.f32 %v2545, 1.0
        %v2600 = vsub.f32 %v2547, 1.0
        %v2601 = vsub.f32 %v2549, 1.0
        %v2602 = vsub.f32 %v2551, 1.0
        %v2603 = vsub.f32 %v2553, 1.0
        %v2604 = vsub.f32 %v2555, 1.0
        %v2605 = vsub.f32 %v2557, 1.0
        %v2606 = vsub.f32 %v2559, 1.0
        %v2607 = vsub.f32 %v2561, 1.0
        %v2608 = vsub.f32 %v2563, 1.0
        %v2609 = vsub.f32 %v2565, 1.0
        %v2610 = vsub.f32 %v2567, 1.0
        %v2611 = vsub.f32 %v2569, 1.0
        %v2612 = vsub.f32 %v2571, 1.0
        %v2613 = vsub.f32 %v2573, 1.0
        %v2614 = vsub.f32 %v2575, 1.0
        %v2615 = vsub.f32 %v2577, 1.0
        %v2616 = vsub.f32 %v2579, 1.0
        %v2617 = vsub.f32 %v2581, 1.0
        %v2618 = vsub.f32 %v2583, 1.0
        %v2619 = vsub.f32 %v2585, 1.0
        %v2620 = vsub.f32 %v2587, 1.0
        %v2621 = vsub.f32 %v2589, 1.0
        %v2622 = vsub.f32 %v2591, 1.0
        %v2623 = vsub.f32 %v2593, 1.0
        %v2624 = vsub.f32 %v2595, 1.0
        %v2625 = vsub.f32 %v2597, 1.0
        %v2626 = vsel %vm2486, %v2348, %v2598
        %v2627 = vsel %vm2487, %v2353, %v2599
        %v2628 = vsel %vm2488, %v2358, %v2600
        %v2629 = vsel %vm2489, %v2363, %v2601
        %v2630 = vsel %vm2490, %v2368, %v2602
        %v2631 = vsel %vm2491, %v2373, %v2603
        %v2632 = vsel %vm2492, %v2378, %v2604
        %v2633 = vsel %vm2493, %v2383, %v2605
        %v2634 = vsel %vm2494, %v2388, %v2606
        %v2635 = vsel %vm2495, %v2393, %v2607
        %v2636 = vsel %vm2496, %v2398, %v2608
        %v2637 = vsel %vm2497, %v2403, %v2609
        %v2638 = vsel %vm2498, %v2408, %v2610
        %v2639 = vsel %vm2499, %v2413, %v2611
        %v2640 = vsel %vm2500, %v2418, %v2612
        %v2641 = vsel %vm2501, %v2423, %v2613
        %v2642 = vsel %vm2502, %v2428, %v2614
        %v2643 = vsel %vm2503, %v2433, %v2615
        %v2644 = vsel %vm2504, %v2438, %v2616
        %v2645 = vsel %vm2505, %v2443, %v2617
        %v2646 = vsel %vm2506, %v2448, %v2618
        %v2647 = vsel %vm2507, %v2453, %v2619
        %v2648 = vsel %vm2508, %v2458, %v2620
        %v2649 = vsel %vm2509, %v2463, %v2621
        %v2650 = vsel %vm2510, %v2468, %v2622
        %v2651 = vsel %vm2511, %v2473, %v2623
        %v2652 = vsel %vm2512, %v2478, %v2624
        %v2653 = vsel %vm2513, %v2483, %v2625
        %v2654 = vld [vmem:[#allocation6] sm:$0xff]
        %v2655 = vld [vmem:[#allocation6 + $0x8] sm:$0xff]
        %v2656 = vld [vmem:[#allocation6 + $0x10] sm:$0xff]
        %v2657 = vld [vmem:[#allocation6 + $0x18] sm:$0xff]
        %v2658 = vld [vmem:[#allocation6 + $0x20] sm:$0xff]
        %v2659 = vld [vmem:[#allocation6 + $0x28] sm:$0xff]
        %v2660 = vld [vmem:[#allocation6 + $0x30] sm:$0xff]
        %v2661 = vld [vmem:[#allocation6 + $0x38] sm:$0xff]
        %v2662 = vld [vmem:[#allocation6 + $0x40] sm:$0xff]
        %v2663 = vld [vmem:[#allocation6 + $0x48] sm:$0xff]
        %v2664 = vld [vmem:[#allocation6 + $0x50] sm:$0xff]
        %v2665 = vld [vmem:[#allocation6 + $0x58] sm:$0xff]
        %v2666 = vld [vmem:[#allocation6 + $0x60] sm:$0xff]
        %v2667 = vld [vmem:[#allocation6 + $0x68] sm:$0xff]
        %v2668 = vld [vmem:[#allocation6 + $0x70] sm:$0xff]
        %v2669 = vld [vmem:[#allocation6 + $0x78] sm:$0xff]
        %v2670 = vld [vmem:[#allocation6 + $0x80] sm:$0xff]
        %v2671 = vld [vmem:[#allocation6 + $0x88] sm:$0xff]
        %v2672 = vld [vmem:[#allocation6 + $0x90] sm:$0xff]
        %v2673 = vld [vmem:[#allocation6 + $0x98] sm:$0xff]
        %v2674 = vld [vmem:[#allocation6 + $0xa0] sm:$0xff]
        %v2675 = vld [vmem:[#allocation6 + $0xa8] sm:$0xff]
        %v2676 = vld [vmem:[#allocation6 + $0xb0] sm:$0xff]
        %v2677 = vld [vmem:[#allocation6 + $0xb8] sm:$0xff]
        %v2678 = vld [vmem:[#allocation6 + $0xc0] sm:$0xff]
        %v2679 = vld [vmem:[#allocation6 + $0xc8] sm:$0xff]
        %v2680 = vld [vmem:[#allocation6 + $0xd0] sm:$0xff]
        %v2681 = vld [vmem:[#allocation6 + $0xd8] sm:$0xff]
        %v2682 = vld [vmem:[#allocation6 + $0xe0] sm:$0xff]
        %v2683 = vld [vmem:[#allocation6 + $0xe8] sm:$0xff]
        %v2684 = vld [vmem:[#allocation6 + $0xf0] sm:$0xff]
        %v2685 = vld [vmem:[#allocation6 + $0xf8] sm:$0xff]
        %v2686 = vld [vmem:[%s14] sm:$0x3]
        %v2688 = vlaneseq
        %v2689 = vshrl.u32 %v2688, 7
        %v2690 = vsub.s32 0, %v2689
        %v2691 = vrot.slane %v2686, %v2690
        %v2692 = vlaneseq
        %v2693 = vshrl.u32 %v2692, 7
        %v2694 = vsub.s32 1, %v2693
        %v2695 = vrot.slane %v2686, %v2694
        %2698 = vmatprep.subr.mxu0 %v2655
        %2699 = vmatpush1.msra.mxu0 %v2654
        %2700 = vmatprep.subr.mxu0 %v2657
        %2701 = vmatpush1.msra.mxu0 %v2656
        %2702 = vmatprep.subr.mxu0 %v2659
        %2703 = vmatpush1.msra.mxu0 %v2658
        %2704 = vmatprep.subr.mxu0 %v2661
        %2705 = vmatpush1.msra.mxu0 %v2660
        %2706 = vmatprep.subr.mxu0 %v2663
        %2707 = vmatpush1.msra.mxu0 %v2662
        %2708 = vmatprep.subr.mxu0 %v2665
        %2709 = vmatpush1.msra.mxu0 %v2664
        %2710 = vmatprep.subr.mxu0 %v2667
        %2711 = vmatpush1.msra.mxu0 %v2666
        %2712 = vmatprep.subr.mxu0 %v2669
        %2713 = vmatpush1.msra.mxu0 %v2668
        %2714 = vmatprep.subr.mxu0 %v2671
        %2715 = vmatpush1.msra.mxu0 %v2670
        %2716 = vmatprep.subr.mxu0 %v2673
        %2717 = vmatpush1.msra.mxu0 %v2672
        %2718 = vmatprep.subr.mxu0 %v2675
        %2719 = vmatpush1.msra.mxu0 %v2674
        %2720 = vmatprep.subr.mxu0 %v2677
        %2721 = vmatpush1.msra.mxu0 %v2676
        %2722 = vmatprep.subr.mxu0 %v2679
        %2723 = vmatpush1.msra.mxu0 %v2678
        %2724 = vmatprep.subr.mxu0 %v2681
        %2725 = vmatpush1.msra.mxu0 %v2680
        %2726 = vmatprep.subr.mxu0 %v2683
        %2727 = vmatpush1.msra.mxu0 %v2682
        %2728 = vmatprep.subr.mxu0 %v2685
        %2729 = vmatpush1.msra.mxu0 %v2684
        %2730 = vmatprep.subr.mxu0 0.0
        %2731 = vmatpush1.msra.mxu0 0.0
        %2732 = vmatprep.subr.mxu0 0.0
        %2733 = vmatpush1.msra.mxu0 0.0
        %2734 = vmatprep.subr.mxu0 0.0
        %2735 = vmatpush1.msra.mxu0 0.0
        %2736 = vmatprep.subr.mxu0 0.0
        %2737 = vmatpush1.msra.mxu0 0.0
        %2738 = vmatprep.subr.mxu0 0.0
        %2739 = vmatpush1.msra.mxu0 0.0
        %2740 = vmatprep.subr.mxu0 0.0
        %2741 = vmatpush1.msra.mxu0 0.0
        %2742 = vmatprep.subr.mxu0 0.0
        %2743 = vmatpush1.msra.mxu0 0.0
        %2744 = vmatprep.subr.mxu0 0.0
        %2745 = vmatpush1.msra.mxu0 0.0
        %2746 = vmatprep.subr.mxu0 0.0
        %2747 = vmatpush1.msra.mxu0 0.0
        %2748 = vmatprep.subr.mxu0 0.0
        %2749 = vmatpush1.msra.mxu0 0.0
        %2750 = vmatprep.subr.mxu0 0.0
        %2751 = vmatpush1.msra.mxu0 0.0
        %2752 = vmatprep.subr.mxu0 0.0
        %2753 = vmatpush1.msra.mxu0 0.0
        %2754 = vmatprep.subr.mxu0 0.0
        %2755 = vmatpush1.msra.mxu0 0.0
        %2756 = vmatprep.subr.mxu0 0.0
        %2757 = vmatpush1.msra.mxu0 0.0
        %2758 = vmatprep.subr.mxu0 0.0
        %2759 = vmatpush1.msra.mxu0 0.0
        %2760 = vmatprep.subr.mxu0 0.0
        %2761 = vmatpush1.msra.mxu0 0.0
        %2762 = vmatprep.mubr.f32.mxu0 0.0
        %2763 = vmatmul.mubr.f32.gmra.mrb[0].mxu0 %v2626
        %v2764 = vpop.f32.mrb[0].mxu0
        %v2765 = vadd.f32 %v2691, %v2764
        %v2766 = vpop.f32.mrb[0].mxu0
        %v2767 = vadd.f32 %v2695, %v2766
        %2768 = vmatprep.mubr.f32.mxu0 0.0
        %2769 = vmatmul.mubr.f32.gmra.mrb[0].mxu0 %v2627
        %v2770 = vpop.f32.mrb[0].mxu0
        %v2771 = vadd.f32 %v2691, %v2770
        %v2772 = vpop.f32.mrb[0].mxu0
        %v2773 = vadd.f32 %v2695, %v2772
        %2774 = vmatprep.mubr.f32.mxu0 0.0
        %2775 = vmatmul.mubr.f32.gmra.mrb[0].mxu0 %v2628
        %v2776 = vpop.f32.mrb[0].mxu0
        %v2777 = vadd.f32 %v2691, %v2776
        %v2778 = vpop.f32.mrb[0].mxu0
        %v2779 = vadd.f32 %v2695, %v2778
        %2780 = vmatprep.mubr.f32.mxu0 0.0
        %2781 = vmatmul.mubr.f32.gmra.mrb[0].mxu0 %v2629
        %v2782 = vpop.f32.mrb[0].mxu0
        %v2783 = vadd.f32 %v2691, %v2782
        %v2784 = vpop.f32.mrb[0].mxu0
        %v2785 = vadd.f32 %v2695, %v2784
        %2786 = vmatprep.mubr.f32.mxu0 0.0
        %2787 = vmatmul.mubr.f32.gmra.mrb[0].mxu0 %v2630
        %v2788 = vpop.f32.mrb[0].mxu0
        %v2789 = vadd.f32 %v2691, %v2788
        %v2790 = vpop.f32.mrb[0].mxu0
        %v2791 = vadd.f32 %v2695, %v2790
        %2792 = vmatprep.mubr.f32.mxu0 0.0
        %2793 = vmatmul.mubr.f32.gmra.mrb[0].mxu0 %v2631
        %v2794 = vpop.f32.mrb[0].mxu0
        %v2795 = vadd.f32 %v2691, %v2794
        %v2796 = vpop.f32.mrb[0].mxu0
        %v2797 = vadd.f32 %v2695, %v2796
        %2798 = vmatprep.mubr.f32.mxu0 0.0
        %2799 = vmatmul.mubr.f32.gmra.mrb[0].mxu0 %v2632
        %v2800 = vpop.f32.mrb[0].mxu0
        %v2801 = vadd.f32 %v2691, %v2800
        %v2802 = vpop.f32.mrb[0].mxu0
        %v2803 = vadd.f32 %v2695, %v2802
        %2804 = vmatprep.mubr.f32.mxu0 0.0
        %2805 = vmatmul.mubr.f32.gmra.mrb[0].mxu0 %v2633
        %v2806 = vpop.f32.mrb[0].mxu0
        %v2807 = vadd.f32 %v2691, %v2806
        %v2808 = vpop.f32.mrb[0].mxu0
        %v2809 = vadd.f32 %v2695, %v2808
        %2810 = vmatprep.mubr.f32.mxu0 0.0
        %2811 = vmatmul.mubr.f32.gmra.mrb[0].mxu0 %v2634
        %v2812 = vpop.f32.mrb[0].mxu0
        %v2813 = vadd.f32 %v2691, %v2812
        %v2814 = vpop.f32.mrb[0].mxu0
        %v2815 = vadd.f32 %v2695, %v2814
        %2816 = vmatprep.mubr.f32.mxu0 0.0
        %2817 = vmatmul.mubr.f32.gmra.mrb[0].mxu0 %v2635
        %v2818 = vpop.f32.mrb[0].mxu0
        %v2819 = vadd.f32 %v2691, %v2818
        %v2820 = vpop.f32.mrb[0].mxu0
        %v2821 = vadd.f32 %v2695, %v2820
        %2822 = vmatprep.mubr.f32.mxu0 0.0
        %2823 = vmatmul.mubr.f32.gmra.mrb[0].mxu0 %v2636
        %v2824 = vpop.f32.mrb[0].mxu0
        %v2825 = vadd.f32 %v2691, %v2824
        %v2826 = vpop.f32.mrb[0].mxu0
        %v2827 = vadd.f32 %v2695, %v2826
        %2828 = vmatprep.mubr.f32.mxu0 0.0
        %2829 = vmatmul.mubr.f32.gmra.mrb[0].mxu0 %v2637
        %v2830 = vpop.f32.mrb[0].mxu0
        %v2831 = vadd.f32 %v2691, %v2830
        %v2832 = vpop.f32.mrb[0].mxu0
        %v2833 = vadd.f32 %v2695, %v2832
        %2834 = vmatprep.mubr.f32.mxu0 0.0
        %2835 = vmatmul.mubr.f32.gmra.mrb[0].mxu0 %v2638
        %v2836 = vpop.f32.mrb[0].mxu0
        %v2837 = vadd.f32 %v2691, %v2836
        %v2838 = vpop.f32.mrb[0].mxu0
        %v2839 = vadd.f32 %v2695, %v2838
        %2840 = vmatprep.mubr.f32.mxu0 0.0
        %2841 = vmatmul.mubr.f32.gmra.mrb[0].mxu0 %v2639
        %v2842 = vpop.f32.mrb[0].mxu0
        %v2843 = vadd.f32 %v2691, %v2842
        %v2844 = vpop.f32.mrb[0].mxu0
        %v2845 = vadd.f32 %v2695, %v2844
        %2846 = vmatprep.mubr.f32.mxu0 0.0
        %2847 = vmatmul.mubr.f32.gmra.mrb[0].mxu0 %v2640
        %v2848 = vpop.f32.mrb[0].mxu0
        %v2849 = vadd.f32 %v2691, %v2848
        %v2850 = vpop.f32.mrb[0].mxu0
        %v2851 = vadd.f32 %v2695, %v2850
        %2852 = vmatprep.mubr.f32.mxu0 0.0
        %2853 = vmatmul.mubr.f32.gmra.mrb[0].mxu0 %v2641
        %v2854 = vpop.f32.mrb[0].mxu0
        %v2855 = vadd.f32 %v2691, %v2854
        %v2856 = vpop.f32.mrb[0].mxu0
        %v2857 = vadd.f32 %v2695, %v2856
        %2858 = vmatprep.mubr.f32.mxu0 0.0
        %2859 = vmatmul.mubr.f32.gmra.mrb[0].mxu0 %v2642
        %v2860 = vpop.f32.mrb[0].mxu0
        %v2861 = vadd.f32 %v2691, %v2860
        %v2862 = vpop.f32.mrb[0].mxu0
        %v2863 = vadd.f32 %v2695, %v2862
        %2864 = vmatprep.mubr.f32.mxu0 0.0
        %2865 = vmatmul.mubr.f32.gmra.mrb[0].mxu0 %v2643
        %v2866 = vpop.f32.mrb[0].mxu0
        %v2867 = vadd.f32 %v2691, %v2866
        %v2868 = vpop.f32.mrb[0].mxu0
        %v2869 = vadd.f32 %v2695, %v2868
        %2870 = vmatprep.mubr.f32.mxu0 0.0
        %2871 = vmatmul.mubr.f32.gmra.mrb[0].mxu0 %v2644
        %v2872 = vpop.f32.mrb[0].mxu0
        %v2873 = vadd.f32 %v2691, %v2872
        %v2874 = vpop.f32.mrb[0].mxu0
        %v2875 = vadd.f32 %v2695, %v2874
        %2876 = vmatprep.mubr.f32.mxu0 0.0
        %2877 = vmatmul.mubr.f32.gmra.mrb[0].mxu0 %v2645
        %v2878 = vpop.f32.mrb[0].mxu0
        %v2879 = vadd.f32 %v2691, %v2878
        %v2880 = vpop.f32.mrb[0].mxu0
        %v2881 = vadd.f32 %v2695, %v2880
        %2882 = vmatprep.mubr.f32.mxu0 0.0
        %2883 = vmatmul.mubr.f32.gmra.mrb[0].mxu0 %v2646
        %v2884 = vpop.f32.mrb[0].mxu0
        %v2885 = vadd.f32 %v2691, %v2884
        %v2886 = vpop.f32.mrb[0].mxu0
        %v2887 = vadd.f32 %v2695, %v2886
        %2888 = vmatprep.mubr.f32.mxu0 0.0
        %2889 = vmatmul.mubr.f32.gmra.mrb[0].mxu0 %v2647
        %v2890 = vpop.f32.mrb[0].mxu0
        %v2891 = vadd.f32 %v2691, %v2890
        %v2892 = vpop.f32.mrb[0].mxu0
        %v2893 = vadd.f32 %v2695, %v2892
        %2894 = vmatprep.mubr.f32.mxu0 0.0
        %2895 = vmatmul.mubr.f32.gmra.mrb[0].mxu0 %v2648
        %v2896 = vpop.f32.mrb[0].mxu0
        %v2897 = vadd.f32 %v2691, %v2896
        %v2898 = vpop.f32.mrb[0].mxu0
        %v2899 = vadd.f32 %v2695, %v2898
        %2900 = vmatprep.mubr.f32.mxu0 0.0
        %2901 = vmatmul.mubr.f32.gmra.mrb[0].mxu0 %v2649
        %v2902 = vpop.f32.mrb[0].mxu0
        %v2903 = vadd.f32 %v2691, %v2902
        %v2904 = vpop.f32.mrb[0].mxu0
        %v2905 = vadd.f32 %v2695, %v2904
        %2906 = vmatprep.mubr.f32.mxu0 0.0
        %2907 = vmatmul.mubr.f32.gmra.mrb[0].mxu0 %v2650
        %v2908 = vpop.f32.mrb[0].mxu0
        %v2909 = vadd.f32 %v2691, %v2908
        %v2910 = vpop.f32.mrb[0].mxu0
        %v2911 = vadd.f32 %v2695, %v2910
        %2912 = vmatprep.mubr.f32.mxu0 0.0
        %2913 = vmatmul.mubr.f32.gmra.mrb[0].mxu0 %v2651
        %v2914 = vpop.f32.mrb[0].mxu0
        %v2915 = vadd.f32 %v2691, %v2914
        %v2916 = vpop.f32.mrb[0].mxu0
        %v2917 = vadd.f32 %v2695, %v2916
        %2918 = vmatprep.mubr.f32.mxu0 0.0
        %2919 = vmatmul.mubr.f32.gmra.mrb[0].mxu0 %v2652
        %v2920 = vpop.f32.mrb[0].mxu0
        %v2921 = vadd.f32 %v2691, %v2920
        %v2922 = vpop.f32.mrb[0].mxu0
        %v2923 = vadd.f32 %v2695, %v2922
        %2924 = vmatprep.mubr.f32.mxu0 0.0
        %2925 = vmatmul.mubr.f32.gmra.mrb[0].mxu0 %v2653
        %v2926 = vpop.f32.mrb[0].mxu0
        %v2927 = vadd.f32 %v2691, %v2926
        %v2928 = vpop.f32.mrb[0].mxu0
        %v2929 = vadd.f32 %v2695, %v2928
        %2930 = vdwg.mxu0
        %vm2931 = vcmp.gt.f32.partialorder %v2765, 0.0
        %vm2932 = vcmp.gt.f32.partialorder %v2767, 0.0
        %vm2933 = vcmp.gt.f32.partialorder %v2771, 0.0
        %vm2934 = vcmp.gt.f32.partialorder %v2773, 0.0
        %vm2935 = vcmp.gt.f32.partialorder %v2777, 0.0
        %vm2936 = vcmp.gt.f32.partialorder %v2779, 0.0
        %vm2937 = vcmp.gt.f32.partialorder %v2783, 0.0
        %vm2938 = vcmp.gt.f32.partialorder %v2785, 0.0
        %vm2939 = vcmp.gt.f32.partialorder %v2789, 0.0
        %vm2940 = vcmp.gt.f32.partialorder %v2791, 0.0
        %vm2941 = vcmp.gt.f32.partialorder %v2795, 0.0
        %vm2942 = vcmp.gt.f32.partialorder %v2797, 0.0
        %vm2943 = vcmp.gt.f32.partialorder %v2801, 0.0
        %vm2944 = vcmp.gt.f32.partialorder %v2803, 0.0
        %vm2945 = vcmp.gt.f32.partialorder %v2807, 0.0
        %vm2946 = vcmp.gt.f32.partialorder %v2809, 0.0
        %vm2947 = vcmp.gt.f32.partialorder %v2813, 0.0
        %vm2948 = vcmp.gt.f32.partialorder %v2815, 0.0
        %vm2949 = vcmp.gt.f32.partialorder %v2819, 0.0
        %vm2950 = vcmp.gt.f32.partialorder %v2821, 0.0
        %vm2951 = vcmp.gt.f32.partialorder %v2825, 0.0
        %vm2952 = vcmp.gt.f32.partialorder %v2827, 0.0
        %vm2953 = vcmp.gt.f32.partialorder %v2831, 0.0
        %vm2954 = vcmp.gt.f32.partialorder %v2833, 0.0
        %vm2955 = vcmp.gt.f32.partialorder %v2837, 0.0
        %vm2956 = vcmp.gt.f32.partialorder %v2839, 0.0
        %vm2957 = vcmp.gt.f32.partialorder %v2843, 0.0
        %vm2958 = vcmp.gt.f32.partialorder %v2845, 0.0
        %vm2959 = vcmp.gt.f32.partialorder %v2849, 0.0
        %vm2960 = vcmp.gt.f32.partialorder %v2851, 0.0
        %vm2961 = vcmp.gt.f32.partialorder %v2855, 0.0
        %vm2962 = vcmp.gt.f32.partialorder %v2857, 0.0
        %vm2963 = vcmp.gt.f32.partialorder %v2861, 0.0
        %vm2964 = vcmp.gt.f32.partialorder %v2863, 0.0
        %vm2965 = vcmp.gt.f32.partialorder %v2867, 0.0
        %vm2966 = vcmp.gt.f32.partialorder %v2869, 0.0
        %vm2967 = vcmp.gt.f32.partialorder %v2873, 0.0
        %vm2968 = vcmp.gt.f32.partialorder %v2875, 0.0
        %vm2969 = vcmp.gt.f32.partialorder %v2879, 0.0
        %vm2970 = vcmp.gt.f32.partialorder %v2881, 0.0
        %vm2971 = vcmp.gt.f32.partialorder %v2885, 0.0
        %vm2972 = vcmp.gt.f32.partialorder %v2887, 0.0
        %vm2973 = vcmp.gt.f32.partialorder %v2891, 0.0
        %vm2974 = vcmp.gt.f32.partialorder %v2893, 0.0
        %vm2975 = vcmp.gt.f32.partialorder %v2897, 0.0
        %vm2976 = vcmp.gt.f32.partialorder %v2899, 0.0
        %vm2977 = vcmp.gt.f32.partialorder %v2903, 0.0
        %vm2978 = vcmp.gt.f32.partialorder %v2905, 0.0
        %vm2979 = vcmp.gt.f32.partialorder %v2909, 0.0
        %vm2980 = vcmp.gt.f32.partialorder %v2911, 0.0
        %vm2981 = vcmp.gt.f32.partialorder %v2915, 0.0
        %vm2982 = vcmp.gt.f32.partialorder %v2917, 0.0
        %vm2983 = vcmp.gt.f32.partialorder %v2921, 0.0
        %vm2984 = vcmp.gt.f32.partialorder %v2923, 0.0
        %vm2985 = vcmp.gt.f32.partialorder %v2927, 0.0
        %vm2986 = vcmp.gt.f32.partialorder %v2929, 0.0
        %v2987 = vmin.f32 %v2765, 0.0
        %v2988 = vmin.f32 %v2767, 0.0
        %v2989 = vmin.f32 %v2771, 0.0
        %v2990 = vmin.f32 %v2773, 0.0
        %v2991 = vmin.f32 %v2777, 0.0
        %v2992 = vmin.f32 %v2779, 0.0
        %v2993 = vmin.f32 %v2783, 0.0
        %v2994 = vmin.f32 %v2785, 0.0
        %v2995 = vmin.f32 %v2789, 0.0
        %v2996 = vmin.f32 %v2791, 0.0
        %v2997 = vmin.f32 %v2795, 0.0
        %v2998 = vmin.f32 %v2797, 0.0
        %v2999 = vmin.f32 %v2801, 0.0
        %v3000 = vmin.f32 %v2803, 0.0
        %v3001 = vmin.f32 %v2807, 0.0
        %v3002 = vmin.f32 %v2809, 0.0
        %v3003 = vmin.f32 %v2813, 0.0
        %v3004 = vmin.f32 %v2815, 0.0
        %v3005 = vmin.f32 %v2819, 0.0
        %v3006 = vmin.f32 %v2821, 0.0
        %v3007 = vmin.f32 %v2825, 0.0
        %v3008 = vmin.f32 %v2827, 0.0
        %v3009 = vmin.f32 %v2831, 0.0
        %v3010 = vmin.f32 %v2833, 0.0
        %v3011 = vmin.f32 %v2837, 0.0
        %v3012 = vmin.f32 %v2839, 0.0
        %v3013 = vmin.f32 %v2843, 0.0
        %v3014 = vmin.f32 %v2845, 0.0
        %v3015 = vmin.f32 %v2849, 0.0
        %v3016 = vmin.f32 %v2851, 0.0
        %v3017 = vmin.f32 %v2855, 0.0
        %v3018 = vmin.f32 %v2857, 0.0
        %v3019 = vmin.f32 %v2861, 0.0
        %v3020 = vmin.f32 %v2863, 0.0
        %v3021 = vmin.f32 %v2867, 0.0
        %v3022 = vmin.f32 %v2869, 0.0
        %v3023 = vmin.f32 %v2873, 0.0
        %v3024 = vmin.f32 %v2875, 0.0
        %v3025 = vmin.f32 %v2879, 0.0
        %v3026 = vmin.f32 %v2881, 0.0
        %v3027 = vmin.f32 %v2885, 0.0
        %v3028 = vmin.f32 %v2887, 0.0
        %v3029 = vmin.f32 %v2891, 0.0
        %v3030 = vmin.f32 %v2893, 0.0
        %v3031 = vmin.f32 %v2897, 0.0
        %v3032 = vmin.f32 %v2899, 0.0
        %v3033 = vmin.f32 %v2903, 0.0
        %v3034 = vmin.f32 %v2905, 0.0
        %v3035 = vmin.f32 %v2909, 0.0
        %v3036 = vmin.f32 %v2911, 0.0
        %v3037 = vmin.f32 %v2915, 0.0
        %v3038 = vmin.f32 %v2917, 0.0
        %v3039 = vmin.f32 %v2921, 0.0
        %v3040 = vmin.f32 %v2923, 0.0
        %v3041 = vmin.f32 %v2927, 0.0
        %v3042 = vmin.f32 %v2929, 0.0
        %v3043 = vmul.f32 %v2987, 1.442695
        %v3044 = vpow.pop %v3043
        %v3045 = vmul.f32 %v2988, 1.442695
        %v3046 = vpow.pop %v3045
        %v3047 = vmul.f32 %v2989, 1.442695
        %v3048 = vpow.pop %v3047
        %v3049 = vmul.f32 %v2990, 1.442695
        %v3050 = vpow.pop %v3049
        %v3051 = vmul.f32 %v2991, 1.442695
        %v3052 = vpow.pop %v3051
        %v3053 = vmul.f32 %v2992, 1.442695
        %v3054 = vpow.pop %v3053
        %v3055 = vmul.f32 %v2993, 1.442695
        %v3056 = vpow.pop %v3055
        %v3057 = vmul.f32 %v2994, 1.442695
        %v3058 = vpow.pop %v3057
        %v3059 = vmul.f32 %v2995, 1.442695
        %v3060 = vpow.pop %v3059
        %v3061 = vmul.f32 %v2996, 1.442695
        %v3062 = vpow.pop %v3061
        %v3063 = vmul.f32 %v2997, 1.442695
        %v3064 = vpow.pop %v3063
        %v3065 = vmul.f32 %v2998, 1.442695
        %v3066 = vpow.pop %v3065
        %v3067 = vmul.f32 %v2999, 1.442695
        %v3068 = vpow.pop %v3067
        %v3069 = vmul.f32 %v3000, 1.442695
        %v3070 = vpow.pop %v3069
        %v3071 = vmul.f32 %v3001, 1.442695
        %v3072 = vpow.pop %v3071
        %v3073 = vmul.f32 %v3002, 1.442695
        %v3074 = vpow.pop %v3073
        %v3075 = vmul.f32 %v3003, 1.442695
        %v3076 = vpow.pop %v3075
        %v3077 = vmul.f32 %v3004, 1.442695
        %v3078 = vpow.pop %v3077
        %v3079 = vmul.f32 %v3005, 1.442695
        %v3080 = vpow.pop %v3079
        %v3081 = vmul.f32 %v3006, 1.442695
        %v3082 = vpow.pop %v3081
        %v3083 = vmul.f32 %v3007, 1.442695
        %v3084 = vpow.pop %v3083
        %v3085 = vmul.f32 %v3008, 1.442695
        %v3086 = vpow.pop %v3085
        %v3087 = vmul.f32 %v3009, 1.442695
        %v3088 = vpow.pop %v3087
        %v3089 = vmul.f32 %v3010, 1.442695
        %v3090 = vpow.pop %v3089
        %v3091 = vmul.f32 %v3011, 1.442695
        %v3092 = vpow.pop %v3091
        %v3093 = vmul.f32 %v3012, 1.442695
        %v3094 = vpow.pop %v3093
        %v3095 = vmul.f32 %v3013, 1.442695
        %v3096 = vpow.pop %v3095
        %v3097 = vmul.f32 %v3014, 1.442695
        %v3098 = vpow.pop %v3097
        %v3099 = vmul.f32 %v3015, 1.442695
        %v3100 = vpow.pop %v3099
        %v3101 = vmul.f32 %v3016, 1.442695
        %v3102 = vpow.pop %v3101
        %v3103 = vmul.f32 %v3017, 1.442695
        %v3104 = vpow.pop %v3103
        %v3105 = vmul.f32 %v3018, 1.442695
        %v3106 = vpow.pop %v3105
        %v3107 = vmul.f32 %v3019, 1.442695
        %v3108 = vpow.pop %v3107
        %v3109 = vmul.f32 %v3020, 1.442695
        %v3110 = vpow.pop %v3109
        %v3111 = vmul.f32 %v3021, 1.442695
        %v3112 = vpow.pop %v3111
        %v3113 = vmul.f32 %v3022, 1.442695
        %v3114 = vpow.pop %v3113
        %v3115 = vmul.f32 %v3023, 1.442695
        %v3116 = vpow.pop %v3115
        %v3117 = vmul.f32 %v3024, 1.442695
        %v3118 = vpow.pop %v3117
        %v3119 = vmul.f32 %v3025, 1.442695
        %v3120 = vpow.pop %v3119
        %v3121 = vmul.f32 %v3026, 1.442695
        %v3122 = vpow.pop %v3121
        %v3123 = vmul.f32 %v3027, 1.442695
        %v3124 = vpow.pop %v3123
        %v3125 = vmul.f32 %v3028, 1.442695
        %v3126 = vpow.pop %v3125
        %v3127 = vmul.f32 %v3029, 1.442695
        %v3128 = vpow.pop %v3127
        %v3129 = vmul.f32 %v3030, 1.442695
        %v3130 = vpow.pop %v3129
        %v3131 = vmul.f32 %v3031, 1.442695
        %v3132 = vpow.pop %v3131
        %v3133 = vmul.f32 %v3032, 1.442695
        %v3134 = vpow.pop %v3133
        %v3135 = vmul.f32 %v3033, 1.442695
        %v3136 = vpow.pop %v3135
        %v3137 = vmul.f32 %v3034, 1.442695
        %v3138 = vpow.pop %v3137
        %v3139 = vmul.f32 %v3035, 1.442695
        %v3140 = vpow.pop %v3139
        %v3141 = vmul.f32 %v3036, 1.442695
        %v3142 = vpow.pop %v3141
        %v3143 = vmul.f32 %v3037, 1.442695
        %v3144 = vpow.pop %v3143
        %v3145 = vmul.f32 %v3038, 1.442695
        %v3146 = vpow.pop %v3145
        %v3147 = vmul.f32 %v3039, 1.442695
        %v3148 = vpow.pop %v3147
        %v3149 = vmul.f32 %v3040, 1.442695
        %v3150 = vpow.pop %v3149
        %v3151 = vmul.f32 %v3041, 1.442695
        %v3152 = vpow.pop %v3151
        %v3153 = vmul.f32 %v3042, 1.442695
        %v3154 = vpow.pop %v3153
        %v3155 = vsub.f32 %v3044, 1.0
        %v3156 = vsub.f32 %v3046, 1.0
        %v3157 = vsub.f32 %v3048, 1.0
        %v3158 = vsub.f32 %v3050, 1.0
        %v3159 = vsub.f32 %v3052, 1.0
        %v3160 = vsub.f32 %v3054, 1.0
        %v3161 = vsub.f32 %v3056, 1.0
        %v3162 = vsub.f32 %v3058, 1.0
        %v3163 = vsub.f32 %v3060, 1.0
        %v3164 = vsub.f32 %v3062, 1.0
        %v3165 = vsub.f32 %v3064, 1.0
        %v3166 = vsub.f32 %v3066, 1.0
        %v3167 = vsub.f32 %v3068, 1.0
        %v3168 = vsub.f32 %v3070, 1.0
        %v3169 = vsub.f32 %v3072, 1.0
        %v3170 = vsub.f32 %v3074, 1.0
        %v3171 = vsub.f32 %v3076, 1.0
        %v3172 = vsub.f32 %v3078, 1.0
        %v3173 = vsub.f32 %v3080, 1.0
        %v3174 = vsub.f32 %v3082, 1.0
        %v3175 = vsub.f32 %v3084, 1.0
        %v3176 = vsub.f32 %v3086, 1.0
        %v3177 = vsub.f32 %v3088, 1.0
        %v3178 = vsub.f32 %v3090, 1.0
        %v3179 = vsub.f32 %v3092, 1.0
        %v3180 = vsub.f32 %v3094, 1.0
        %v3181 = vsub.f32 %v3096, 1.0
        %v3182 = vsub.f32 %v3098, 1.0
        %v3183 = vsub.f32 %v3100, 1.0
        %v3184 = vsub.f32 %v3102, 1.0
        %v3185 = vsub.f32 %v3104, 1.0
        %v3186 = vsub.f32 %v3106, 1.0
        %v3187 = vsub.f32 %v3108, 1.0
        %v3188 = vsub.f32 %v3110, 1.0
        %v3189 = vsub.f32 %v3112, 1.0
        %v3190 = vsub.f32 %v3114, 1.0
        %v3191 = vsub.f32 %v3116, 1.0
        %v3192 = vsub.f32 %v3118, 1.0
        %v3193 = vsub.f32 %v3120, 1.0
        %v3194 = vsub.f32 %v3122, 1.0
        %v3195 = vsub.f32 %v3124, 1.0
        %v3196 = vsub.f32 %v3126, 1.0
        %v3197 = vsub.f32 %v3128, 1.0
        %v3198 = vsub.f32 %v3130, 1.0
        %v3199 = vsub.f32 %v3132, 1.0
        %v3200 = vsub.f32 %v3134, 1.0
        %v3201 = vsub.f32 %v3136, 1.0
        %v3202 = vsub.f32 %v3138, 1.0
        %v3203 = vsub.f32 %v3140, 1.0
        %v3204 = vsub.f32 %v3142, 1.0
        %v3205 = vsub.f32 %v3144, 1.0
        %v3206 = vsub.f32 %v3146, 1.0
        %v3207 = vsub.f32 %v3148, 1.0
        %v3208 = vsub.f32 %v3150, 1.0
        %v3209 = vsub.f32 %v3152, 1.0
        %v3210 = vsub.f32 %v3154, 1.0
        %v3211 = vsel %vm2931, %v2765, %v3155
        %v3212 = vsel %vm2932, %v2767, %v3156
        %v3213 = vsel %vm2933, %v2771, %v3157
        %v3214 = vsel %vm2934, %v2773, %v3158
        %v3215 = vsel %vm2935, %v2777, %v3159
        %v3216 = vsel %vm2936, %v2779, %v3160
        %v3217 = vsel %vm2937, %v2783, %v3161
        %v3218 = vsel %vm2938, %v2785, %v3162
        %v3219 = vsel %vm2939, %v2789, %v3163
        %v3220 = vsel %vm2940, %v2791, %v3164
        %v3221 = vsel %vm2941, %v2795, %v3165
        %v3222 = vsel %vm2942, %v2797, %v3166
        %v3223 = vsel %vm2943, %v2801, %v3167
        %v3224 = vsel %vm2944, %v2803, %v3168
        %v3225 = vsel %vm2945, %v2807, %v3169
        %v3226 = vsel %vm2946, %v2809, %v3170
        %v3227 = vsel %vm2947, %v2813, %v3171
        %v3228 = vsel %vm2948, %v2815, %v3172
        %v3229 = vsel %vm2949, %v2819, %v3173
        %v3230 = vsel %vm2950, %v2821, %v3174
        %v3231 = vsel %vm2951, %v2825, %v3175
        %v3232 = vsel %vm2952, %v2827, %v3176
        %v3233 = vsel %vm2953, %v2831, %v3177
        %v3234 = vsel %vm2954, %v2833, %v3178
        %v3235 = vsel %vm2955, %v2837, %v3179
        %v3236 = vsel %vm2956, %v2839, %v3180
        %v3237 = vsel %vm2957, %v2843, %v3181
        %v3238 = vsel %vm2958, %v2845, %v3182
        %v3239 = vsel %vm2959, %v2849, %v3183
        %v3240 = vsel %vm2960, %v2851, %v3184
        %v3241 = vsel %vm2961, %v2855, %v3185
        %v3242 = vsel %vm2962, %v2857, %v3186
        %v3243 = vsel %vm2963, %v2861, %v3187
        %v3244 = vsel %vm2964, %v2863, %v3188
        %v3245 = vsel %vm2965, %v2867, %v3189
        %v3246 = vsel %vm2966, %v2869, %v3190
        %v3247 = vsel %vm2967, %v2873, %v3191
        %v3248 = vsel %vm2968, %v2875, %v3192
        %v3249 = vsel %vm2969, %v2879, %v3193
        %v3250 = vsel %vm2970, %v2881, %v3194
        %v3251 = vsel %vm2971, %v2885, %v3195
        %v3252 = vsel %vm2972, %v2887, %v3196
        %v3253 = vsel %vm2973, %v2891, %v3197
        %v3254 = vsel %vm2974, %v2893, %v3198
        %v3255 = vsel %vm2975, %v2897, %v3199
        %v3256 = vsel %vm2976, %v2899, %v3200
        %v3257 = vsel %vm2977, %v2903, %v3201
        %v3258 = vsel %vm2978, %v2905, %v3202
        %v3259 = vsel %vm2979, %v2909, %v3203
        %v3260 = vsel %vm2980, %v2911, %v3204
        %v3261 = vsel %vm2981, %v2915, %v3205
        %v3262 = vsel %vm2982, %v2917, %v3206
        %v3263 = vsel %vm2983, %v2921, %v3207
        %v3264 = vsel %vm2984, %v2923, %v3208
        %v3265 = vsel %vm2985, %v2927, %v3209
        %v3266 = vsel %vm2986, %v2929, %v3210
        %v3267 = vld [vmem:[%s15] sm:$0xff]
        %v3268 = vld [vmem:[%s15 + $0x8] sm:$0xff]
        %v3269 = vld [vmem:[%s15 + $0x10] sm:$0xff]
        %v3270 = vld [vmem:[%s15 + $0x18] sm:$0xff]
        %v3271 = vld [vmem:[%s15 + $0x20] sm:$0xff]
        %v3272 = vld [vmem:[%s15 + $0x28] sm:$0xff]
        %v3273 = vld [vmem:[%s15 + $0x30] sm:$0xff]
        %v3274 = vld [vmem:[%s15 + $0x38] sm:$0xff]
        %v3275 = vld [vmem:[%s15 + $0x40] sm:$0xff]
        %v3276 = vld [vmem:[%s15 + $0x48] sm:$0xff]
        %v3277 = vld [vmem:[%s15 + $0x50] sm:$0xff]
        %v3278 = vld [vmem:[%s15 + $0x58] sm:$0xff]
        %v3279 = vld [vmem:[%s15 + $0x60] sm:$0xff]
        %v3280 = vld [vmem:[%s15 + $0x68] sm:$0xff]
        %v3281 = vld [vmem:[%s15 + $0x70] sm:$0xff]
        %v3282 = vld [vmem:[%s15 + $0x78] sm:$0xff]
        %v3283 = vld [vmem:[%s15 + $0x80] sm:$0xff]
        %v3284 = vld [vmem:[%s15 + $0x88] sm:$0xff]
        %v3285 = vld [vmem:[%s15 + $0x90] sm:$0xff]
        %v3286 = vld [vmem:[%s15 + $0x98] sm:$0xff]
        %v3287 = vld [vmem:[%s15 + $0xa0] sm:$0xff]
        %v3288 = vld [vmem:[%s15 + $0xa8] sm:$0xff]
        %v3289 = vld [vmem:[%s15 + $0xb0] sm:$0xff]
        %v3290 = vld [vmem:[%s15 + $0xb8] sm:$0xff]
        %v3291 = vld [vmem:[%s15 + $0xc0] sm:$0xff]
        %v3292 = vld [vmem:[%s15 + $0xc8] sm:$0xff]
        %v3293 = vld [vmem:[%s15 + $0xd0] sm:$0xff]
        %v3294 = vld [vmem:[%s15 + $0xd8] sm:$0xff]
        %v3295 = vld [vmem:[%s15 + $0xe0] sm:$0xff]
        %v3296 = vld [vmem:[%s15 + $0xe8] sm:$0xff]
        %v3297 = vld [vmem:[%s15 + $0xf0] sm:$0xff]
        %v3298 = vld [vmem:[%s15 + $0xf8] sm:$0xff]
        %v3299 = vld [vmem:[%s15 + $0x100] sm:$0xff]
        %v3300 = vld [vmem:[%s15 + $0x108] sm:$0xff]
        %v3301 = vld [vmem:[%s15 + $0x110] sm:$0xff]
        %v3302 = vld [vmem:[%s15 + $0x118] sm:$0xff]
        %v3303 = vld [vmem:[%s15 + $0x120] sm:$0xff]
        %v3304 = vld [vmem:[%s15 + $0x128] sm:$0xff]
        %v3305 = vld [vmem:[%s15 + $0x130] sm:$0xff]
        %v3306 = vld [vmem:[%s15 + $0x138] sm:$0xff]
        %v3307 = vld [vmem:[%s15 + $0x140] sm:$0xff]
        %v3308 = vld [vmem:[%s15 + $0x148] sm:$0xff]
        %v3309 = vld [vmem:[%s15 + $0x150] sm:$0xff]
        %v3310 = vld [vmem:[%s15 + $0x158] sm:$0xff]
        %v3311 = vld [vmem:[%s15 + $0x160] sm:$0xff]
        %v3312 = vld [vmem:[%s15 + $0x168] sm:$0xff]
        %v3313 = vld [vmem:[%s15 + $0x170] sm:$0xff]
        %v3314 = vld [vmem:[%s15 + $0x178] sm:$0xff]
        %v3315 = vld [vmem:[%s15 + $0x180] sm:$0xff]
        %v3316 = vld [vmem:[%s15 + $0x188] sm:$0xff]
        %v3317 = vld [vmem:[%s15 + $0x190] sm:$0xff]
        %v3318 = vld [vmem:[%s15 + $0x198] sm:$0xff]
        %v3319 = vld [vmem:[%s15 + $0x1a0] sm:$0xff]
        %v3320 = vld [vmem:[%s15 + $0x1a8] sm:$0xff]
        %v3321 = vld [vmem:[%s15 + $0x1b0] sm:$0xff]
        %v3322 = vld [vmem:[%s15 + $0x1b8] sm:$0xff]
        %v3323 = vld [vmem:[%s15 + $0x1c0] sm:$0xff]
        %v3324 = vld [vmem:[%s15 + $0x1c8] sm:$0xff]
        %v3325 = vld [vmem:[%s15 + $0x1d0] sm:$0xff]
        %v3326 = vld [vmem:[%s15 + $0x1d8] sm:$0xff]
        %v3327 = vld [vmem:[%s15 + $0x1e0] sm:$0xff]
        %v3328 = vld [vmem:[%s15 + $0x1e8] sm:$0xff]
        %v3329 = vld [vmem:[%s15 + $0x1f0] sm:$0xff]
        %v3330 = vld [vmem:[%s15 + $0x1f8] sm:$0xff]
        %v3331 = vld [vmem:[%s16] sm:$0x3]
        %v3333 = vlaneseq
        %v3334 = vshrl.u32 %v3333, 7
        %v3335 = vsub.s32 0, %v3334
        %v3336 = vrot.slane %v3331, %v3335
        %v3337 = vlaneseq
        %v3338 = vshrl.u32 %v3337, 7
        %v3339 = vsub.s32 1, %v3338
        %v3340 = vrot.slane %v3331, %v3339
        %3343 = vmatprep.subr.mxu0 %v3268
        %3344 = vmatpush1.msra.mxu0 %v3267
        %3345 = vmatprep.subr.mxu0 %v3270
        %3346 = vmatpush1.msra.mxu0 %v3269
        %3347 = vmatprep.subr.mxu0 %v3272
        %3348 = vmatpush1.msra.mxu0 %v3271
        %3349 = vmatprep.subr.mxu0 %v3274
        %3350 = vmatpush1.msra.mxu0 %v3273
        %3351 = vmatprep.subr.mxu0 %v3276
        %3352 = vmatpush1.msra.mxu0 %v3275
        %3353 = vmatprep.subr.mxu0 %v3278
        %3354 = vmatpush1.msra.mxu0 %v3277
        %3355 = vmatprep.subr.mxu0 %v3280
        %3356 = vmatpush1.msra.mxu0 %v3279
        %3357 = vmatprep.subr.mxu0 %v3282
        %3358 = vmatpush1.msra.mxu0 %v3281
        %3359 = vmatprep.subr.mxu0 %v3284
        %3360 = vmatpush1.msra.mxu0 %v3283
        %3361 = vmatprep.subr.mxu0 %v3286
        %3362 = vmatpush1.msra.mxu0 %v3285
        %3363 = vmatprep.subr.mxu0 %v3288
        %3364 = vmatpush1.msra.mxu0 %v3287
        %3365 = vmatprep.subr.mxu0 %v3290
        %3366 = vmatpush1.msra.mxu0 %v3289
        %3367 = vmatprep.subr.mxu0 %v3292
        %3368 = vmatpush1.msra.mxu0 %v3291
        %3369 = vmatprep.subr.mxu0 %v3294
        %3370 = vmatpush1.msra.mxu0 %v3293
        %3371 = vmatprep.subr.mxu0 %v3296
        %3372 = vmatpush1.msra.mxu0 %v3295
        %3373 = vmatprep.subr.mxu0 %v3298
        %3374 = vmatpush1.msra.mxu0 %v3297
        %3375 = vmatprep.subr.mxu0 %v3300
        %3376 = vmatpush1.msra.mxu0 %v3299
        %3377 = vmatprep.subr.mxu0 %v3302
        %3378 = vmatpush1.msra.mxu0 %v3301
        %3379 = vmatprep.subr.mxu0 %v3304
        %3380 = vmatpush1.msra.mxu0 %v3303
        %3381 = vmatprep.subr.mxu0 %v3306
        %3382 = vmatpush1.msra.mxu0 %v3305
        %3383 = vmatprep.subr.mxu0 %v3308
        %3384 = vmatpush1.msra.mxu0 %v3307
        %3385 = vmatprep.subr.mxu0 %v3310
        %3386 = vmatpush1.msra.mxu0 %v3309
        %3387 = vmatprep.subr.mxu0 %v3312
        %3388 = vmatpush1.msra.mxu0 %v3311
        %3389 = vmatprep.subr.mxu0 %v3314
        %3390 = vmatpush1.msra.mxu0 %v3313
        %3391 = vmatprep.subr.mxu0 %v3316
        %3392 = vmatpush1.msra.mxu0 %v3315
        %3393 = vmatprep.subr.mxu0 %v3318
        %3394 = vmatpush1.msra.mxu0 %v3317
        %3395 = vmatprep.subr.mxu0 %v3320
        %3396 = vmatpush1.msra.mxu0 %v3319
        %3397 = vmatprep.subr.mxu0 %v3322
        %3398 = vmatpush1.msra.mxu0 %v3321
        %3399 = vmatprep.subr.mxu0 %v3324
        %3400 = vmatpush1.msra.mxu0 %v3323
        %3401 = vmatprep.subr.mxu0 %v3326
        %3402 = vmatpush1.msra.mxu0 %v3325
        %3403 = vmatprep.subr.mxu0 %v3328
        %3404 = vmatpush1.msra.mxu0 %v3327
        %3405 = vmatprep.subr.mxu0 %v3330
        %3406 = vmatpush1.msra.mxu0 %v3329
        %3407 = vmatprep.mubr.f32.mxu0 %v3212
        %3408 = vmatmul.mubr.f32.gmra.mrb[0].mxu0 %v3211
        %v3409 = vpop.f32.mrb[0].mxu0
        %v3410 = vadd.f32 %v3336, %v3409
        %v3411 = vpop.f32.mrb[0].mxu0
        %v3412 = vadd.f32 %v3340, %v3411
        %3413 = vmatprep.mubr.f32.mxu0 %v3214
        %3414 = vmatmul.mubr.f32.gmra.mrb[0].mxu0 %v3213
        %v3415 = vpop.f32.mrb[0].mxu0
        %v3416 = vadd.f32 %v3336, %v3415
        %v3417 = vpop.f32.mrb[0].mxu0
        %v3418 = vadd.f32 %v3340, %v3417
        %3419 = vmatprep.mubr.f32.mxu0 %v3216
        %3420 = vmatmul.mubr.f32.gmra.mrb[0].mxu0 %v3215
        %v3421 = vpop.f32.mrb[0].mxu0
        %v3422 = vadd.f32 %v3336, %v3421
        %v3423 = vpop.f32.mrb[0].mxu0
        %v3424 = vadd.f32 %v3340, %v3423
        %3425 = vmatprep.mubr.f32.mxu0 %v3218
        %3426 = vmatmul.mubr.f32.gmra.mrb[0].mxu0 %v3217
        %v3427 = vpop.f32.mrb[0].mxu0
        %v3428 = vadd.f32 %v3336, %v3427
        %v3429 = vpop.f32.mrb[0].mxu0
        %v3430 = vadd.f32 %v3340, %v3429
        %3431 = vmatprep.mubr.f32.mxu0 %v3220
        %3432 = vmatmul.mubr.f32.gmra.mrb[0].mxu0 %v3219
        %v3433 = vpop.f32.mrb[0].mxu0
        %v3434 = vadd.f32 %v3336, %v3433
        %v3435 = vpop.f32.mrb[0].mxu0
        %v3436 = vadd.f32 %v3340, %v3435
        %3437 = vmatprep.mubr.f32.mxu0 %v3222
        %3438 = vmatmul.mubr.f32.gmra.mrb[0].mxu0 %v3221
        %v3439 = vpop.f32.mrb[0].mxu0
        %v3440 = vadd.f32 %v3336, %v3439
        %v3441 = vpop.f32.mrb[0].mxu0
        %v3442 = vadd.f32 %v3340, %v3441
        %3443 = vmatprep.mubr.f32.mxu0 %v3224
        %3444 = vmatmul.mubr.f32.gmra.mrb[0].mxu0 %v3223
        %v3445 = vpop.f32.mrb[0].mxu0
        %v3446 = vadd.f32 %v3336, %v3445
        %v3447 = vpop.f32.mrb[0].mxu0
        %v3448 = vadd.f32 %v3340, %v3447
        %3449 = vmatprep.mubr.f32.mxu0 %v3226
        %3450 = vmatmul.mubr.f32.gmra.mrb[0].mxu0 %v3225
        %v3451 = vpop.f32.mrb[0].mxu0
        %v3452 = vadd.f32 %v3336, %v3451
        %v3453 = vpop.f32.mrb[0].mxu0
        %v3454 = vadd.f32 %v3340, %v3453
        %3455 = vmatprep.mubr.f32.mxu0 %v3228
        %3456 = vmatmul.mubr.f32.gmra.mrb[0].mxu0 %v3227
        %v3457 = vpop.f32.mrb[0].mxu0
        %v3458 = vadd.f32 %v3336, %v3457
        %v3459 = vpop.f32.mrb[0].mxu0
        %v3460 = vadd.f32 %v3340, %v3459
        %3461 = vmatprep.mubr.f32.mxu0 %v3230
        %3462 = vmatmul.mubr.f32.gmra.mrb[0].mxu0 %v3229
        %v3463 = vpop.f32.mrb[0].mxu0
        %v3464 = vadd.f32 %v3336, %v3463
        %v3465 = vpop.f32.mrb[0].mxu0
        %v3466 = vadd.f32 %v3340, %v3465
        %3467 = vmatprep.mubr.f32.mxu0 %v3232
        %3468 = vmatmul.mubr.f32.gmra.mrb[0].mxu0 %v3231
        %v3469 = vpop.f32.mrb[0].mxu0
        %v3470 = vadd.f32 %v3336, %v3469
        %v3471 = vpop.f32.mrb[0].mxu0
        %v3472 = vadd.f32 %v3340, %v3471
        %3473 = vmatprep.mubr.f32.mxu0 %v3234
        %3474 = vmatmul.mubr.f32.gmra.mrb[0].mxu0 %v3233
        %v3475 = vpop.f32.mrb[0].mxu0
        %v3476 = vadd.f32 %v3336, %v3475
        %v3477 = vpop.f32.mrb[0].mxu0
        %v3478 = vadd.f32 %v3340, %v3477
        %3479 = vmatprep.mubr.f32.mxu0 %v3236
        %3480 = vmatmul.mubr.f32.gmra.mrb[0].mxu0 %v3235
        %v3481 = vpop.f32.mrb[0].mxu0
        %v3482 = vadd.f32 %v3336, %v3481
        %v3483 = vpop.f32.mrb[0].mxu0
        %v3484 = vadd.f32 %v3340, %v3483
        %3485 = vmatprep.mubr.f32.mxu0 %v3238
        %3486 = vmatmul.mubr.f32.gmra.mrb[0].mxu0 %v3237
        %v3487 = vpop.f32.mrb[0].mxu0
        %v3488 = vadd.f32 %v3336, %v3487
        %v3489 = vpop.f32.mrb[0].mxu0
        %v3490 = vadd.f32 %v3340, %v3489
        %3491 = vmatprep.mubr.f32.mxu0 %v3240
        %3492 = vmatmul.mubr.f32.gmra.mrb[0].mxu0 %v3239
        %v3493 = vpop.f32.mrb[0].mxu0
        %v3494 = vadd.f32 %v3336, %v3493
        %v3495 = vpop.f32.mrb[0].mxu0
        %v3496 = vadd.f32 %v3340, %v3495
        %3497 = vmatprep.mubr.f32.mxu0 %v3242
        %3498 = vmatmul.mubr.f32.gmra.mrb[0].mxu0 %v3241
        %v3499 = vpop.f32.mrb[0].mxu0
        %v3500 = vadd.f32 %v3336, %v3499
        %v3501 = vpop.f32.mrb[0].mxu0
        %v3502 = vadd.f32 %v3340, %v3501
        %3503 = vmatprep.mubr.f32.mxu0 %v3244
        %3504 = vmatmul.mubr.f32.gmra.mrb[0].mxu0 %v3243
        %v3505 = vpop.f32.mrb[0].mxu0
        %v3506 = vadd.f32 %v3336, %v3505
        %v3507 = vpop.f32.mrb[0].mxu0
        %v3508 = vadd.f32 %v3340, %v3507
        %3509 = vmatprep.mubr.f32.mxu0 %v3246
        %3510 = vmatmul.mubr.f32.gmra.mrb[0].mxu0 %v3245
        %v3511 = vpop.f32.mrb[0].mxu0
        %v3512 = vadd.f32 %v3336, %v3511
        %v3513 = vpop.f32.mrb[0].mxu0
        %v3514 = vadd.f32 %v3340, %v3513
        %3515 = vmatprep.mubr.f32.mxu0 %v3248
        %3516 = vmatmul.mubr.f32.gmra.mrb[0].mxu0 %v3247
        %v3517 = vpop.f32.mrb[0].mxu0
        %v3518 = vadd.f32 %v3336, %v3517
        %v3519 = vpop.f32.mrb[0].mxu0
        %v3520 = vadd.f32 %v3340, %v3519
        %3521 = vmatprep.mubr.f32.mxu0 %v3250
        %3522 = vmatmul.mubr.f32.gmra.mrb[0].mxu0 %v3249
        %v3523 = vpop.f32.mrb[0].mxu0
        %v3524 = vadd.f32 %v3336, %v3523
        %v3525 = vpop.f32.mrb[0].mxu0
        %v3526 = vadd.f32 %v3340, %v3525
        %3527 = vmatprep.mubr.f32.mxu0 %v3252
        %3528 = vmatmul.mubr.f32.gmra.mrb[0].mxu0 %v3251
        %v3529 = vpop.f32.mrb[0].mxu0
        %v3530 = vadd.f32 %v3336, %v3529
        %v3531 = vpop.f32.mrb[0].mxu0
        %v3532 = vadd.f32 %v3340, %v3531
        %3533 = vmatprep.mubr.f32.mxu0 %v3254
        %3534 = vmatmul.mubr.f32.gmra.mrb[0].mxu0 %v3253
        %v3535 = vpop.f32.mrb[0].mxu0
        %v3536 = vadd.f32 %v3336, %v3535
        %v3537 = vpop.f32.mrb[0].mxu0
        %v3538 = vadd.f32 %v3340, %v3537
        %3539 = vmatprep.mubr.f32.mxu0 %v3256
        %3540 = vmatmul.mubr.f32.gmra.mrb[0].mxu0 %v3255
        %v3541 = vpop.f32.mrb[0].mxu0
        %v3542 = vadd.f32 %v3336, %v3541
        %v3543 = vpop.f32.mrb[0].mxu0
        %v3544 = vadd.f32 %v3340, %v3543
        %3545 = vmatprep.mubr.f32.mxu0 %v3258
        %3546 = vmatmul.mubr.f32.gmra.mrb[0].mxu0 %v3257
        %v3547 = vpop.f32.mrb[0].mxu0
        %v3548 = vadd.f32 %v3336, %v3547
        %v3549 = vpop.f32.mrb[0].mxu0
        %v3550 = vadd.f32 %v3340, %v3549
        %3551 = vmatprep.mubr.f32.mxu0 %v3260
        %3552 = vmatmul.mubr.f32.gmra.mrb[0].mxu0 %v3259
        %v3553 = vpop.f32.mrb[0].mxu0
        %v3554 = vadd.f32 %v3336, %v3553
        %v3555 = vpop.f32.mrb[0].mxu0
        %v3556 = vadd.f32 %v3340, %v3555
        %3557 = vmatprep.mubr.f32.mxu0 %v3262
        %3558 = vmatmul.mubr.f32.gmra.mrb[0].mxu0 %v3261
        %v3559 = vpop.f32.mrb[0].mxu0
        %v3560 = vadd.f32 %v3336, %v3559
        %v3561 = vpop.f32.mrb[0].mxu0
        %v3562 = vadd.f32 %v3340, %v3561
        %3563 = vmatprep.mubr.f32.mxu0 %v3264
        %3564 = vmatmul.mubr.f32.gmra.mrb[0].mxu0 %v3263
        %v3565 = vpop.f32.mrb[0].mxu0
        %v3566 = vadd.f32 %v3336, %v3565
        %v3567 = vpop.f32.mrb[0].mxu0
        %v3568 = vadd.f32 %v3340, %v3567
        %3569 = vmatprep.mubr.f32.mxu0 %v3266
        %3570 = vmatmul.mubr.f32.gmra.mrb[0].mxu0 %v3265
        %v3571 = vpop.f32.mrb[0].mxu0
        %v3572 = vadd.f32 %v3336, %v3571
        %v3573 = vpop.f32.mrb[0].mxu0
        %v3574 = vadd.f32 %v3340, %v3573
        %3575 = vdwg.mxu0
        %vm3576 = vcmp.gt.f32.partialorder %v3410, 0.0
        %vm3577 = vcmp.gt.f32.partialorder %v3416, 0.0
        %vm3578 = vcmp.gt.f32.partialorder %v3422, 0.0
        %vm3579 = vcmp.gt.f32.partialorder %v3428, 0.0
        %vm3580 = vcmp.gt.f32.partialorder %v3434, 0.0
        %vm3581 = vcmp.gt.f32.partialorder %v3440, 0.0
        %vm3582 = vcmp.gt.f32.partialorder %v3446, 0.0
        %vm3583 = vcmp.gt.f32.partialorder %v3452, 0.0
        %vm3584 = vcmp.gt.f32.partialorder %v3458, 0.0
        %vm3585 = vcmp.gt.f32.partialorder %v3464, 0.0
        %vm3586 = vcmp.gt.f32.partialorder %v3470, 0.0
        %vm3587 = vcmp.gt.f32.partialorder %v3476, 0.0
        %vm3588 = vcmp.gt.f32.partialorder %v3482, 0.0
        %vm3589 = vcmp.gt.f32.partialorder %v3488, 0.0
        %vm3590 = vcmp.gt.f32.partialorder %v3494, 0.0
        %vm3591 = vcmp.gt.f32.partialorder %v3500, 0.0
        %vm3592 = vcmp.gt.f32.partialorder %v3506, 0.0
        %vm3593 = vcmp.gt.f32.partialorder %v3512, 0.0
        %vm3594 = vcmp.gt.f32.partialorder %v3518, 0.0
        %vm3595 = vcmp.gt.f32.partialorder %v3524, 0.0
        %vm3596 = vcmp.gt.f32.partialorder %v3530, 0.0
        %vm3597 = vcmp.gt.f32.partialorder %v3536, 0.0
        %vm3598 = vcmp.gt.f32.partialorder %v3542, 0.0
        %vm3599 = vcmp.gt.f32.partialorder %v3548, 0.0
        %vm3600 = vcmp.gt.f32.partialorder %v3554, 0.0
        %vm3601 = vcmp.gt.f32.partialorder %v3560, 0.0
        %vm3602 = vcmp.gt.f32.partialorder %v3566, 0.0
        %vm3603 = vcmp.gt.f32.partialorder %v3572, 0.0
        %v3604 = vmin.f32 %v3410, 0.0
        %v3605 = vmin.f32 %v3416, 0.0
        %v3606 = vmin.f32 %v3422, 0.0
        %v3607 = vmin.f32 %v3428, 0.0
        %v3608 = vmin.f32 %v3434, 0.0
        %v3609 = vmin.f32 %v3440, 0.0
        %v3610 = vmin.f32 %v3446, 0.0
        %v3611 = vmin.f32 %v3452, 0.0
        %v3612 = vmin.f32 %v3458, 0.0
        %v3613 = vmin.f32 %v3464, 0.0
        %v3614 = vmin.f32 %v3470, 0.0
        %v3615 = vmin.f32 %v3476, 0.0
        %v3616 = vmin.f32 %v3482, 0.0
        %v3617 = vmin.f32 %v3488, 0.0
        %v3618 = vmin.f32 %v3494, 0.0
        %v3619 = vmin.f32 %v3500, 0.0
        %v3620 = vmin.f32 %v3506, 0.0
        %v3621 = vmin.f32 %v3512, 0.0
        %v3622 = vmin.f32 %v3518, 0.0
        %v3623 = vmin.f32 %v3524, 0.0
        %v3624 = vmin.f32 %v3530, 0.0
        %v3625 = vmin.f32 %v3536, 0.0
        %v3626 = vmin.f32 %v3542, 0.0
        %v3627 = vmin.f32 %v3548, 0.0
        %v3628 = vmin.f32 %v3554, 0.0
        %v3629 = vmin.f32 %v3560, 0.0
        %v3630 = vmin.f32 %v3566, 0.0
        %v3631 = vmin.f32 %v3572, 0.0
        %v3632 = vmul.f32 %v3604, 1.442695
        %v3633 = vpow.pop %v3632
        %v3634 = vmul.f32 %v3605, 1.442695
        %v3635 = vpow.pop %v3634
        %v3636 = vmul.f32 %v3606, 1.442695
        %v3637 = vpow.pop %v3636
        %v3638 = vmul.f32 %v3607, 1.442695
        %v3639 = vpow.pop %v3638
        %v3640 = vmul.f32 %v3608, 1.442695
        %v3641 = vpow.pop %v3640
        %v3642 = vmul.f32 %v3609, 1.442695
        %v3643 = vpow.pop %v3642
        %v3644 = vmul.f32 %v3610, 1.442695
        %v3645 = vpow.pop %v3644
        %v3646 = vmul.f32 %v3611, 1.442695
        %v3647 = vpow.pop %v3646
        %v3648 = vmul.f32 %v3612, 1.442695
        %v3649 = vpow.pop %v3648
        %v3650 = vmul.f32 %v3613, 1.442695
        %v3651 = vpow.pop %v3650
        %v3652 = vmul.f32 %v3614, 1.442695
        %v3653 = vpow.pop %v3652
        %v3654 = vmul.f32 %v3615, 1.442695
        %v3655 = vpow.pop %v3654
        %v3656 = vmul.f32 %v3616, 1.442695
        %v3657 = vpow.pop %v3656
        %v3658 = vmul.f32 %v3617, 1.442695
        %v3659 = vpow.pop %v3658
        %v3660 = vmul.f32 %v3618, 1.442695
        %v3661 = vpow.pop %v3660
        %v3662 = vmul.f32 %v3619, 1.442695
        %v3663 = vpow.pop %v3662
        %v3664 = vmul.f32 %v3620, 1.442695
        %v3665 = vpow.pop %v3664
        %v3666 = vmul.f32 %v3621, 1.442695
        %v3667 = vpow.pop %v3666
        %v3668 = vmul.f32 %v3622, 1.442695
        %v3669 = vpow.pop %v3668
        %v3670 = vmul.f32 %v3623, 1.442695
        %v3671 = vpow.pop %v3670
        %v3672 = vmul.f32 %v3624, 1.442695
        %v3673 = vpow.pop %v3672
        %v3674 = vmul.f32 %v3625, 1.442695
        %v3675 = vpow.pop %v3674
        %v3676 = vmul.f32 %v3626, 1.442695
        %v3677 = vpow.pop %v3676
        %v3678 = vmul.f32 %v3627, 1.442695
        %v3679 = vpow.pop %v3678
        %v3680 = vmul.f32 %v3628, 1.442695
        %v3681 = vpow.pop %v3680
        %v3682 = vmul.f32 %v3629, 1.442695
        %v3683 = vpow.pop %v3682
        %v3684 = vmul.f32 %v3630, 1.442695
        %v3685 = vpow.pop %v3684
        %v3686 = vmul.f32 %v3631, 1.442695
        %v3687 = vpow.pop %v3686
        %v3688 = vsub.f32 %v3633, 1.0
        %v3689 = vsub.f32 %v3635, 1.0
        %v3690 = vsub.f32 %v3637, 1.0
        %v3691 = vsub.f32 %v3639, 1.0
        %v3692 = vsub.f32 %v3641, 1.0
        %v3693 = vsub.f32 %v3643, 1.0
        %v3694 = vsub.f32 %v3645, 1.0
        %v3695 = vsub.f32 %v3647, 1.0
        %v3696 = vsub.f32 %v3649, 1.0
        %v3697 = vsub.f32 %v3651, 1.0
        %v3698 = vsub.f32 %v3653, 1.0
        %v3699 = vsub.f32 %v3655, 1.0
        %v3700 = vsub.f32 %v3657, 1.0
        %v3701 = vsub.f32 %v3659, 1.0
        %v3702 = vsub.f32 %v3661, 1.0
        %v3703 = vsub.f32 %v3663, 1.0
        %v3704 = vsub.f32 %v3665, 1.0
        %v3705 = vsub.f32 %v3667, 1.0
        %v3706 = vsub.f32 %v3669, 1.0
        %v3707 = vsub.f32 %v3671, 1.0
        %v3708 = vsub.f32 %v3673, 1.0
        %v3709 = vsub.f32 %v3675, 1.0
        %v3710 = vsub.f32 %v3677, 1.0
        %v3711 = vsub.f32 %v3679, 1.0
        %v3712 = vsub.f32 %v3681, 1.0
        %v3713 = vsub.f32 %v3683, 1.0
        %v3714 = vsub.f32 %v3685, 1.0
        %v3715 = vsub.f32 %v3687, 1.0
        %v3716 = vsel %vm3576, %v3410, %v3688
        %v3717 = vsel %vm3577, %v3416, %v3689
        %v3718 = vsel %vm3578, %v3422, %v3690
        %v3719 = vsel %vm3579, %v3428, %v3691
        %v3720 = vsel %vm3580, %v3434, %v3692
        %v3721 = vsel %vm3581, %v3440, %v3693
        %v3722 = vsel %vm3582, %v3446, %v3694
        %v3723 = vsel %vm3583, %v3452, %v3695
        %v3724 = vsel %vm3584, %v3458, %v3696
        %v3725 = vsel %vm3585, %v3464, %v3697
        %v3726 = vsel %vm3586, %v3470, %v3698
        %v3727 = vsel %vm3587, %v3476, %v3699
        %v3728 = vsel %vm3588, %v3482, %v3700
        %v3729 = vsel %vm3589, %v3488, %v3701
        %v3730 = vsel %vm3590, %v3494, %v3702
        %v3731 = vsel %vm3591, %v3500, %v3703
        %v3732 = vsel %vm3592, %v3506, %v3704
        %v3733 = vsel %vm3593, %v3512, %v3705
        %v3734 = vsel %vm3594, %v3518, %v3706
        %v3735 = vsel %vm3595, %v3524, %v3707
        %v3736 = vsel %vm3596, %v3530, %v3708
        %v3737 = vsel %vm3597, %v3536, %v3709
        %v3738 = vsel %vm3598, %v3542, %v3710
        %v3739 = vsel %vm3599, %v3548, %v3711
        %v3740 = vsel %vm3600, %v3554, %v3712
        %v3741 = vsel %vm3601, %v3560, %v3713
        %v3742 = vsel %vm3602, %v3566, %v3714
        %v3743 = vsel %vm3603, %v3572, %v3715
        %v3744 = vand.u32 2147483647, %v3412
        %v3745 = vand.u32 2147483647, %v3418
        %v3746 = vand.u32 2147483647, %v3424
        %v3747 = vand.u32 2147483647, %v3430
        %v3748 = vand.u32 2147483647, %v3436
        %v3749 = vand.u32 2147483647, %v3442
        %v3750 = vand.u32 2147483647, %v3448
        %v3751 = vand.u32 2147483647, %v3454
        %v3752 = vand.u32 2147483647, %v3460
        %v3753 = vand.u32 2147483647, %v3466
        %v3754 = vand.u32 2147483647, %v3472
        %v3755 = vand.u32 2147483647, %v3478
        %v3756 = vand.u32 2147483647, %v3484
        %v3757 = vand.u32 2147483647, %v3490
        %v3758 = vand.u32 2147483647, %v3496
        %v3759 = vand.u32 2147483647, %v3502
        %v3760 = vand.u32 2147483647, %v3508
        %v3761 = vand.u32 2147483647, %v3514
        %v3762 = vand.u32 2147483647, %v3520
        %v3763 = vand.u32 2147483647, %v3526
        %v3764 = vand.u32 2147483647, %v3532
        %v3765 = vand.u32 2147483647, %v3538
        %v3766 = vand.u32 2147483647, %v3544
        %v3767 = vand.u32 2147483647, %v3550
        %v3768 = vand.u32 2147483647, %v3556
        %v3769 = vand.u32 2147483647, %v3562
        %v3770 = vand.u32 2147483647, %v3568
        %v3771 = vand.u32 2147483647, %v3574
        %v3772 = vsub.f32 0.0, %v3744
        %v3773 = vsub.f32 0.0, %v3745
        %v3774 = vsub.f32 0.0, %v3746
        %v3775 = vsub.f32 0.0, %v3747
        %v3776 = vsub.f32 0.0, %v3748
        %v3777 = vsub.f32 0.0, %v3749
        %v3778 = vsub.f32 0.0, %v3750
        %v3779 = vsub.f32 0.0, %v3751
        %v3780 = vsub.f32 0.0, %v3752
        %v3781 = vsub.f32 0.0, %v3753
        %v3782 = vsub.f32 0.0, %v3754
        %v3783 = vsub.f32 0.0, %v3755
        %v3784 = vsub.f32 0.0, %v3756
        %v3785 = vsub.f32 0.0, %v3757
        %v3786 = vsub.f32 0.0, %v3758
        %v3787 = vsub.f32 0.0, %v3759
        %v3788 = vsub.f32 0.0, %v3760
        %v3789 = vsub.f32 0.0, %v3761
        %v3790 = vsub.f32 0.0, %v3762
        %v3791 = vsub.f32 0.0, %v3763
        %v3792 = vsub.f32 0.0, %v3764
        %v3793 = vsub.f32 0.0, %v3765
        %v3794 = vsub.f32 0.0, %v3766
        %v3795 = vsub.f32 0.0, %v3767
        %v3796 = vsub.f32 0.0, %v3768
        %v3797 = vsub.f32 0.0, %v3769
        %v3798 = vsub.f32 0.0, %v3770
        %v3799 = vsub.f32 0.0, %v3771
        %v3800 = vmul.f32 %v3772, 1.442695
        %v3801 = vpow.pop %v3800
        %v3802 = vmul.f32 %v3773, 1.442695
        %v3803 = vpow.pop %v3802
        %v3804 = vmul.f32 %v3774, 1.442695
        %v3805 = vpow.pop %v3804
        %v3806 = vmul.f32 %v3775, 1.442695
        %v3807 = vpow.pop %v3806
        %v3808 = vmul.f32 %v3776, 1.442695
        %v3809 = vpow.pop %v3808
        %v3810 = vmul.f32 %v3777, 1.442695
        %v3811 = vpow.pop %v3810
        %v3812 = vmul.f32 %v3778, 1.442695
        %v3813 = vpow.pop %v3812
        %v3814 = vmul.f32 %v3779, 1.442695
        %v3815 = vpow.pop %v3814
        %v3816 = vmul.f32 %v3780, 1.442695
        %v3817 = vpow.pop %v3816
        %v3818 = vmul.f32 %v3781, 1.442695
        %v3819 = vpow.pop %v3818
        %v3820 = vmul.f32 %v3782, 1.442695
        %v3821 = vpow.pop %v3820
        %v3822 = vmul.f32 %v3783, 1.442695
        %v3823 = vpow.pop %v3822
        %v3824 = vmul.f32 %v3784, 1.442695
        %v3825 = vpow.pop %v3824
        %v3826 = vmul.f32 %v3785, 1.442695
        %v3827 = vpow.pop %v3826
        %v3828 = vmul.f32 %v3786, 1.442695
        %v3829 = vpow.pop %v3828
        %v3830 = vmul.f32 %v3787, 1.442695
        %v3831 = vpow.pop %v3830
        %v3832 = vmul.f32 %v3788, 1.442695
        %v3833 = vpow.pop %v3832
        %v3834 = vmul.f32 %v3789, 1.442695
        %v3835 = vpow.pop %v3834
        %v3836 = vmul.f32 %v3790, 1.442695
        %v3837 = vpow.pop %v3836
        %v3838 = vmul.f32 %v3791, 1.442695
        %v3839 = vpow.pop %v3838
        %v3840 = vmul.f32 %v3792, 1.442695
        %v3841 = vpow.pop %v3840
        %v3842 = vmul.f32 %v3793, 1.442695
        %v3843 = vpow.pop %v3842
        %v3844 = vmul.f32 %v3794, 1.442695
        %v3845 = vpow.pop %v3844
        %v3846 = vmul.f32 %v3795, 1.442695
        %v3847 = vpow.pop %v3846
        %v3848 = vmul.f32 %v3796, 1.442695
        %v3849 = vpow.pop %v3848
        %v3850 = vmul.f32 %v3797, 1.442695
        %v3851 = vpow.pop %v3850
        %v3852 = vmul.f32 %v3798, 1.442695
        %v3853 = vpow.pop %v3852
        %v3854 = vmul.f32 %v3799, 1.442695
        %v3855 = vpow.pop %v3854
        %vm3856 = vcmp.ge.f32.partialorder %v3412, 0.0
        %vm3857 = vcmp.ge.f32.partialorder %v3418, 0.0
        %vm3858 = vcmp.ge.f32.partialorder %v3424, 0.0
        %vm3859 = vcmp.ge.f32.partialorder %v3430, 0.0
        %vm3860 = vcmp.ge.f32.partialorder %v3436, 0.0
        %vm3861 = vcmp.ge.f32.partialorder %v3442, 0.0
        %vm3862 = vcmp.ge.f32.partialorder %v3448, 0.0
        %vm3863 = vcmp.ge.f32.partialorder %v3454, 0.0
        %vm3864 = vcmp.ge.f32.partialorder %v3460, 0.0
        %vm3865 = vcmp.ge.f32.partialorder %v3466, 0.0
        %vm3866 = vcmp.ge.f32.partialorder %v3472, 0.0
        %vm3867 = vcmp.ge.f32.partialorder %v3478, 0.0
        %vm3868 = vcmp.ge.f32.partialorder %v3484, 0.0
        %vm3869 = vcmp.ge.f32.partialorder %v3490, 0.0
        %vm3870 = vcmp.ge.f32.partialorder %v3496, 0.0
        %vm3871 = vcmp.ge.f32.partialorder %v3502, 0.0
        %vm3872 = vcmp.ge.f32.partialorder %v3508, 0.0
        %vm3873 = vcmp.ge.f32.partialorder %v3514, 0.0
        %vm3874 = vcmp.ge.f32.partialorder %v3520, 0.0
        %vm3875 = vcmp.ge.f32.partialorder %v3526, 0.0
        %vm3876 = vcmp.ge.f32.partialorder %v3532, 0.0
        %vm3877 = vcmp.ge.f32.partialorder %v3538, 0.0
        %vm3878 = vcmp.ge.f32.partialorder %v3544, 0.0
        %vm3879 = vcmp.ge.f32.partialorder %v3550, 0.0
        %vm3880 = vcmp.ge.f32.partialorder %v3556, 0.0
        %vm3881 = vcmp.ge.f32.partialorder %v3562, 0.0
        %vm3882 = vcmp.ge.f32.partialorder %v3568, 0.0
        %vm3883 = vcmp.ge.f32.partialorder %v3574, 0.0
        %v3884 = vadd.f32 %v3801, 1.0
        %v3885 = vadd.f32 %v3803, 1.0
        %v3886 = vadd.f32 %v3805, 1.0
        %v3887 = vadd.f32 %v3807, 1.0
        %v3888 = vadd.f32 %v3809, 1.0
        %v3889 = vadd.f32 %v3811, 1.0
        %v3890 = vadd.f32 %v3813, 1.0
        %v3891 = vadd.f32 %v3815, 1.0
        %v3892 = vadd.f32 %v3817, 1.0
        %v3893 = vadd.f32 %v3819, 1.0
        %v3894 = vadd.f32 %v3821, 1.0
        %v3895 = vadd.f32 %v3823, 1.0
        %v3896 = vadd.f32 %v3825, 1.0
        %v3897 = vadd.f32 %v3827, 1.0
        %v3898 = vadd.f32 %v3829, 1.0
        %v3899 = vadd.f32 %v3831, 1.0
        %v3900 = vadd.f32 %v3833, 1.0
        %v3901 = vadd.f32 %v3835, 1.0
        %v3902 = vadd.f32 %v3837, 1.0
        %v3903 = vadd.f32 %v3839, 1.0
        %v3904 = vadd.f32 %v3841, 1.0
        %v3905 = vadd.f32 %v3843, 1.0
        %v3906 = vadd.f32 %v3845, 1.0
        %v3907 = vadd.f32 %v3847, 1.0
        %v3908 = vadd.f32 %v3849, 1.0
        %v3909 = vadd.f32 %v3851, 1.0
        %v3910 = vadd.f32 %v3853, 1.0
        %v3911 = vadd.f32 %v3855, 1.0
        %v3912 = vrcp.pop %v3884
        %v3913 = vmul.f32 1.0, %v3912
        %v3914 = vrcp.pop %v3885
        %v3915 = vmul.f32 1.0, %v3914
        %v3916 = vrcp.pop %v3886
        %v3917 = vmul.f32 1.0, %v3916
        %v3918 = vrcp.pop %v3887
        %v3919 = vmul.f32 1.0, %v3918
        %v3920 = vrcp.pop %v3888
        %v3921 = vmul.f32 1.0, %v3920
        %v3922 = vrcp.pop %v3889
        %v3923 = vmul.f32 1.0, %v3922
        %v3924 = vrcp.pop %v3890
        %v3925 = vmul.f32 1.0, %v3924
        %v3926 = vrcp.pop %v3891
        %v3927 = vmul.f32 1.0, %v3926
        %v3928 = vrcp.pop %v3892
        %v3929 = vmul.f32 1.0, %v3928
        %v3930 = vrcp.pop %v3893
        %v3931 = vmul.f32 1.0, %v3930
        %v3932 = vrcp.pop %v3894
        %v3933 = vmul.f32 1.0, %v3932
        %v3934 = vrcp.pop %v3895
        %v3935 = vmul.f32 1.0, %v3934
        %v3936 = vrcp.pop %v3896
        %v3937 = vmul.f32 1.0, %v3936
        %v3938 = vrcp.pop %v3897
        %v3939 = vmul.f32 1.0, %v3938
        %v3940 = vrcp.pop %v3898
        %v3941 = vmul.f32 1.0, %v3940
        %v3942 = vrcp.pop %v3899
        %v3943 = vmul.f32 1.0, %v3942
        %v3944 = vrcp.pop %v3900
        %v3945 = vmul.f32 1.0, %v3944
        %v3946 = vrcp.pop %v3901
        %v3947 = vmul.f32 1.0, %v3946
        %v3948 = vrcp.pop %v3902
        %v3949 = vmul.f32 1.0, %v3948
        %v3950 = vrcp.pop %v3903
        %v3951 = vmul.f32 1.0, %v3950
        %v3952 = vrcp.pop %v3904
        %v3953 = vmul.f32 1.0, %v3952
        %v3954 = vrcp.pop %v3905
        %v3955 = vmul.f32 1.0, %v3954
        %v3956 = vrcp.pop %v3906
        %v3957 = vmul.f32 1.0, %v3956
        %v3958 = vrcp.pop %v3907
        %v3959 = vmul.f32 1.0, %v3958
        %v3960 = vrcp.pop %v3908
        %v3961 = vmul.f32 1.0, %v3960
        %v3962 = vrcp.pop %v3909
        %v3963 = vmul.f32 1.0, %v3962
        %v3964 = vrcp.pop %v3910
        %v3965 = vmul.f32 1.0, %v3964
        %v3966 = vrcp.pop %v3911
        %v3967 = vmul.f32 1.0, %v3966
        %v3968 = vmul.f32 %v3801, %v3912
        %v3969 = vmul.f32 %v3803, %v3914
        %v3970 = vmul.f32 %v3805, %v3916
        %v3971 = vmul.f32 %v3807, %v3918
        %v3972 = vmul.f32 %v3809, %v3920
        %v3973 = vmul.f32 %v3811, %v3922
        %v3974 = vmul.f32 %v3813, %v3924
        %v3975 = vmul.f32 %v3815, %v3926
        %v3976 = vmul.f32 %v3817, %v3928
        %v3977 = vmul.f32 %v3819, %v3930
        %v3978 = vmul.f32 %v3821, %v3932
        %v3979 = vmul.f32 %v3823, %v3934
        %v3980 = vmul.f32 %v3825, %v3936
        %v3981 = vmul.f32 %v3827, %v3938
        %v3982 = vmul.f32 %v3829, %v3940
        %v3983 = vmul.f32 %v3831, %v3942
        %v3984 = vmul.f32 %v3833, %v3944
        %v3985 = vmul.f32 %v3835, %v3946
        %v3986 = vmul.f32 %v3837, %v3948
        %v3987 = vmul.f32 %v3839, %v3950
        %v3988 = vmul.f32 %v3841, %v3952
        %v3989 = vmul.f32 %v3843, %v3954
        %v3990 = vmul.f32 %v3845, %v3956
        %v3991 = vmul.f32 %v3847, %v3958
        %v3992 = vmul.f32 %v3849, %v3960
        %v3993 = vmul.f32 %v3851, %v3962
        %v3994 = vmul.f32 %v3853, %v3964
        %v3995 = vmul.f32 %v3855, %v3966
        %v3996 = vsel %vm3856, %v3913, %v3968
        %v3997 = vsel %vm3857, %v3915, %v3969
        %v3998 = vsel %vm3858, %v3917, %v3970
        %v3999 = vsel %vm3859, %v3919, %v3971
        %v4000 = vsel %vm3860, %v3921, %v3972
        %v4001 = vsel %vm3861, %v3923, %v3973
        %v4002 = vsel %vm3862, %v3925, %v3974
        %v4003 = vsel %vm3863, %v3927, %v3975
        %v4004 = vsel %vm3864, %v3929, %v3976
        %v4005 = vsel %vm3865, %v3931, %v3977
        %v4006 = vsel %vm3866, %v3933, %v3978
        %v4007 = vsel %vm3867, %v3935, %v3979
        %v4008 = vsel %vm3868, %v3937, %v3980
        %v4009 = vsel %vm3869, %v3939, %v3981
        %v4010 = vsel %vm3870, %v3941, %v3982
        %v4011 = vsel %vm3871, %v3943, %v3983
        %v4012 = vsel %vm3872, %v3945, %v3984
        %v4013 = vsel %vm3873, %v3947, %v3985
        %v4014 = vsel %vm3874, %v3949, %v3986
        %v4015 = vsel %vm3875, %v3951, %v3987
        %v4016 = vsel %vm3876, %v3953, %v3988
        %v4017 = vsel %vm3877, %v3955, %v3989
        %v4018 = vsel %vm3878, %v3957, %v3990
        %v4019 = vsel %vm3879, %v3959, %v3991
        %v4020 = vsel %vm3880, %v3961, %v3992
        %v4021 = vsel %vm3881, %v3963, %v3993
        %v4022 = vsel %vm3882, %v3965, %v3994
        %v4023 = vsel %vm3883, %v3967, %v3995
        %v4024 = vld [vmem:[%s3] sm:$0xff]
        %v4025 = vld [vmem:[%s3 + $0x8] sm:$0xff]
        %v4026 = vld [vmem:[%s3 + $0x10] sm:$0xff]
        %v4027 = vld [vmem:[%s3 + $0x18] sm:$0xff]
        %v4028 = vld [vmem:[%s3 + $0x20] sm:$0xff]
        %v4029 = vld [vmem:[%s3 + $0x28] sm:$0xff]
        %v4030 = vld [vmem:[%s3 + $0x30] sm:$0xff]
        %v4031 = vld [vmem:[%s3 + $0x38] sm:$0xff]
        %4033 = vset.pattern.permute.xlu0 0
        %4034 = vperm.xlu0 %4033, %v3996
        %v4035 = vpop.permute.xlu0 %4034
        %4038 = vset.pattern.permute.xlu0 0
        %4039 = vperm.xlu0 %4038, %v3997
        %v4040 = vpop.permute.xlu0 %4039
        %4043 = vset.pattern.permute.xlu0 0
        %4044 = vperm.xlu0 %4043, %v3998
        %v4045 = vpop.permute.xlu0 %4044
        %4048 = vset.pattern.permute.xlu0 0
        %4049 = vperm.xlu0 %4048, %v3999
        %v4050 = vpop.permute.xlu0 %4049
        %4053 = vset.pattern.permute.xlu0 0
        %4054 = vperm.xlu0 %4053, %v4000
        %v4055 = vpop.permute.xlu0 %4054
        %4058 = vset.pattern.permute.xlu0 0
        %4059 = vperm.xlu0 %4058, %v4001
        %v4060 = vpop.permute.xlu0 %4059
        %4063 = vset.pattern.permute.xlu0 0
        %4064 = vperm.xlu0 %4063, %v4002
        %v4065 = vpop.permute.xlu0 %4064
        %4068 = vset.pattern.permute.xlu0 0
        %4069 = vperm.xlu0 %4068, %v4003
        %v4070 = vpop.permute.xlu0 %4069
        %4073 = vset.pattern.permute.xlu0 0
        %4074 = vperm.xlu0 %4073, %v4004
        %v4075 = vpop.permute.xlu0 %4074
        %4078 = vset.pattern.permute.xlu0 0
        %4079 = vperm.xlu0 %4078, %v4005
        %v4080 = vpop.permute.xlu0 %4079
        %4083 = vset.pattern.permute.xlu0 0
        %4084 = vperm.xlu0 %4083, %v4006
        %v4085 = vpop.permute.xlu0 %4084
        %4088 = vset.pattern.permute.xlu0 0
        %4089 = vperm.xlu0 %4088, %v4007
        %v4090 = vpop.permute.xlu0 %4089
        %4093 = vset.pattern.permute.xlu0 0
        %4094 = vperm.xlu0 %4093, %v4008
        %v4095 = vpop.permute.xlu0 %4094
        %4098 = vset.pattern.permute.xlu0 0
        %4099 = vperm.xlu0 %4098, %v4009
        %v4100 = vpop.permute.xlu0 %4099
        %4103 = vset.pattern.permute.xlu0 0
        %4104 = vperm.xlu0 %4103, %v4010
        %v4105 = vpop.permute.xlu0 %4104
        %4108 = vset.pattern.permute.xlu0 0
        %4109 = vperm.xlu0 %4108, %v4011
        %v4110 = vpop.permute.xlu0 %4109
        %4113 = vset.pattern.permute.xlu0 0
        %4114 = vperm.xlu0 %4113, %v4012
        %v4115 = vpop.permute.xlu0 %4114
        %4118 = vset.pattern.permute.xlu0 0
        %4119 = vperm.xlu0 %4118, %v4013
        %v4120 = vpop.permute.xlu0 %4119
        %4123 = vset.pattern.permute.xlu0 0
        %4124 = vperm.xlu0 %4123, %v4014
        %v4125 = vpop.permute.xlu0 %4124
        %4128 = vset.pattern.permute.xlu0 0
        %4129 = vperm.xlu0 %4128, %v4015
        %v4130 = vpop.permute.xlu0 %4129
        %4133 = vset.pattern.permute.xlu0 0
        %4134 = vperm.xlu0 %4133, %v4016
        %v4135 = vpop.permute.xlu0 %4134
        %4138 = vset.pattern.permute.xlu0 0
        %4139 = vperm.xlu0 %4138, %v4017
        %v4140 = vpop.permute.xlu0 %4139
        %4143 = vset.pattern.permute.xlu0 0
        %4144 = vperm.xlu0 %4143, %v4018
        %v4145 = vpop.permute.xlu0 %4144
        %4148 = vset.pattern.permute.xlu0 0
        %4149 = vperm.xlu0 %4148, %v4019
        %v4150 = vpop.permute.xlu0 %4149
        %4153 = vset.pattern.permute.xlu0 0
        %4154 = vperm.xlu0 %4153, %v4020
        %v4155 = vpop.permute.xlu0 %4154
        %4158 = vset.pattern.permute.xlu0 0
        %4159 = vperm.xlu0 %4158, %v4021
        %v4160 = vpop.permute.xlu0 %4159
        %4163 = vset.pattern.permute.xlu0 0
        %4164 = vperm.xlu0 %4163, %v4022
        %v4165 = vpop.permute.xlu0 %4164
        %4168 = vset.pattern.permute.xlu0 0
        %4169 = vperm.xlu0 %4168, %v4023
        %v4170 = vpop.permute.xlu0 %4169
        %v4172 = vmul.f32 %v4035, %v3716
        %v4173 = vmul.f32 %v4040, %v3717
        %v4174 = vmul.f32 %v4045, %v3718
        %v4175 = vmul.f32 %v4050, %v3719
        %v4176 = vmul.f32 %v4055, %v3720
        %v4177 = vmul.f32 %v4060, %v3721
        %v4178 = vmul.f32 %v4065, %v3722
        %v4179 = vmul.f32 %v4070, %v3723
        %v4180 = vmul.f32 %v4075, %v3724
        %v4181 = vmul.f32 %v4080, %v3725
        %v4182 = vmul.f32 %v4085, %v3726
        %v4183 = vmul.f32 %v4090, %v3727
        %v4184 = vmul.f32 %v4095, %v3728
        %v4185 = vmul.f32 %v4100, %v3729
        %v4186 = vmul.f32 %v4105, %v3730
        %v4187 = vmul.f32 %v4110, %v3731
        %v4188 = vmul.f32 %v4115, %v3732
        %v4189 = vmul.f32 %v4120, %v3733
        %v4190 = vmul.f32 %v4125, %v3734
        %v4191 = vmul.f32 %v4130, %v3735
        %v4192 = vmul.f32 %v4135, %v3736
        %v4193 = vmul.f32 %v4140, %v3737
        %v4194 = vmul.f32 %v4145, %v3738
        %v4195 = vmul.f32 %v4150, %v3739
        %v4196 = vmul.f32 %v4155, %v3740
        %v4197 = vmul.f32 %v4160, %v3741
        %v4198 = vmul.f32 %v4165, %v3742
        %v4199 = vmul.f32 %v4170, %v3743
        %vm4200 = vcmask 785408
        %v4202 = vsel %vm4200, %v4025, 0
        %v4205 = vsel %vm4200, %v4027, 0
        %v4208 = vsel %vm4200, %v4029, 0
        %v4211 = vsel %vm4200, %v4031, 0
        %4213 = vmatprep.subr.mxu0 0.0
        %4214 = vmatpush1.msra.mxu0 %v4172
        %4215 = vmatprep.subr.mxu0 0.0
        %4216 = vmatpush1.msra.mxu0 %v4173
        %4217 = vmatprep.subr.mxu0 0.0
        %4218 = vmatpush1.msra.mxu0 %v4174
        %4219 = vmatprep.subr.mxu0 0.0
        %4220 = vmatpush1.msra.mxu0 %v4175
        %4221 = vmatprep.subr.mxu0 0.0
        %4222 = vmatpush1.msra.mxu0 %v4176
        %4223 = vmatprep.subr.mxu0 0.0
        %4224 = vmatpush1.msra.mxu0 %v4177
        %4225 = vmatprep.subr.mxu0 0.0
        %4226 = vmatpush1.msra.mxu0 %v4178
        %4227 = vmatprep.subr.mxu0 0.0
        %4228 = vmatpush1.msra.mxu0 %v4179
        %4229 = vmatprep.subr.mxu0 0.0
        %4230 = vmatpush1.msra.mxu0 %v4180
        %4231 = vmatprep.subr.mxu0 0.0
        %4232 = vmatpush1.msra.mxu0 %v4181
        %4233 = vmatprep.subr.mxu0 0.0
        %4234 = vmatpush1.msra.mxu0 %v4182
        %4235 = vmatprep.subr.mxu0 0.0
        %4236 = vmatpush1.msra.mxu0 %v4183
        %4237 = vmatprep.subr.mxu0 0.0
        %4238 = vmatpush1.msra.mxu0 %v4184
        %4239 = vmatprep.subr.mxu0 0.0
        %4240 = vmatpush1.msra.mxu0 %v4185
        %4241 = vmatprep.subr.mxu0 0.0
        %4242 = vmatpush1.msra.mxu0 %v4186
        %4243 = vmatprep.subr.mxu0 0.0
        %4244 = vmatpush1.msra.mxu0 %v4187
        %4245 = vmatprep.subr.mxu0 0.0
        %4246 = vmatpush1.msra.mxu0 %v4188
        %4247 = vmatprep.subr.mxu0 0.0
        %4248 = vmatpush1.msra.mxu0 %v4189
        %4249 = vmatprep.subr.mxu0 0.0
        %4250 = vmatpush1.msra.mxu0 %v4190
        %4251 = vmatprep.subr.mxu0 0.0
        %4252 = vmatpush1.msra.mxu0 %v4191
        %4253 = vmatprep.subr.mxu0 0.0
        %4254 = vmatpush1.msra.mxu0 %v4192
        %4255 = vmatprep.subr.mxu0 0.0
        %4256 = vmatpush1.msra.mxu0 %v4193
        %4257 = vmatprep.subr.mxu0 0.0
        %4258 = vmatpush1.msra.mxu0 %v4194
        %4259 = vmatprep.subr.mxu0 0.0
        %4260 = vmatpush1.msra.mxu0 %v4195
        %4261 = vmatprep.subr.mxu0 0.0
        %4262 = vmatpush1.msra.mxu0 %v4196
        %4263 = vmatprep.subr.mxu0 0.0
        %4264 = vmatpush1.msra.mxu0 %v4197
        %4265 = vmatprep.subr.mxu0 0.0
        %4266 = vmatpush1.msra.mxu0 %v4198
        %4267 = vmatprep.subr.mxu0 0.0
        %4268 = vmatpush1.msra.mxu0 %v4199
        %4269 = vmatprep.subr.mxu0 0.0
        %4270 = vmatpush1.msra.mxu0 0.0
        %4271 = vmatprep.subr.mxu0 0.0
        %4272 = vmatpush1.msra.mxu0 0.0
        %4273 = vmatprep.subr.mxu0 0.0
        %4274 = vmatpush1.msra.mxu0 0.0
        %4275 = vmatprep.subr.mxu0 0.0
        %4276 = vmatpush1.msra.mxu0 0.0
        %4277 = vmatprep.mubr.f32.mxu0 %v4202
        %4278 = vmatmul.mubr.f32.gmra.mrb[0].mxu0 %v4024
        %v4279 = vpop.f32.mrb[0].mxu0
        %v4280 = vadd.f32 0.0, %v4279
        %v4281 = vpop.f32.mrb[0].mxu0
        %4282 = vmatprep.mubr.f32.mxu0 %v4205
        %4283 = vmatmul.mubr.f32.gmra.mrb[0].mxu0 %v4026
        %v4284 = vpop.f32.mrb[0].mxu0
        %v4285 = vadd.f32 0.0, %v4284
        %v4286 = vpop.f32.mrb[0].mxu0
        %4287 = vmatprep.mubr.f32.mxu0 %v4208
        %4288 = vmatmul.mubr.f32.gmra.mrb[0].mxu0 %v4028
        %v4289 = vpop.f32.mrb[0].mxu0
        %v4290 = vadd.f32 0.0, %v4289
        %v4291 = vpop.f32.mrb[0].mxu0
        %4292 = vmatprep.mubr.f32.mxu0 %v4211
        %4293 = vmatmul.mubr.f32.gmra.mrb[0].mxu0 %v4030
        %v4294 = vpop.f32.mrb[0].mxu0
        %v4295 = vadd.f32 0.0, %v4294
        %v4296 = vpop.f32.mrb[0].mxu0
        %4297 = vdwg.mxu0
        %v4298 = vld [vmem:[%s17] sm:$0xff]
        %v4299 = vld [vmem:[%s17 + $0x8] sm:$0xff]
        %v4300 = vld [vmem:[%s17 + $0x10] sm:$0xff]
        %v4301 = vld [vmem:[%s17 + $0x18] sm:$0xff]
        %v4302 = vld [vmem:[%s17 + $0x20] sm:$0xff]
        %v4303 = vld [vmem:[%s17 + $0x28] sm:$0xff]
        %v4304 = vld [vmem:[%s17 + $0x30] sm:$0xff]
        %v4305 = vld [vmem:[%s17 + $0x38] sm:$0xff]
        %v4306 = vld [vmem:[%s17 + $0x40] sm:$0xff]
        %v4307 = vld [vmem:[%s17 + $0x48] sm:$0xff]
        %v4308 = vld [vmem:[%s17 + $0x50] sm:$0xff]
        %v4309 = vld [vmem:[%s17 + $0x58] sm:$0xff]
        %v4310 = vld [vmem:[%s17 + $0x60] sm:$0xff]
        %v4311 = vld [vmem:[%s17 + $0x68] sm:$0xff]
        %v4312 = vld [vmem:[%s17 + $0x70] sm:$0xff]
        %v4313 = vld [vmem:[%s17 + $0x78] sm:$0xff]
        %v4314 = vld [vmem:[%s18] sm:$0x1]
        %v4316 = vlaneseq
        %v4317 = vshrl.u32 %v4316, 7
        %v4318 = vsub.s32 0, %v4317
        %v4319 = vrot.slane %v4314, %v4318
        %4321 = vmatprep.subr.mxu0 0.0
        %4322 = vmatpush1.msra.mxu0 %v4298
        %4323 = vmatprep.subr.mxu0 0.0
        %4324 = vmatpush1.msra.mxu0 %v4299
        %4325 = vmatprep.subr.mxu0 0.0
        %4326 = vmatpush1.msra.mxu0 %v4300
        %4327 = vmatprep.subr.mxu0 0.0
        %4328 = vmatpush1.msra.mxu0 %v4301
        %4329 = vmatprep.subr.mxu0 0.0
        %4330 = vmatpush1.msra.mxu0 %v4302
        %4331 = vmatprep.subr.mxu0 0.0
        %4332 = vmatpush1.msra.mxu0 %v4303
        %4333 = vmatprep.subr.mxu0 0.0
        %4334 = vmatpush1.msra.mxu0 %v4304
        %4335 = vmatprep.subr.mxu0 0.0
        %4336 = vmatpush1.msra.mxu0 %v4305
        %4337 = vmatprep.subr.mxu0 0.0
        %4338 = vmatpush1.msra.mxu0 %v4306
        %4339 = vmatprep.subr.mxu0 0.0
        %4340 = vmatpush1.msra.mxu0 %v4307
        %4341 = vmatprep.subr.mxu0 0.0
        %4342 = vmatpush1.msra.mxu0 %v4308
        %4343 = vmatprep.subr.mxu0 0.0
        %4344 = vmatpush1.msra.mxu0 %v4309
        %4345 = vmatprep.subr.mxu0 0.0
        %4346 = vmatpush1.msra.mxu0 %v4310
        %4347 = vmatprep.subr.mxu0 0.0
        %4348 = vmatpush1.msra.mxu0 %v4311
        %4349 = vmatprep.subr.mxu0 0.0
        %4350 = vmatpush1.msra.mxu0 %v4312
        %4351 = vmatprep.subr.mxu0 0.0
        %4352 = vmatpush1.msra.mxu0 %v4313
        %4353 = vmatprep.subr.mxu0 0.0
        %4354 = vmatpush1.msra.mxu0 0.0
        %4355 = vmatprep.subr.mxu0 0.0
        %4356 = vmatpush1.msra.mxu0 0.0
        %4357 = vmatprep.subr.mxu0 0.0
        %4358 = vmatpush1.msra.mxu0 0.0
        %4359 = vmatprep.subr.mxu0 0.0
        %4360 = vmatpush1.msra.mxu0 0.0
        %4361 = vmatprep.subr.mxu0 0.0
        %4362 = vmatpush1.msra.mxu0 0.0
        %4363 = vmatprep.subr.mxu0 0.0
        %4364 = vmatpush1.msra.mxu0 0.0
        %4365 = vmatprep.subr.mxu0 0.0
        %4366 = vmatpush1.msra.mxu0 0.0
        %4367 = vmatprep.subr.mxu0 0.0
        %4368 = vmatpush1.msra.mxu0 0.0
        %4369 = vmatprep.subr.mxu0 0.0
        %4370 = vmatpush1.msra.mxu0 0.0
        %4371 = vmatprep.subr.mxu0 0.0
        %4372 = vmatpush1.msra.mxu0 0.0
        %4373 = vmatprep.subr.mxu0 0.0
        %4374 = vmatpush1.msra.mxu0 0.0
        %4375 = vmatprep.subr.mxu0 0.0
        %4376 = vmatpush1.msra.mxu0 0.0
        %4377 = vmatprep.subr.mxu0 0.0
        %4378 = vmatpush1.msra.mxu0 0.0
        %4379 = vmatprep.subr.mxu0 0.0
        %4380 = vmatpush1.msra.mxu0 0.0
        %4381 = vmatprep.subr.mxu0 0.0
        %4382 = vmatpush1.msra.mxu0 0.0
        %4383 = vmatprep.subr.mxu0 0.0
        %4384 = vmatpush1.msra.mxu0 0.0
        %4385 = vmatprep.mubr.f32.mxu0 0.0
        %4386 = vmatmul.mubr.f32.gmra.mrb[0].mxu0 %v4280
        %v4387 = vpop.f32.mrb[0].mxu0
        %v4388 = vadd.f32 %v4319, %v4387
        %v4389 = vpop.f32.mrb[0].mxu0
        %4390 = vmatprep.mubr.f32.mxu0 0.0
        %4391 = vmatmul.mubr.f32.gmra.mrb[0].mxu0 %v4285
        %v4392 = vpop.f32.mrb[0].mxu0
        %v4393 = vadd.f32 %v4319, %v4392
        %v4394 = vpop.f32.mrb[0].mxu0
        %4395 = vmatprep.mubr.f32.mxu0 0.0
        %4396 = vmatmul.mubr.f32.gmra.mrb[0].mxu0 %v4290
        %v4397 = vpop.f32.mrb[0].mxu0
        %v4398 = vadd.f32 %v4319, %v4397
        %v4399 = vpop.f32.mrb[0].mxu0
        %4400 = vmatprep.mubr.f32.mxu0 0.0
        %4401 = vmatmul.mubr.f32.gmra.mrb[0].mxu0 %v4295
        %v4402 = vpop.f32.mrb[0].mxu0
        %v4403 = vadd.f32 %v4319, %v4402
        %v4404 = vpop.f32.mrb[0].mxu0
        %4405 = vdwg.mxu0
        %vm4406 = vcmp.gt.f32.partialorder %v4388, 0.0
        %vm4407 = vcmp.gt.f32.partialorder %v4393, 0.0
        %vm4408 = vcmp.gt.f32.partialorder %v4398, 0.0
        %vm4409 = vcmp.gt.f32.partialorder %v4403, 0.0
        %v4410 = vmin.f32 %v4388, 0.0
        %v4411 = vmin.f32 %v4393, 0.0
        %v4412 = vmin.f32 %v4398, 0.0
        %v4413 = vmin.f32 %v4403, 0.0
        %v4414 = vmul.f32 %v4410, 1.442695
        %v4415 = vpow.pop %v4414
        %v4416 = vmul.f32 %v4411, 1.442695
        %v4417 = vpow.pop %v4416
        %v4418 = vmul.f32 %v4412, 1.442695
        %v4419 = vpow.pop %v4418
        %v4420 = vmul.f32 %v4413, 1.442695
        %v4421 = vpow.pop %v4420
        %v4422 = vsub.f32 %v4415, 1.0
        %v4423 = vsub.f32 %v4417, 1.0
        %v4424 = vsub.f32 %v4419, 1.0
        %v4425 = vsub.f32 %v4421, 1.0
        %v4426 = vsel %vm4406, %v4388, %v4422
        %v4427 = vsel %vm4407, %v4393, %v4423
        %v4428 = vsel %vm4408, %v4398, %v4424
        %v4429 = vsel %vm4409, %v4403, %v4425
        %v4430 = vld [vmem:[%s19] sm:$0xff]
        %v4431 = vld [vmem:[%s19 + $0x8] sm:$0xff]
        %v4432 = vld [vmem:[%s19 + $0x10] sm:$0xff]
        %v4433 = vld [vmem:[%s19 + $0x18] sm:$0xff]
        %v4434 = vld [vmem:[%s19 + $0x20] sm:$0xff]
        %v4435 = vld [vmem:[%s19 + $0x28] sm:$0xff]
        %v4436 = vld [vmem:[%s19 + $0x30] sm:$0xff]
        %v4437 = vld [vmem:[%s19 + $0x38] sm:$0xff]
        %v4438 = vld [vmem:[%s19 + $0x40] sm:$0xff]
        %v4439 = vld [vmem:[%s19 + $0x48] sm:$0xff]
        %v4440 = vld [vmem:[%s19 + $0x50] sm:$0xff]
        %v4441 = vld [vmem:[%s19 + $0x58] sm:$0xff]
        %v4442 = vld [vmem:[%s19 + $0x60] sm:$0xff]
        %v4443 = vld [vmem:[%s19 + $0x68] sm:$0xff]
        %v4444 = vld [vmem:[%s19 + $0x70] sm:$0xff]
        %v4445 = vld [vmem:[%s19 + $0x78] sm:$0xff]
        %v4446 = vld [vmem:[%s20] sm:$0x1]
        %v4448 = vlaneseq
        %v4449 = vshrl.u32 %v4448, 7
        %v4450 = vsub.s32 0, %v4449
        %v4451 = vrot.slane %v4446, %v4450
        %4453 = vmatprep.subr.mxu0 0.0
        %4454 = vmatpush1.msra.mxu0 %v4430
        %4455 = vmatprep.subr.mxu0 0.0
        %4456 = vmatpush1.msra.mxu0 %v4431
        %4457 = vmatprep.subr.mxu0 0.0
        %4458 = vmatpush1.msra.mxu0 %v4432
        %4459 = vmatprep.subr.mxu0 0.0
        %4460 = vmatpush1.msra.mxu0 %v4433
        %4461 = vmatprep.subr.mxu0 0.0
        %4462 = vmatpush1.msra.mxu0 %v4434
        %4463 = vmatprep.subr.mxu0 0.0
        %4464 = vmatpush1.msra.mxu0 %v4435
        %4465 = vmatprep.subr.mxu0 0.0
        %4466 = vmatpush1.msra.mxu0 %v4436
        %4467 = vmatprep.subr.mxu0 0.0
        %4468 = vmatpush1.msra.mxu0 %v4437
        %4469 = vmatprep.subr.mxu0 0.0
        %4470 = vmatpush1.msra.mxu0 %v4438
        %4471 = vmatprep.subr.mxu0 0.0
        %4472 = vmatpush1.msra.mxu0 %v4439
        %4473 = vmatprep.subr.mxu0 0.0
        %4474 = vmatpush1.msra.mxu0 %v4440
        %4475 = vmatprep.subr.mxu0 0.0
        %4476 = vmatpush1.msra.mxu0 %v4441
        %4477 = vmatprep.subr.mxu0 0.0
        %4478 = vmatpush1.msra.mxu0 %v4442
        %4479 = vmatprep.subr.mxu0 0.0
        %4480 = vmatpush1.msra.mxu0 %v4443
        %4481 = vmatprep.subr.mxu0 0.0
        %4482 = vmatpush1.msra.mxu0 %v4444
        %4483 = vmatprep.subr.mxu0 0.0
        %4484 = vmatpush1.msra.mxu0 %v4445
        %4485 = vmatprep.subr.mxu0 0.0
        %4486 = vmatpush1.msra.mxu0 0.0
        %4487 = vmatprep.subr.mxu0 0.0
        %4488 = vmatpush1.msra.mxu0 0.0
        %4489 = vmatprep.subr.mxu0 0.0
        %4490 = vmatpush1.msra.mxu0 0.0
        %4491 = vmatprep.subr.mxu0 0.0
        %4492 = vmatpush1.msra.mxu0 0.0
        %4493 = vmatprep.subr.mxu0 0.0
        %4494 = vmatpush1.msra.mxu0 0.0
        %4495 = vmatprep.subr.mxu0 0.0
        %4496 = vmatpush1.msra.mxu0 0.0
        %4497 = vmatprep.subr.mxu0 0.0
        %4498 = vmatpush1.msra.mxu0 0.0
        %4499 = vmatprep.subr.mxu0 0.0
        %4500 = vmatpush1.msra.mxu0 0.0
        %4501 = vmatprep.subr.mxu0 0.0
        %4502 = vmatpush1.msra.mxu0 0.0
        %4503 = vmatprep.subr.mxu0 0.0
        %4504 = vmatpush1.msra.mxu0 0.0
        %4505 = vmatprep.subr.mxu0 0.0
        %4506 = vmatpush1.msra.mxu0 0.0
        %4507 = vmatprep.subr.mxu0 0.0
        %4508 = vmatpush1.msra.mxu0 0.0
        %4509 = vmatprep.subr.mxu0 0.0
        %4510 = vmatpush1.msra.mxu0 0.0
        %4511 = vmatprep.subr.mxu0 0.0
        %4512 = vmatpush1.msra.mxu0 0.0
        %4513 = vmatprep.subr.mxu0 0.0
        %4514 = vmatpush1.msra.mxu0 0.0
        %4515 = vmatprep.subr.mxu0 0.0
        %4516 = vmatpush1.msra.mxu0 0.0
        %4517 = vmatprep.mubr.f32.mxu0 0.0
        %4518 = vmatmul.mubr.f32.gmra.mrb[0].mxu0 %v4426
        %v4519 = vpop.f32.mrb[0].mxu0
        %v4520 = vadd.f32 %v4451, %v4519
        %v4521 = vpop.f32.mrb[0].mxu0
        %4522 = vmatprep.mubr.f32.mxu0 0.0
        %4523 = vmatmul.mubr.f32.gmra.mrb[0].mxu0 %v4427
        %v4524 = vpop.f32.mrb[0].mxu0
        %v4525 = vadd.f32 %v4451, %v4524
        %v4526 = vpop.f32.mrb[0].mxu0
        %4527 = vmatprep.mubr.f32.mxu0 0.0
        %4528 = vmatmul.mubr.f32.gmra.mrb[0].mxu0 %v4428
        %v4529 = vpop.f32.mrb[0].mxu0
        %v4530 = vadd.f32 %v4451, %v4529
        %v4531 = vpop.f32.mrb[0].mxu0
        %4532 = vmatprep.mubr.f32.mxu0 0.0
        %4533 = vmatmul.mubr.f32.gmra.mrb[0].mxu0 %v4429
        %v4534 = vpop.f32.mrb[0].mxu0
        %v4535 = vadd.f32 %v4451, %v4534
        %v4536 = vpop.f32.mrb[0].mxu0
        %4537 = vdwg.mxu0
        %4538 = vst.msk [vmem:[%s702] sm:$0xff] %vm953, %v931
        %4539 = vst.msk [vmem:[%s702 + $0x8] sm:$0xff] %vm953, %v936
        %4540 = vst.msk [vmem:[%s702 + $0x10] sm:$0xff] %vm953, %v941
        %4541 = vst.msk [vmem:[%s702 + $0x18] sm:$0xff] %vm953, %v946
        %4546 = vrot.lane.b32.xlu0 %v4520, 16
        %v4547 = vpop.permute.xlu0 %4546
        %4548 = vrot.lane.b32.xlu0 %v4525, 16
        %v4549 = vpop.permute.xlu0 %4548
        %4550 = vrot.lane.b32.xlu0 %v4530, 16
        %v4551 = vpop.permute.xlu0 %4550
        %4552 = vrot.lane.b32.xlu0 %v4535, 16
        %v4553 = vpop.permute.xlu0 %4552
        %vm4558 = vcmask 261248
        %4559 = vst.msk [vmem:[%s702] sm:$0xff] %vm4558, %v4547
        %4560 = vst.msk [vmem:[%s702 + $0x8] sm:$0xff] %vm4558, %v4549
        %4561 = vst.msk [vmem:[%s702 + $0x10] sm:$0xff] %vm4558, %v4551
        %4562 = vst.msk [vmem:[%s702 + $0x18] sm:$0xff] %vm4558, %v4553
        %s4563 = smul.u32 4, %s34
        %p4564 = scmp.lt.s32.totalorder %s4563, 7
        %s4565 = scalar_select %p4564, %s4563, 7
        %s4566 = smul.addr %s4565, 8
        %s4567 = scalar_lea.vmem %s21, %s4566
        // Predicated region
        $region117: #{tpu_custom_call.1} parent=103 // pred_check
          %p4568 = pneg %p498
        $region118: #{tpu_custom_call.1} parent=103 // pred_check_branch
          %4570 = sbr.rel (%p4568) target = $region120
        $region119: #{tpu_custom_call.1} parent=103 // pred_region
          %s4571 = smul.u32 4, %s34
        $region120: #{tpu_custom_call.1} parent=103 // pred_fallthru
          _
      $region104: #{tpu_custom_call.1} parent=5 // pred_fallthru
        _
      %p4572 = scmp.le.s32.totalorder 2, %s29
      // Predicated region
      $region121: #{tpu_custom_call.1} parent=5 // pred_check
        %p4573 = pneg %p4572
      $region122: #{tpu_custom_call.1} parent=5 // pred_check_branch
        %4575 = sbr.rel (%p4573) target = $region124
      $region123: #{tpu_custom_call.1} parent=5 // pred_region
        %s4576 = ssub.s32 %s29, 2
        // Predicated region
        $region125: #{tpu_custom_call.1} parent=123 // pred_check
          %p4577 = pneg %p504
        $region126: #{tpu_custom_call.1} parent=123 // pred_check_branch
          %4579 = sbr.rel (%p4577) target = $region128
        $region127: #{tpu_custom_call.1} parent=123 // pred_region
          %s4580 = smul.u32 4, %s35
          %p4581 = scmp.lt.s32.totalorder %s4580, 7
          %s4582 = scalar_select %p4581, %s4580, 7
          %s4583 = smul.addr %s4582, 8
          %s4584 = scalar_lea.vmem %s21, %s4583
        $region128: #{tpu_custom_call.1} parent=123 // pred_fallthru
          _
      $region124: #{tpu_custom_call.1} parent=5 // pred_fallthru
        _
    $region6: #{tpu_custom_call.1} parent=1 // loop_footer
      %s33 = sadd.s32 1, %s29
    $region7: #{tpu_custom_call.1} parent=1 // loop_footer_branch
      %28 = sbr.rel target = $region3
    $region8: #{tpu_custom_call.1} parent=1 // loop_exit
      _
    %4585 = vsyncpa [#allocation3], 1
    %s4586 = scalar_lea.sflag [#allocation3], 1
    %4587 = vsyncpa %s4586, 1
    %4588 = vsyncpa [#allocation5], 1

</llo_original>
